<compile_context>
chip_gen: v6e
topology: v6e:2x2x1
jax: 0.10.0
libtpu: 0.0.40
codegen_flags: <defaults>
</compile_context>

<pallas_src>
import jax
import jax.numpy as jnp
from jax.experimental import pallas as pl
from jax.experimental.pallas import tpu as pltpu


def _round_up(x, m):
    return (x + m - 1) // m * m


def _fold_bn(gamma, beta, mean, var, eps=1e-5):
    scale = gamma / jnp.sqrt(var + eps)
    bias = beta - mean * scale
    return scale, bias


def _prep_conv_bn(w_oihw, gamma, beta, mean, var, cp, eps=1e-5):
    """Fold BN scale into the conv weight, pad channels to cp, reshape for im2col."""
    cout, cin = w_oihw.shape[0], w_oihw.shape[1]
    scale, bias = _fold_bn(gamma, beta, mean, var, eps)
    w = jnp.transpose(w_oihw, (2, 3, 1, 0)) * scale              # OIHW -> HWIO, * scale(O)
    w = jnp.pad(w, ((0, 0), (0, 0), (0, cp - cin), (0, cp - cout)))
    w = w.reshape(9 * cp, cp).astype(jnp.bfloat16)                # (9*Cp, Cp) bf16
    b = jnp.pad(bias, (0, cp - cout)).reshape(1, cp).astype(jnp.float32)
    return w, b


def _pick_row_tile(H, W, target_m=256):
    """Smallest divisor of H whose output tile (row_tile*W) fills a 256-deep MXU."""
    for t in range(1, H + 1):
        if H % t == 0 and t * W >= target_m:
            return t
    return H


def _make_fused_kernel(H, W, T, cp, wp, col_off):
    """Fused conv1+bn1+relu+conv2+bn2+residual+relu kernel.
    Grid = (batch n, row tile r); one output tile of T rows per step."""

    def kernel(x_ref, w1_ref, b1_ref, w2_ref, b2_ref, o_ref, xpad_s, mid_s):
        r = pl.program_id(1)
        r_last = pl.num_programs(1) - 1
        r0 = pl.multiple_of(r * T, T)

        @pl.when(r == 0)
        def _per_image_setup():
            # Zero ONLY the halo border cells the conv windows can read; the
            # interiors are fully overwritten during this image's steps.
            zrow = jnp.zeros((1, wp, cp), jnp.bfloat16)
            xpad_s[0:1, :, :] = zrow
            xpad_s[H + 1:H + 2, :, :] = zrow
            xpad_s[H + 2:H + 3, :, :] = zrow
            mid_s[0:1, :, :] = zrow
            mid_s[H + 1:H + 2, :, :] = zrow
            zcol_x = jnp.zeros((H + 3, 1, cp), jnp.bfloat16)
            zcol_m = jnp.zeros((H + 2, 1, cp), jnp.bfloat16)
            xpad_s[:, col_off - 1:col_off, :] = zcol_x
            xpad_s[:, col_off + W:col_off + W + 1, :] = zcol_x
            mid_s[:, col_off - 1:col_off, :] = zcol_m
            mid_s[:, col_off + W:col_off + W + 1, :] = zcol_m
            # Stage this image (bf16) in the zero-padded scratch; the interior
            # starts at a sublane-aligned column so the store is unmasked.
            xpad_s[1:H + 1, col_off:col_off + W, :] = x_ref[0].astype(jnp.bfloat16)

        # ---- conv1 + bn1 + relu for output rows [r0, r0+T]  (T+1 rows) ------
        # The extra bottom row is the halo row this step's conv2 needs; the
        # top row (r0) is a 1-row recompute of the previous step's halo row.
        # TODO(synk): on v5e (128-deep MXU) split this into 9 accumulated
        #             K=cp matmuls instead of the K=9*cp im2col concat.
        patches1 = jnp.concatenate(
            [xpad_s[pl.ds(r0 + kh, T + 1),
                    col_off - 1 + kw:col_off - 1 + kw + W, :]
             for kh in range(3) for kw in range(3)],
            axis=-1)                                              # (T+1, W, 9*cp) bf16
        acc1 = jnp.einsum("hwk,ko->hwo", patches1, w1_ref[...],
                          preferred_element_type=jnp.float32)
        out1 = jnp.maximum(acc1 + b1_ref[...], 0.0)               # BN1 scale folded in w1
        mid_s[pl.ds(r0 + 1, T + 1), col_off:col_off + W, :] = out1.astype(jnp.bfloat16)

        @pl.when(r == r_last)
        def _rezero_bottom_halo():
            # The last step's extra conv1 row lands on mid_s's bottom halo row;
            # conv2's zero padding requires that row to be zero again.
            mid_s[H + 1:H + 2, col_off:col_off + W, :] = jnp.zeros(
                (1, W, cp), jnp.bfloat16)

        # ---- conv2 + bn2 + residual + relu for output rows [r0, r0+T) -------
        patches2 = jnp.concatenate(
            [mid_s[pl.ds(r0 + kh, T),
                   col_off - 1 + kw:col_off - 1 + kw + W, :]
             for kh in range(3) for kw in range(3)],
            axis=-1)                                              # (T, W, 9*cp) bf16
        acc2 = jnp.einsum("hwk,ko->hwo", patches2, w2_ref[...],
                          preferred_element_type=jnp.float32)
        identity = x_ref[0, pl.ds(r0, T), :, :]                   # f32 residual
        o_ref[0] = jnp.maximum(acc2 + b2_ref[...] + identity, 0.0).astype(o_ref.dtype)

    return kernel


def basic_block_forward(x_nchw, params, *, row_tile=None):
    """BasicBlock.forward: conv1->bn1->relu->conv2->bn2->(+identity)->relu."""
    N, C, H, W = x_nchw.shape
    planes = params["w1"].shape[0]
    assert params["w1"].shape == (planes, C, 3, 3)
    assert params["w2"].shape == (planes, planes, 3, 3)
    assert C == planes, "stride=1 / no-downsample BasicBlock needs inplanes == planes"
    if row_tile is None:
        row_tile = _pick_row_tile(H, W)
    assert H % row_tile == 0
    T = row_tile

    cp = _round_up(max(C, planes), 128)       # lane-dense channel count
    col_off = 8                               # sublane-aligned interior column start
    wp = col_off + W + 8                      # padded scratch width

    # NCHW -> NHWC with lane-dense (zero-padded) channels.  In a full network
    # this layout would be kept end-to-end; here it is a one-off boundary cost.
    x = jnp.transpose(x_nchw, (0, 2, 3, 1)).astype(jnp.float32)
    x = jnp.pad(x, ((0, 0), (0, 0), (0, 0), (0, cp - C)))

    w1, b1 = _prep_conv_bn(params["w1"], params["g1"], params["b1"],
                           params["m1"], params["v1"], cp)
    w2, b2 = _prep_conv_bn(params["w2"], params["g2"], params["b2"],
                           params["m2"], params["v2"], cp)

    kernel = _make_fused_kernel(H, W, T, cp, wp, col_off)
    grid = (N, H // T)

    out = pl.pallas_call(
        kernel,
        out_shape=jax.ShapeDtypeStruct((N, H, W, cp), jnp.float32),
        grid=grid,
        in_specs=[
            # Whole image stays VMEM-resident across the (sequential) row axis:
            # it feeds the r==0 bf16 staging and the per-step f32 residual.
            # TODO(synk): drop the f32/bf16 double residency by DMA-ing x
            #             straight into xpad_s (memory_space=pl.ANY).
            pl.BlockSpec((1, H, W, cp), lambda n, r: (n, 0, 0, 0)),
            # TODO(synk): single-buffer these constant-index weight/bias blocks
            #             (pipeline_mode=pl.Buffered(1)) to halve their VMEM.
            pl.BlockSpec((9 * cp, cp), lambda n, r: (0, 0)),
            pl.BlockSpec((1, cp), lambda n, r: (0, 0)),
            pl.BlockSpec((9 * cp, cp), lambda n, r: (0, 0)),
            pl.BlockSpec((1, cp), lambda n, r: (0, 0)),
        ],
        out_specs=pl.BlockSpec((1, T, W, cp), lambda n, r: (n, r, 0, 0)),
        scratch_shapes=[
            pltpu.VMEM((H + 3, wp, cp), jnp.bfloat16),   # zero-padded input (bf16)
            pltpu.VMEM((H + 2, wp, cp), jnp.bfloat16),   # zero-padded conv1 act (bf16)
        ],
        compiler_params=pltpu.CompilerParams(
            # Batch axis parallel (megacore / v7x 2 TCs); the row axis must stay
            # "arbitrary" because mid_s rows persist across row steps.
            # TODO(synk): for v7x at N==1, add a parallel row-halving axis with
            #             per-core halos so both TensorCores are used.
            dimension_semantics=("parallel", "arbitrary"),
            vmem_limit_bytes=32 * 1024 * 1024,
        ),
    )(x, w1, b1, w2, b2)

    # TODO(synk): a full network would keep the padded bf16 NHWC layout
    # end-to-end; the f32 channel-padded output doubles HBM writeback.
    out = out[..., :planes]                              # drop channel padding
    return jnp.transpose(out, (0, 3, 1, 2))              # NHWC -> NCHW


# ------------------------- references for testing -------------------------

def _conv_nhwc(x, w_hwio, preferred=None):
    return jax.lax.conv_general_dilated(
        x, w_hwio, window_strides=(1, 1), padding="SAME",
        dimension_numbers=("NHWC", "HWIO", "NHWC"),
        preferred_element_type=preferred)


def basic_block_reference_matched(x_nchw, params, eps=1e-5):
    """Matched-precision reference: bf16 MXU operands, f32 accumulate/epilogue."""
    x = jnp.transpose(x_nchw, (0, 2, 3, 1)).astype(jnp.float32)
    s1, b1 = _fold_bn(params["g1"], params["b1"], params["m1"], params["v1"], eps)
    s2, b2 = _fold_bn(params["g2"], params["b2"], params["m2"], params["v2"], eps)
    w1 = (jnp.transpose(params["w1"], (2, 3, 1, 0)) * s1).astype(jnp.bfloat16)
    w2 = (jnp.transpose(params["w2"], (2, 3, 1, 0)) * s2).astype(jnp.bfloat16)

    out = jnp.maximum(_conv_nhwc(x.astype(jnp.bfloat16), w1, jnp.float32) + b1, 0.0)
    out = _conv_nhwc(out.astype(jnp.bfloat16), w2, jnp.float32) + b2 + x
    out = jnp.maximum(out, 0.0)
    return jnp.transpose(out, (0, 3, 1, 2))


def basic_block_reference_f32(x_nchw, params, eps=1e-5):
    """Pure-f32 reference (module semantics)."""
    x = jnp.transpose(x_nchw, (0, 2, 3, 1)).astype(jnp.float32)
    s1, b1 = _fold_bn(params["g1"], params["b1"], params["m1"], params["v1"], eps)
    s2, b2 = _fold_bn(params["g2"], params["b2"], params["m2"], params["v2"], eps)
    w1 = jnp.transpose(params["w1"], (2, 3, 1, 0))
    w2 = jnp.transpose(params["w2"], (2, 3, 1, 0))

    out = jnp.maximum(_conv_nhwc(x, w1) * s1 + b1, 0.0)
    out = _conv_nhwc(out, w2) * s2 + b2 + x
    out = jnp.maximum(out, 0.0)
    return jnp.transpose(out, (0, 3, 1, 2))


if __name__ == "__main__":
    key = jax.random.PRNGKey(0)
    N, inplanes, H, W = 2, 4, 16, 16
    planes = 4  # expansion = 1, inplanes == planes, stride = 1, downsample = None

    keys = jax.random.split(key, 11)
    params = {
        "w1": jax.random.normal(keys[0], (planes, inplanes, 3, 3), jnp.float32) * 0.1,
        "w2": jax.random.normal(keys[1], (planes, planes, 3, 3), jnp.float32) * 0.1,
        "g1": 1.0 + 0.1 * jax.random.normal(keys[2], (planes,), jnp.float32),
        "b1": 0.1 * jax.random.normal(keys[3], (planes,), jnp.float32),
        "m1": 0.1 * jax.random.normal(keys[4], (planes,), jnp.float32),
        "v1": jnp.abs(jax.random.normal(keys[5], (planes,), jnp.float32)) + 0.5,
        "g2": 1.0 + 0.1 * jax.random.normal(keys[6], (planes,), jnp.float32),
        "b2": 0.1 * jax.random.normal(keys[7], (planes,), jnp.float32),
        "m2": 0.1 * jax.random.normal(keys[8], (planes,), jnp.float32),
        "v2": jnp.abs(jax.random.normal(keys[9], (planes,), jnp.float32)) + 0.5,
    }
    x = jax.random.normal(keys[10], (N, inplanes, H, W), jnp.float32)

    ref_m = jax.block_until_ready(basic_block_reference_matched(x, params))
    ref_f = jax.block_until_ready(basic_block_reference_f32(x, params))

    # Multi-row-step config (exercises halo persistence across grid steps) and
    # the auto-tiled config (row_tile chosen so row_tile*W >= 256).
    for rt in (4, None):
        out = jax.block_until_ready(basic_block_forward(x, params, row_tile=rt))
        assert out.shape == (N, planes, H, W), out.shape
        err_m = float(jnp.max(jnp.abs(out - ref_m)))
        err_f = float(jnp.max(jnp.abs(out - ref_f)))
        assert jnp.allclose(out, ref_m, atol=5e-3, rtol=5e-3), (
            f"row_tile={rt}: mismatch vs matched-precision reference "
            f"(max abs err {err_m})")
        assert jnp.allclose(out, ref_f, atol=5e-2, rtol=5e-2), (
            f"row_tile={rt}: mismatch vs f32 reference (max abs err {err_f})")

    print("KERNEL_OK")
</pallas_src>

<mosaic_0001>
module attributes {stable_mosaic.version = 11 : i64} {
  func.func @kernel(%arg0: i32, %arg1: i32, %arg2: memref<1x16x16x128xf32, #tpu.memory_space<vmem>>, %arg3: memref<1152x128xbf16, #tpu.memory_space<vmem>>, %arg4: memref<1x128xf32, #tpu.memory_space<vmem>>, %arg5: memref<1152x128xbf16, #tpu.memory_space<vmem>>, %arg6: memref<1x128xf32, #tpu.memory_space<vmem>>, %arg7: memref<1x4x16x128xf32, #tpu.memory_space<vmem>>, %arg8: memref<19x32x128xbf16, #tpu.memory_space<vmem>>, %arg9: memref<18x32x128xbf16, #tpu.memory_space<vmem>>) attributes {dimension_semantics = [#tpu.dimension_semantics<parallel>, #tpu.dimension_semantics<arbitrary>], iteration_bounds = array<i64: 2, 4>, scalar_prefetch = 0 : i64, scratch_operands = 2 : i64, tpu.core_type = #tpu.core_type<tc>, window_params = [{transform_indices = @transform_0, window_bounds = array<i64: 1, 16, 16, 128>}, {pipeline_mode = #tpu.pipeline_mode<synchronous>, transform_indices = @transform_1, window_bounds = array<i64: 1152, 128>}, {pipeline_mode = #tpu.pipeline_mode<synchronous>, transform_indices = @transform_2, window_bounds = array<i64: 1, 128>}, {pipeline_mode = #tpu.pipeline_mode<synchronous>, transform_indices = @transform_3, window_bounds = array<i64: 1152, 128>}, {pipeline_mode = #tpu.pipeline_mode<synchronous>, transform_indices = @transform_4, window_bounds = array<i64: 1, 128>}, {transform_indices = @transform_5, window_bounds = array<i64: 1, 4, 16, 128>}]} {
    %c4_i32 = arith.constant 4 : i32
    %0 = arith.muli %arg1, %c4_i32 : i32
    %1 = tpu.assume_multiple %0, 4 : i32
    %c0_i32 = arith.constant 0 : i32
    %2 = arith.cmpi eq, %arg1, %c0_i32 : i32
    %3 = arith.extui %2 : i1 to i32
    %c0_i32_0 = arith.constant 0 : i32
    %4 = arith.cmpi ne, %3, %c0_i32_0 : i32
    scf.if %4 {
      %cst_71 = arith.constant 0.000000e+00 : bf16
      %91 = vector.broadcast %cst_71 : bf16 to vector<1x32x128xbf16>
      %c0_72 = arith.constant 0 : index
      %c0_73 = arith.constant 0 : index
      %c0_74 = arith.constant 0 : index
      %92 = vector.load %arg8[%c0_72, %c0_73, %c0_74] : memref<19x32x128xbf16, #tpu.memory_space<vmem>>, vector<1x32x128xbf16>
      tpu.vector_store %arg8[%c0_72, %c0_73, %c0_74], %91 {strides = array<i32>} : memref<19x32x128xbf16, #tpu.memory_space<vmem>>, vector<1x32x128xbf16>,
      %c17 = arith.constant 17 : index
      %c0_75 = arith.constant 0 : index
      %c0_76 = arith.constant 0 : index
      %93 = vector.load %arg8[%c17, %c0_75, %c0_76] : memref<19x32x128xbf16, #tpu.memory_space<vmem>>, vector<1x32x128xbf16>
      tpu.vector_store %arg8[%c17, %c0_75, %c0_76], %91 {strides = array<i32>} : memref<19x32x128xbf16, #tpu.memory_space<vmem>>, vector<1x32x128xbf16>,
      %c18 = arith.constant 18 : index
      %c0_77 = arith.constant 0 : index
      %c0_78 = arith.constant 0 : index
      %94 = vector.load %arg8[%c18, %c0_77, %c0_78] : memref<19x32x128xbf16, #tpu.memory_space<vmem>>, vector<1x32x128xbf16>
      tpu.vector_store %arg8[%c18, %c0_77, %c0_78], %91 {strides = array<i32>} : memref<19x32x128xbf16, #tpu.memory_space<vmem>>, vector<1x32x128xbf16>,
      %c0_79 = arith.constant 0 : index
      %c0_80 = arith.constant 0 : index
      %c0_81 = arith.constant 0 : index
      %95 = vector.load %arg9[%c0_79, %c0_80, %c0_81] : memref<18x32x128xbf16, #tpu.memory_space<vmem>>, vector<1x32x128xbf16>
      tpu.vector_store %arg9[%c0_79, %c0_80, %c0_81], %91 {strides = array<i32>} : memref<18x32x128xbf16, #tpu.memory_space<vmem>>, vector<1x32x128xbf16>,
      %c17_82 = arith.constant 17 : index
      %c0_83 = arith.constant 0 : index
      %c0_84 = arith.constant 0 : index
      %96 = vector.load %arg9[%c17_82, %c0_83, %c0_84] : memref<18x32x128xbf16, #tpu.memory_space<vmem>>, vector<1x32x128xbf16>
      tpu.vector_store %arg9[%c17_82, %c0_83, %c0_84], %91 {strides = array<i32>} : memref<18x32x128xbf16, #tpu.memory_space<vmem>>, vector<1x32x128xbf16>,
      %cst_85 = arith.constant 0.000000e+00 : bf16
      %97 = vector.broadcast %cst_85 : bf16 to vector<19x1x128xbf16>
      %cst_86 = arith.constant 0.000000e+00 : bf16
      %98 = vector.broadcast %cst_86 : bf16 to vector<18x1x128xbf16>
      %c0_87 = arith.constant 0 : index
      %c7_88 = arith.constant 7 : index
      %c0_89 = arith.constant 0 : index
      %99 = vector.load %arg8[%c0_87, %c7_88, %c0_89] : memref<19x32x128xbf16, #tpu.memory_space<vmem>>, vector<19x1x128xbf16>
      tpu.vector_store %arg8[%c0_87, %c7_88, %c0_89], %97 {strides = array<i32>} : memref<19x32x128xbf16, #tpu.memory_space<vmem>>, vector<19x1x128xbf16>,
      %c0_90 = arith.constant 0 : index
      %c24 = arith.constant 24 : index
      %c0_91 = arith.constant 0 : index
      %100 = vector.load %arg8[%c0_90, %c24, %c0_91] : memref<19x32x128xbf16, #tpu.memory_space<vmem>>, vector<19x1x128xbf16>
      tpu.vector_store %arg8[%c0_90, %c24, %c0_91], %97 {strides = array<i32>} : memref<19x32x128xbf16, #tpu.memory_space<vmem>>, vector<19x1x128xbf16>,
      %c0_92 = arith.constant 0 : index
      %c7_93 = arith.constant 7 : index
      %c0_94 = arith.constant 0 : index
      %101 = vector.load %arg9[%c0_92, %c7_93, %c0_94] : memref<18x32x128xbf16, #tpu.memory_space<vmem>>, vector<18x1x128xbf16>
      tpu.vector_store %arg9[%c0_92, %c7_93, %c0_94], %98 {strides = array<i32>} : memref<18x32x128xbf16, #tpu.memory_space<vmem>>, vector<18x1x128xbf16>,
      %c0_95 = arith.constant 0 : index
      %c24_96 = arith.constant 24 : index
      %c0_97 = arith.constant 0 : index
      %102 = vector.load %arg9[%c0_95, %c24_96, %c0_97] : memref<18x32x128xbf16, #tpu.memory_space<vmem>>, vector<18x1x128xbf16>
      tpu.vector_store %arg9[%c0_95, %c24_96, %c0_97], %98 {strides = array<i32>} : memref<18x32x128xbf16, #tpu.memory_space<vmem>>, vector<18x1x128xbf16>,
      %c0_98 = arith.constant 0 : index
      %c0_99 = arith.constant 0 : index
      %c0_100 = arith.constant 0 : index
      %c0_101 = arith.constant 0 : index
      %103 = vector.load %arg2[%c0_98, %c0_99, %c0_100, %c0_101] : memref<1x16x16x128xf32, #tpu.memory_space<vmem>>, vector<1x16x16x128xf32>
      %104 = vector.shape_cast %103 : vector<1x16x16x128xf32> to vector<16x16x128xf32>
      %105 = arith.truncf %104 : vector<16x16x128xf32> to vector<16x16x128xbf16>
      %c1 = arith.constant 1 : index
      %c8_102 = arith.constant 8 : index
      %c0_103 = arith.constant 0 : index
      %106 = vector.load %arg8[%c1, %c8_102, %c0_103] : memref<19x32x128xbf16, #tpu.memory_space<vmem>>, vector<16x16x128xbf16>
      tpu.vector_store %arg8[%c1, %c8_102, %c0_103], %105 {strides = array<i32>} : memref<19x32x128xbf16, #tpu.memory_space<vmem>>, vector<16x16x128xbf16>,
    } else {
    }
    %c0_i32_1 = arith.constant 0 : i32
    %5 = arith.addi %1, %c0_i32_1 : i32
    %6 = arith.index_cast %5 : i32 to index
    %c7 = arith.constant 7 : index
    %c0 = arith.constant 0 : index
    %7 = vector.load %arg8[%6, %c7, %c0] : memref<19x32x128xbf16, #tpu.memory_space<vmem>>, vector<5x16x128xbf16>
    %c0_i32_2 = arith.constant 0 : i32
    %8 = arith.addi %1, %c0_i32_2 : i32
    %9 = arith.index_cast %8 : i32 to index
    %c8 = arith.constant 8 : index
    %c0_3 = arith.constant 0 : index
    %10 = vector.load %arg8[%9, %c8, %c0_3] : memref<19x32x128xbf16, #tpu.memory_space<vmem>>, vector<5x16x128xbf16>
    %c0_i32_4 = arith.constant 0 : i32
    %11 = arith.addi %1, %c0_i32_4 : i32
    %12 = arith.index_cast %11 : i32 to index
    %c9 = arith.constant 9 : index
    %c0_5 = arith.constant 0 : index
    %13 = vector.load %arg8[%12, %c9, %c0_5] : memref<19x32x128xbf16, #tpu.memory_space<vmem>>, vector<5x16x128xbf16>
    %c1_i32 = arith.constant 1 : i32
    %14 = arith.addi %1, %c1_i32 : i32
    %15 = arith.index_cast %14 : i32 to index
    %c7_6 = arith.constant 7 : index
    %c0_7 = arith.constant 0 : index
    %16 = vector.load %arg8[%15, %c7_6, %c0_7] : memref<19x32x128xbf16, #tpu.memory_space<vmem>>, vector<5x16x128xbf16>
    %c1_i32_8 = arith.constant 1 : i32
    %17 = arith.addi %1, %c1_i32_8 : i32
    %18 = arith.index_cast %17 : i32 to index
    %c8_9 = arith.constant 8 : index
    %c0_10 = arith.constant 0 : index
    %19 = vector.load %arg8[%18, %c8_9, %c0_10] : memref<19x32x128xbf16, #tpu.memory_space<vmem>>, vector<5x16x128xbf16>
    %c1_i32_11 = arith.constant 1 : i32
    %20 = arith.addi %1, %c1_i32_11 : i32
    %21 = arith.index_cast %20 : i32 to index
    %c9_12 = arith.constant 9 : index
    %c0_13 = arith.constant 0 : index
    %22 = vector.load %arg8[%21, %c9_12, %c0_13] : memref<19x32x128xbf16, #tpu.memory_space<vmem>>, vector<5x16x128xbf16>
    %c2_i32 = arith.constant 2 : i32
    %23 = arith.addi %1, %c2_i32 : i32
    %24 = arith.index_cast %23 : i32 to index
    %c7_14 = arith.constant 7 : index
    %c0_15 = arith.constant 0 : index
    %25 = vector.load %arg8[%24, %c7_14, %c0_15] : memref<19x32x128xbf16, #tpu.memory_space<vmem>>, vector<5x16x128xbf16>
    %c2_i32_16 = arith.constant 2 : i32
    %26 = arith.addi %1, %c2_i32_16 : i32
    %27 = arith.index_cast %26 : i32 to index
    %c8_17 = arith.constant 8 : index
    %c0_18 = arith.constant 0 : index
    %28 = vector.load %arg8[%27, %c8_17, %c0_18] : memref<19x32x128xbf16, #tpu.memory_space<vmem>>, vector<5x16x128xbf16>
    %c2_i32_19 = arith.constant 2 : i32
    %29 = arith.addi %1, %c2_i32_19 : i32
    %30 = arith.index_cast %29 : i32 to index
    %c9_20 = arith.constant 9 : index
    %c0_21 = arith.constant 0 : index
    %31 = vector.load %arg8[%30, %c9_20, %c0_21] : memref<19x32x128xbf16, #tpu.memory_space<vmem>>, vector<5x16x128xbf16>
    %32 = tpu.concatenate %7, %10, %13, %16, %19, %22, %25, %28, %31 in 2 : vector<5x16x128xbf16>, vector<5x16x128xbf16>, vector<5x16x128xbf16>, vector<5x16x128xbf16>, vector<5x16x128xbf16>, vector<5x16x128xbf16>, vector<5x16x128xbf16>, vector<5x16x128xbf16>, vector<5x16x128xbf16> -> vector<5x16x1152xbf16>
    %c0_22 = arith.constant 0 : index
    %c0_23 = arith.constant 0 : index
    %33 = vector.load %arg3[%c0_22, %c0_23] : memref<1152x128xbf16, #tpu.memory_space<vmem>>, vector<1152x128xbf16>
    "tpu.trace_start"() <{level = 10 : i32, message = "hwk,ko->hwo"}> : () -> ()
    %cst = arith.constant dense<0.000000e+00> : vector<5x16x128xf32>
    %34 = tpu.matmul %32, %33, %cst {dimension_numbers = #tpu.dot_dimension_numbers<[2], [0], [0, 1], [1], [0, 0, 0, 1, 1, 1], [], []>} : vector<5x16x1152xbf16>, vector<1152x128xbf16>, vector<5x16x128xf32> -> vector<5x16x128xf32>
    "tpu.trace_stop"() : () -> ()
    %c0_24 = arith.constant 0 : index
    %c0_25 = arith.constant 0 : index
    %35 = vector.load %arg4[%c0_24, %c0_25] : memref<1x128xf32, #tpu.memory_space<vmem>>, vector<1x128xf32>
    %36 = vector.shape_cast %35 : vector<1x128xf32> to vector<1x1x128xf32>
    %37 = vector.broadcast %36 : vector<1x1x128xf32> to vector<5x16x128xf32>
    %38 = arith.addf %34, %37 : vector<5x16x128xf32>
    %cst_26 = arith.constant 0.000000e+00 : f32
    %39 = vector.broadcast %cst_26 : f32 to vector<5x16x128xf32>
    %40 = arith.maximumf %38, %39 : vector<5x16x128xf32>
    %41 = arith.truncf %40 : vector<5x16x128xf32> to vector<5x16x128xbf16>
    %c1_i32_27 = arith.constant 1 : i32
    %42 = arith.addi %1, %c1_i32_27 : i32
    %43 = arith.index_cast %42 : i32 to index
    %c8_28 = arith.constant 8 : index
    %c0_29 = arith.constant 0 : index
    %44 = vector.load %arg9[%43, %c8_28, %c0_29] : memref<18x32x128xbf16, #tpu.memory_space<vmem>>, vector<5x16x128xbf16>
    tpu.vector_store %arg9[%43, %c8_28, %c0_29], %41 {strides = array<i32>} : memref<18x32x128xbf16, #tpu.memory_space<vmem>>, vector<5x16x128xbf16>,
    %c3_i32 = arith.constant 3 : i32
    %45 = arith.cmpi eq, %arg1, %c3_i32 : i32
    %46 = arith.extui %45 : i1 to i32
    %c0_i32_30 = arith.constant 0 : i32
    %47 = arith.cmpi ne, %46, %c0_i32_30 : i32
    scf.if %47 {
      %cst_71 = arith.constant 0.000000e+00 : bf16
      %91 = vector.broadcast %cst_71 : bf16 to vector<1x16x128xbf16>
      %c17 = arith.constant 17 : index
      %c8_72 = arith.constant 8 : index
      %c0_73 = arith.constant 0 : index
      %92 = vector.load %arg9[%c17, %c8_72, %c0_73] : memref<18x32x128xbf16, #tpu.memory_space<vmem>>, vector<1x16x128xbf16>
      tpu.vector_store %arg9[%c17, %c8_72, %c0_73], %91 {strides = array<i32>} : memref<18x32x128xbf16, #tpu.memory_space<vmem>>, vector<1x16x128xbf16>,
    } else {
    }
    %c0_i32_31 = arith.constant 0 : i32
    %48 = arith.addi %1, %c0_i32_31 : i32
    %49 = arith.index_cast %48 : i32 to index
    %c7_32 = arith.constant 7 : index
    %c0_33 = arith.constant 0 : index
    %50 = vector.load %arg9[%49, %c7_32, %c0_33] : memref<18x32x128xbf16, #tpu.memory_space<vmem>>, vector<4x16x128xbf16>
    %c0_i32_34 = arith.constant 0 : i32
    %51 = arith.addi %1, %c0_i32_34 : i32
    %52 = arith.index_cast %51 : i32 to index
    %c8_35 = arith.constant 8 : index
    %c0_36 = arith.constant 0 : index
    %53 = vector.load %arg9[%52, %c8_35, %c0_36] : memref<18x32x128xbf16, #tpu.memory_space<vmem>>, vector<4x16x128xbf16>
    %c0_i32_37 = arith.constant 0 : i32
    %54 = arith.addi %1, %c0_i32_37 : i32
    %55 = arith.index_cast %54 : i32 to index
    %c9_38 = arith.constant 9 : index
    %c0_39 = arith.constant 0 : index
    %56 = vector.load %arg9[%55, %c9_38, %c0_39] : memref<18x32x128xbf16, #tpu.memory_space<vmem>>, vector<4x16x128xbf16>
    %c1_i32_40 = arith.constant 1 : i32
    %57 = arith.addi %1, %c1_i32_40 : i32
    %58 = arith.index_cast %57 : i32 to index
    %c7_41 = arith.constant 7 : index
    %c0_42 = arith.constant 0 : index
    %59 = vector.load %arg9[%58, %c7_41, %c0_42] : memref<18x32x128xbf16, #tpu.memory_space<vmem>>, vector<4x16x128xbf16>
    %c1_i32_43 = arith.constant 1 : i32
    %60 = arith.addi %1, %c1_i32_43 : i32
    %61 = arith.index_cast %60 : i32 to index
    %c8_44 = arith.constant 8 : index
    %c0_45 = arith.constant 0 : index
    %62 = vector.load %arg9[%61, %c8_44, %c0_45] : memref<18x32x128xbf16, #tpu.memory_space<vmem>>, vector<4x16x128xbf16>
    %c1_i32_46 = arith.constant 1 : i32
    %63 = arith.addi %1, %c1_i32_46 : i32
    %64 = arith.index_cast %63 : i32 to index
    %c9_47 = arith.constant 9 : index
    %c0_48 = arith.constant 0 : index
    %65 = vector.load %arg9[%64, %c9_47, %c0_48] : memref<18x32x128xbf16, #tpu.memory_space<vmem>>, vector<4x16x128xbf16>
    %c2_i32_49 = arith.constant 2 : i32
    %66 = arith.addi %1, %c2_i32_49 : i32
    %67 = arith.index_cast %66 : i32 to index
    %c7_50 = arith.constant 7 : index
    %c0_51 = arith.constant 0 : index
    %68 = vector.load %arg9[%67, %c7_50, %c0_51] : memref<18x32x128xbf16, #tpu.memory_space<vmem>>, vector<4x16x128xbf16>
    %c2_i32_52 = arith.constant 2 : i32
    %69 = arith.addi %1, %c2_i32_52 : i32
    %70 = arith.index_cast %69 : i32 to index
    %c8_53 = arith.constant 8 : index
    %c0_54 = arith.constant 0 : index
    %71 = vector.load %arg9[%70, %c8_53, %c0_54] : memref<18x32x128xbf16, #tpu.memory_space<vmem>>, vector<4x16x128xbf16>
    %c2_i32_55 = arith.constant 2 : i32
    %72 = arith.addi %1, %c2_i32_55 : i32
    %73 = arith.index_cast %72 : i32 to index
    %c9_56 = arith.constant 9 : index
    %c0_57 = arith.constant 0 : index
    %74 = vector.load %arg9[%73, %c9_56, %c0_57] : memref<18x32x128xbf16, #tpu.memory_space<vmem>>, vector<4x16x128xbf16>
    %75 = tpu.concatenate %50, %53, %56, %59, %62, %65, %68, %71, %74 in 2 : vector<4x16x128xbf16>, vector<4x16x128xbf16>, vector<4x16x128xbf16>, vector<4x16x128xbf16>, vector<4x16x128xbf16>, vector<4x16x128xbf16>, vector<4x16x128xbf16>, vector<4x16x128xbf16>, vector<4x16x128xbf16> -> vector<4x16x1152xbf16>
    %c0_58 = arith.constant 0 : index
    %c0_59 = arith.constant 0 : index
    %76 = vector.load %arg5[%c0_58, %c0_59] : memref<1152x128xbf16, #tpu.memory_space<vmem>>, vector<1152x128xbf16>
    "tpu.trace_start"() <{level = 10 : i32, message = "hwk,ko->hwo"}> : () -> ()
    %cst_60 = arith.constant dense<0.000000e+00> : vector<4x16x128xf32>
    %77 = tpu.matmul %75, %76, %cst_60 {dimension_numbers = #tpu.dot_dimension_numbers<[2], [0], [0, 1], [1], [0, 0, 0, 1, 1, 1], [], []>} : vector<4x16x1152xbf16>, vector<1152x128xbf16>, vector<4x16x128xf32> -> vector<4x16x128xf32>
    "tpu.trace_stop"() : () -> ()
    %c0_61 = arith.constant 0 : index
    %78 = arith.index_cast %1 : i32 to index
    %c0_62 = arith.constant 0 : index
    %c0_63 = arith.constant 0 : index
    %79 = vector.load %arg2[%c0_61, %78, %c0_62, %c0_63] : memref<1x16x16x128xf32, #tpu.memory_space<vmem>>, vector<1x4x16x128xf32>
    %80 = vector.shape_cast %79 : vector<1x4x16x128xf32> to vector<4x16x128xf32>
    %c0_64 = arith.constant 0 : index
    %c0_65 = arith.constant 0 : index
    %81 = vector.load %arg6[%c0_64, %c0_65] : memref<1x128xf32, #tpu.memory_space<vmem>>, vector<1x128xf32>
    %82 = vector.shape_cast %81 : vector<1x128xf32> to vector<1x1x128xf32>
    %83 = vector.broadcast %82 : vector<1x1x128xf32> to vector<4x16x128xf32>
    %84 = arith.addf %77, %83 : vector<4x16x128xf32>
    %85 = arith.addf %84, %80 : vector<4x16x128xf32>
    %cst_66 = arith.constant 0.000000e+00 : f32
    %86 = vector.broadcast %cst_66 : f32 to vector<4x16x128xf32>
    %87 = arith.maximumf %85, %86 : vector<4x16x128xf32>
    %c0_67 = arith.constant 0 : index
    %c0_68 = arith.constant 0 : index
    %c0_69 = arith.constant 0 : index
    %c0_70 = arith.constant 0 : index
    %88 = vector.load %arg7[%c0_67, %c0_68, %c0_69, %c0_70] : memref<1x4x16x128xf32, #tpu.memory_space<vmem>>, vector<1x4x16x128xf32>
    %89 = vector.shape_cast %88 : vector<1x4x16x128xf32> to vector<4x16x128xf32>
    %90 = vector.shape_cast %87 : vector<4x16x128xf32> to vector<1x4x16x128xf32>
    tpu.vector_store %arg7[%c0_67, %c0_68, %c0_69, %c0_70], %90 {strides = array<i32>} : memref<1x4x16x128xf32, #tpu.memory_space<vmem>>, vector<1x4x16x128xf32>,
    return
  }
  func.func @transform_0(%arg0: i32, %arg1: i32) -> (i32, i32, i32, i32) {
    %c0_i32 = arith.constant 0 : i32
    %c0_i32_0 = arith.constant 0 : i32
    %c0_i32_1 = arith.constant 0 : i32
    %c0_i32_2 = arith.constant 0 : i32
    return %arg0, %c0_i32, %c0_i32_0, %c0_i32_1 : i32, i32, i32, i32
  }
  func.func @transform_1(%arg0: i32, %arg1: i32) -> (i32, i32) {
    %c0_i32 = arith.constant 0 : i32
    %c0_i32_0 = arith.constant 0 : i32
    %c0_i32_1 = arith.constant 0 : i32
    return %c0_i32, %c0_i32_0 : i32, i32
  }
  func.func @transform_2(%arg0: i32, %arg1: i32) -> (i32, i32) {
    %c0_i32 = arith.constant 0 : i32
    %c0_i32_0 = arith.constant 0 : i32
    %c0_i32_1 = arith.constant 0 : i32
    return %c0_i32, %c0_i32_0 : i32, i32
  }
  func.func @transform_3(%arg0: i32, %arg1: i32) -> (i32, i32) {
    %c0_i32 = arith.constant 0 : i32
    %c0_i32_0 = arith.constant 0 : i32
    %c0_i32_1 = arith.constant 0 : i32
    return %c0_i32, %c0_i32_0 : i32, i32
  }
  func.func @transform_4(%arg0: i32, %arg1: i32) -> (i32, i32) {
    %c0_i32 = arith.constant 0 : i32
    %c0_i32_0 = arith.constant 0 : i32
    %c0_i32_1 = arith.constant 0 : i32
    return %c0_i32, %c0_i32_0 : i32, i32
  }
  func.func @transform_5(%arg0: i32, %arg1: i32) -> (i32, i32, i32, i32) {
    %c0_i32 = arith.constant 0 : i32
    %c0_i32_0 = arith.constant 0 : i32
    %c0_i32_1 = arith.constant 0 : i32
    return %arg0, %arg1, %c0_i32, %c0_i32_0 : i32, i32, i32, i32
  }
}

</mosaic_0001>

<llo_original>
// kernel: tpu_custom_call.1
$region0: #{tpu_custom_call.1}
  #allocation0 [shape = 'u32[]', space=smem, size = 0x4, offset = 0x4, fixed_abs, tag = 'smem constant byte address 0x4 - core index']
  #allocation1 [shape = 'u32[144,128]{1,0:T(1,128)}', space=vmem, size = 0x12000, scoped, tag = 'internal scratch']
  #allocation2 [shape = 'bf16[19,32,128]{2,1,0:T(8,128)(2,1)}', space=vmem, size = 0x26000, scoped, tag = 'scratch operand']
  #allocation3 [shape = 'bf16[18,32,128]{2,1,0:T(8,128)(2,1)}', space=vmem, size = 0x24000, scoped, tag = 'scratch operand']
  %s0 = inlined_call_operand.hbm [shape: f32[2,16,16,128], index: 0, kind: input, shape index: {}]
  %s1 = inlined_call_operand.hbm [shape: bf16[1152,128], index: 1, kind: input, shape index: {}]
  %s2 = inlined_call_operand.vmem [shape: f32[1,128], index: 2, kind: input, shape index: {}]
  %s3 = inlined_call_operand.hbm [shape: bf16[1152,128], index: 3, kind: input, shape index: {}]
  %s4 = inlined_call_operand.vmem [shape: f32[1,128], index: 4, kind: input, shape index: {}]
  %s5 = inlined_call_operand.hbm [shape: f32[2,16,16,128], index: 5, kind: output, shape index: {}]
  %s6 = sld [smem:[#allocation0]]
  $region73: #{tpu_custom_call.1} parent=0
    _
  %s8 = ssub.s32 1, %s6
  %s9 = scalar_select 0, %s8, %s6
  $region1: #{tpu_custom_call.1} parent=0
    #allocation4 [shape = 'u8[262144]{0}', space=vmem, size = 0x40000, scoped, tag = 'input window, operand 0']
    #allocation5 [shape = 's32[2]{0}', space=sflag, size = 0x8, scoped, tag = 'scoped memory for tpu_custom_call.1']
    #allocation6 [shape = 's32[2]{0}', space=sflag, size = 0x8, scoped, tag = 'scoped memory for tpu_custom_call.1']
    #allocation7 [shape = 'u8[294912]{0}', space=vmem, size = 0x48000, scoped, tag = 'input window, operand 1, single buffered']
    #allocation8 [shape = 's32[1]{0}', space=sflag, size = 0x4, scoped, tag = 'scoped memory for tpu_custom_call.1']
    #allocation9 [shape = 'u8[294912]{0}', space=vmem, size = 0x48000, scoped, tag = 'input window, operand 3, single buffered']
    #allocation10 [shape = 'u8[65536]{0}', space=vmem, size = 0x10000, scoped, tag = 'output window, operand 0']
    %10 = vsyncpa [#allocation5], 0
    %s11 = scalar_lea.sflag [#allocation5], 1
    %12 = vsyncpa %s11, 0
    %13 = vsyncpa [#allocation8], 0
    %14 = vsyncpa [#allocation6], 0
    %s15 = scalar_lea.sflag [#allocation6], 1
    %16 = vsyncpa %s15, 0
    loop: start=0, step=1, limit=10
    $region2: #{tpu_custom_call.1} parent=1 // loop_pre_header
      _
    $region3: #{tpu_custom_call.1} parent=1 // loop_header
      %s18 = sphi 0, %s22
      %p19 = scmp.ge.s32.totalorder %s18, 10
      %s25 = sphi 0, %s37
      %s26 = sphi 0, %s33
      %s27 = sphi 0, %s25
      %s28 = sphi 0, %s26
      %s29 = sphi 0, %s27
      %s30 = sphi 0, %s28
      %s40 = sphi 0, %s42
      %s43 = sphi 0, %s40
      %s44 = sphi 0, %s43
      %s60 = sphi 0, %s44
      %s64 = sphi 0, %s64
      %s66 = sphi 0, %s64
      %s67 = sphi 0, %s66
      %s81 = sphi 0, %s67
      %s85 = sphi 0, %s85
      %s87 = sphi 0, %s85
      %s88 = sphi 0, %s87
      %s102 = sphi 0, %s88
      %s106 = sphi 0, %s106
      %s108 = sphi 0, %s106
      %s109 = sphi 0, %s108
      %s123 = sphi 0, %s109
      %s127 = sphi 0, %s127
      %s129 = sphi 0, %s127
      %s130 = sphi 0, %s129
      %s144 = sphi 0, %s130
      %s152 = sphi 0, %s154
      %s155 = sphi 0, %s152
      %s156 = sphi 0, %s155
      %s172 = sphi 0, %s156
    $region4: #{tpu_custom_call.1} parent=1 // loop_header_branch
      %21 = sbr.rel (%p19) target = $region8
    $region5: #{tpu_custom_call.1} parent=1 // loop_body
      %s23 = ssub.s32 %s18, 1
      %s24 = ssub.s32 %s18, 2
      %s31 = sadd.s32 1, %s26
      %p32 = scmp.ge.s32.totalorder %s31, 4
      %s33 = scalar_select %p32, 0, %s31
      %s34 = sadd.s32 1, %s25
      %s35 = scalar_select %p32, %s34, %s25
      %p36 = scmp.ge.s32.totalorder %s35, 2
      %s37 = scalar_select %p36, 0, %s35
      %s38 = ssub.s32 %s25, %s37
      %p39 = scmp.eq.s32.totalorder %s38, 0
      %s41 = sadd.s32 %s40, 1
      %s42 = scalar_select %p39, %s40, %s41
      %p45 = pneg %p39
      %p46 = scmp.eq.s32.totalorder %s18, 7
      %p47 = por %p45, %p46
      %p48 = scmp.ne.s32.totalorder %s40, %s43
      %p49 = scmp.eq.s32.totalorder %s18, 0
      %p50 = por %p48, %p49
      %p51 = scmp.ne.s32.totalorder %s40, %s43
      %p52 = scmp.eq.s32.totalorder %s23, 7
      %p53 = por %p51, %p52
      %p54 = scmp.ne.s32.totalorder %s43, %s44
      %p55 = scmp.eq.s32.totalorder %s23, 0
      %p56 = por %p54, %p55
      %p57 = scmp.ne.s32.totalorder %s43, %s44
      %p58 = scmp.eq.s32.totalorder %s24, 7
      %p59 = por %p57, %p58
      %p61 = scmp.ne.s32.totalorder %s44, %s60
      %p62 = scmp.eq.s32.totalorder %s24, 0
      %p63 = por %p61, %p62
      %s65 = sadd.s32 %s64, 1
      %p68 = scmp.eq.s32.totalorder %s18, 7
      %p69 = scmp.ne.s32.totalorder %s64, %s66
      %p70 = scmp.eq.s32.totalorder %s18, 0
      %p71 = por %p69, %p70
      %p72 = scmp.ne.s32.totalorder %s64, %s66
      %p73 = scmp.eq.s32.totalorder %s23, 7
      %p74 = por %p72, %p73
      %p75 = scmp.ne.s32.totalorder %s66, %s67
      %p76 = scmp.eq.s32.totalorder %s23, 0
      %p77 = por %p75, %p76
      %p78 = scmp.ne.s32.totalorder %s66, %s67
      %p79 = scmp.eq.s32.totalorder %s24, 7
      %p80 = por %p78, %p79
      %p82 = scmp.ne.s32.totalorder %s67, %s81
      %p83 = scmp.eq.s32.totalorder %s24, 0
      %p84 = por %p82, %p83
      %s86 = sadd.s32 %s85, 1
      %p89 = scmp.eq.s32.totalorder %s18, 7
      %p90 = scmp.ne.s32.totalorder %s85, %s87
      %p91 = scmp.eq.s32.totalorder %s18, 0
      %p92 = por %p90, %p91
      %p93 = scmp.ne.s32.totalorder %s85, %s87
      %p94 = scmp.eq.s32.totalorder %s23, 7
      %p95 = por %p93, %p94
      %p96 = scmp.ne.s32.totalorder %s87, %s88
      %p97 = scmp.eq.s32.totalorder %s23, 0
      %p98 = por %p96, %p97
      %p99 = scmp.ne.s32.totalorder %s87, %s88
      %p100 = scmp.eq.s32.totalorder %s24, 7
      %p101 = por %p99, %p100
      %p103 = scmp.ne.s32.totalorder %s88, %s102
      %p104 = scmp.eq.s32.totalorder %s24, 0
      %p105 = por %p103, %p104
      %s107 = sadd.s32 %s106, 1
      %p110 = scmp.eq.s32.totalorder %s18, 7
      %p111 = scmp.ne.s32.totalorder %s106, %s108
      %p112 = scmp.eq.s32.totalorder %s18, 0
      %p113 = por %p111, %p112
      %p114 = scmp.ne.s32.totalorder %s106, %s108
      %p115 = scmp.eq.s32.totalorder %s23, 7
      %p116 = por %p114, %p115
      %p117 = scmp.ne.s32.totalorder %s108, %s109
      %p118 = scmp.eq.s32.totalorder %s23, 0
      %p119 = por %p117, %p118
      %p120 = scmp.ne.s32.totalorder %s108, %s109
      %p121 = scmp.eq.s32.totalorder %s24, 7
      %p122 = por %p120, %p121
      %p124 = scmp.ne.s32.totalorder %s109, %s123
      %p125 = scmp.eq.s32.totalorder %s24, 0
      %p126 = por %p124, %p125
      %s128 = sadd.s32 %s127, 1
      %p131 = scmp.eq.s32.totalorder %s18, 7
      %p132 = scmp.ne.s32.totalorder %s127, %s129
      %p133 = scmp.eq.s32.totalorder %s18, 0
      %p134 = por %p132, %p133
      %p135 = scmp.ne.s32.totalorder %s127, %s129
      %p136 = scmp.eq.s32.totalorder %s23, 7
      %p137 = por %p135, %p136
      %p138 = scmp.ne.s32.totalorder %s129, %s130
      %p139 = scmp.eq.s32.totalorder %s23, 0
      %p140 = por %p138, %p139
      %p141 = scmp.ne.s32.totalorder %s129, %s130
      %p142 = scmp.eq.s32.totalorder %s24, 7
      %p143 = por %p141, %p142
      %p145 = scmp.ne.s32.totalorder %s130, %s144
      %p146 = scmp.eq.s32.totalorder %s24, 0
      %p147 = por %p145, %p146
      %s148 = ssub.s32 %s25, %s37
      %s149 = ssub.s32 %s26, %s33
      %s150 = sor.u32 %s148, %s149
      %p151 = scmp.eq.s32.totalorder %s150, 0
      %s153 = sadd.s32 %s152, 1
      %s154 = scalar_select %p151, %s152, %s153
      %p157 = pneg %p151
      %p158 = scmp.eq.s32.totalorder %s18, 7
      %p159 = por %p157, %p158
      %p160 = scmp.ne.s32.totalorder %s152, %s155
      %p161 = scmp.eq.s32.totalorder %s18, 0
      %p162 = por %p160, %p161
      %p163 = scmp.ne.s32.totalorder %s152, %s155
      %p164 = scmp.eq.s32.totalorder %s23, 7
      %p165 = por %p163, %p164
      %p166 = scmp.ne.s32.totalorder %s155, %s156
      %p167 = scmp.eq.s32.totalorder %s23, 0
      %p168 = por %p166, %p167
      %p169 = scmp.ne.s32.totalorder %s155, %s156
      %p170 = scmp.eq.s32.totalorder %s24, 7
      %p171 = por %p169, %p170
      %p173 = scmp.ne.s32.totalorder %s156, %s172
      %p174 = scmp.eq.s32.totalorder %s24, 0
      %p175 = por %p173, %p174
      %p176 = scmp.le.s32.totalorder 1, %s18
      %p177 = scmp.lt.s32.totalorder %s18, 9
      %p178 = pnand %p176, %p177
      %p179 = pneg %p178
      // Predicated region
      $region9: #{tpu_custom_call.1} parent=5 // pred_check
        _
      $region10: #{tpu_custom_call.1} parent=5 // pred_check_branch
        %181 = sbr.rel (%p178) target = $region12
      $region11: #{tpu_custom_call.1} parent=5 // pred_region
        %s182 = ssub.s32 %s18, 1
        // Predicated region
        $region13: #{tpu_custom_call.1} parent=11 // pred_check
          %p183 = pneg %p77
        $region14: #{tpu_custom_call.1} parent=11 // pred_check_branch
          %185 = sbr.rel (%p183) target = $region16
        $region15: #{tpu_custom_call.1} parent=11 // pred_region
          %s187 = ssub.s32 9216, 9216
          %188 = vsyncadd [#allocation8], %s187
          %s189 = sshll.u32 [#allocation7], 4
          %s190 = int_to_ptr.vmem [resolvable:$true] %s189
          %195 = dma.hbm_to_vmem [thread:$0]  %s1, 9216, %s190, [#allocation8], 64, 64, 4
        $region16: #{tpu_custom_call.1} parent=11 // pred_fallthru
          _
        // Predicated region
        $region17: #{tpu_custom_call.1} parent=11 // pred_check
          %p196 = pneg %p98
        $region18: #{tpu_custom_call.1} parent=11 // pred_check_branch
          %198 = sbr.rel (%p196) target = $region20
        $region19: #{tpu_custom_call.1} parent=11 // pred_region
          _
        $region20: #{tpu_custom_call.1} parent=11 // pred_fallthru
          _
        // Predicated region
        $region21: #{tpu_custom_call.1} parent=11 // pred_check
          %p199 = pneg %p119
        $region22: #{tpu_custom_call.1} parent=11 // pred_check_branch
          %201 = sbr.rel (%p199) target = $region24
        $region23: #{tpu_custom_call.1} parent=11 // pred_region
          %s203 = ssub.s32 9216, 9216
          %204 = vsyncadd [#allocation8], %s203
          %s205 = sshll.u32 [#allocation9], 4
          %s206 = int_to_ptr.vmem [resolvable:$true] %s205
          %211 = dma.hbm_to_vmem [thread:$0]  %s3, 9216, %s206, [#allocation8], 64, 64, 4
        $region24: #{tpu_custom_call.1} parent=11 // pred_fallthru
          _
        // Predicated region
        $region25: #{tpu_custom_call.1} parent=11 // pred_check
          %p212 = pneg %p140
        $region26: #{tpu_custom_call.1} parent=11 // pred_check_branch
          %214 = sbr.rel (%p212) target = $region28
        $region27: #{tpu_custom_call.1} parent=11 // pred_region
          _
        $region28: #{tpu_custom_call.1} parent=11 // pred_fallthru
          _
      $region12: #{tpu_custom_call.1} parent=5 // pred_fallthru
        _
      %p215 = scmp.lt.s32.totalorder %s18, 8
      // Predicated region
      $region29: #{tpu_custom_call.1} parent=5 // pred_check
        %p216 = pneg %p215
      $region30: #{tpu_custom_call.1} parent=5 // pred_check_branch
        %218 = sbr.rel (%p216) target = $region32
      $region31: #{tpu_custom_call.1} parent=5 // pred_region
        // Predicated region
        $region33: #{tpu_custom_call.1} parent=31 // pred_check
          %p219 = pneg %p50
        $region34: #{tpu_custom_call.1} parent=31 // pred_check_branch
          %221 = sbr.rel (%p219) target = $region36
        $region35: #{tpu_custom_call.1} parent=31 // pred_region
          %s222 = sand.u32 %s40, 1
          %s223 = scalar_lea.sflag [#allocation5], %s222
          %s224 = sand.u32 %s40, 1
          %s225 = smul.addr %s224, 256
          %s226 = scalar_lea.vmem [#allocation4], %s225
          %s228 = ssub.s32 4096, 4096
          %229 = vsyncadd %s223, %s228
          %s230 = smul.addr %s25, 32
          %s231 = smul.addr %s230, 128
          %s232 = scalar_lea.hbm %s0, %s231
          %s233 = sshll.u32 %s226, 4
          %s234 = int_to_ptr.vmem [resolvable:$true] %s233
          %239 = dma.hbm_to_vmem [thread:$0]  %s232, 4096, %s234, %s223, 128, 128, 8
        $region36: #{tpu_custom_call.1} parent=31 // pred_fallthru
          _
      $region32: #{tpu_custom_call.1} parent=5 // pred_fallthru
        _
      %p240 = scmp.le.s32.totalorder 1, %s18
      %p241 = scmp.lt.s32.totalorder %s18, 9
      %p242 = pnand %p240, %p241
      %p243 = pneg %p242
      // Predicated region
      $region37: #{tpu_custom_call.1} parent=5 // pred_check
        _
      $region38: #{tpu_custom_call.1} parent=5 // pred_check_branch
        %245 = sbr.rel (%p242) target = $region40
      $region39: #{tpu_custom_call.1} parent=5 // pred_region
        %s246 = ssub.s32 %s18, 1
        %s247 = sand.u32 %s43, 1
        %s248 = scalar_lea.sflag [#allocation5], %s247
        %s249 = sand.u32 %s43, 1
        %s250 = smul.addr %s249, 256
        %s251 = scalar_lea.vmem [#allocation4], %s250
        // Predicated region
        $region41: #{tpu_custom_call.1} parent=39 // pred_check
          %p252 = pneg %p56
        $region42: #{tpu_custom_call.1} parent=39 // pred_check_branch
          %254 = sbr.rel (%p252) target = $region44
        $region43: #{tpu_custom_call.1} parent=39 // pred_region
          %255 = dma.done %s248, 4096
        $region44: #{tpu_custom_call.1} parent=39 // pred_fallthru
          _
        // Predicated region
        $region45: #{tpu_custom_call.1} parent=39 // pred_check
          %p256 = pneg %p77
        $region46: #{tpu_custom_call.1} parent=39 // pred_check_branch
          %258 = sbr.rel (%p256) target = $region48
        $region47: #{tpu_custom_call.1} parent=39 // pred_region
          %259 = dma.done [#allocation8], 9216
        $region48: #{tpu_custom_call.1} parent=39 // pred_fallthru
          _
        // Predicated region
        $region49: #{tpu_custom_call.1} parent=39 // pred_check
          %p260 = pneg %p119
        $region50: #{tpu_custom_call.1} parent=39 // pred_check_branch
          %262 = sbr.rel (%p260) target = $region52
        $region51: #{tpu_custom_call.1} parent=39 // pred_region
          %263 = dma.done [#allocation8], 9216
        $region52: #{tpu_custom_call.1} parent=39 // pred_fallthru
          _
        %s264 = sand.u32 %s43, 1
        %s265 = scalar_lea.sflag [#allocation5], %s264
        %s266 = sand.u32 %s43, 1
        %s267 = smul.addr %s266, 256
        %s268 = scalar_lea.vmem [#allocation4], %s267
        %p269 = pneg %p56
        %p270 = pneg %p53
        %p271 = pneg %p77
        %p272 = pneg %p74
        %p273 = pneg %p98
        %p274 = pneg %p95
        %p275 = pneg %p119
        %p276 = pneg %p116
        %p277 = pneg %p140
        %p278 = pneg %p137
        %p279 = pneg %p168
        %p280 = pneg %p165
        %s281 = sand.u32 %s155, 1
        %s282 = scalar_lea.sflag [#allocation6], %s281
        %s283 = sand.u32 %s155, 1
        %s284 = smul.addr %s283, 64
        %s285 = scalar_lea.vmem [#allocation10], %s284
        %s286 = smul.u32 4, %s28
        %s288 = smul.u32 %s28, 4
        %p289 = scmp.eq.s32.totalorder %s28, 0
        // Predicated region
        $region53: #{tpu_custom_call.1} parent=39 // pred_check
          %p290 = pneg %p289
        $region54: #{tpu_custom_call.1} parent=39 // pred_check_branch
          %292 = sbr.rel (%p290) target = $region56
        $region55: #{tpu_custom_call.1} parent=39 // pred_region
          %293 = vst [vmem:[#allocation2] sm:$0xf] 0
          %294 = vst [vmem:[#allocation2 + $0x4] sm:$0xf] 0
          %295 = vst [vmem:[#allocation2 + $0x8] sm:$0xf] 0
          %296 = vst [vmem:[#allocation2 + $0xc] sm:$0xf] 0
          %s297 = scalar_lea.vmem [#allocation2], 272
          %298 = vst [vmem:[%s297] sm:$0xf] 0
          %299 = vst [vmem:[%s297 + $0x4] sm:$0xf] 0
          %300 = vst [vmem:[%s297 + $0x8] sm:$0xf] 0
          %301 = vst [vmem:[%s297 + $0xc] sm:$0xf] 0
          %s302 = scalar_lea.vmem [#allocation2], 288
          %303 = vst [vmem:[%s302] sm:$0xf] 0
          %304 = vst [vmem:[%s302 + $0x4] sm:$0xf] 0
          %305 = vst [vmem:[%s302 + $0x8] sm:$0xf] 0
          %306 = vst [vmem:[%s302 + $0xc] sm:$0xf] 0
          %307 = vst [vmem:[#allocation3] sm:$0xf] 0
          %308 = vst [vmem:[#allocation3 + $0x4] sm:$0xf] 0
          %309 = vst [vmem:[#allocation3 + $0x8] sm:$0xf] 0
          %310 = vst [vmem:[#allocation3 + $0xc] sm:$0xf] 0
          %s311 = scalar_lea.vmem [#allocation3], 272
          %312 = vst [vmem:[%s311] sm:$0xf] 0
          %313 = vst [vmem:[%s311 + $0x4] sm:$0xf] 0
          %314 = vst [vmem:[%s311 + $0x8] sm:$0xf] 0
          %315 = vst [vmem:[%s311 + $0xc] sm:$0xf] 0
          %vm316 = vcmask 1043459
          %vm317 = vsmask.f32 7950
          %vm318 = vmand %vm316, %vm317
          %v319 = vld [vmem:[#allocation2] sm:$0x8]
          %v320 = vsel %vm318, 0, %v319
          %321 = vst [vmem:[#allocation2] sm:$0x8] %v320
          %v322 = vld [vmem:[#allocation2 + $0x10] sm:$0x8]
          %v323 = vsel %vm318, 0, %v322
          %324 = vst [vmem:[#allocation2 + $0x10] sm:$0x8] %v323
          %v325 = vld [vmem:[#allocation2 + $0x20] sm:$0x8]
          %v326 = vsel %vm318, 0, %v325
          %327 = vst [vmem:[#allocation2 + $0x20] sm:$0x8] %v326
          %v328 = vld [vmem:[#allocation2 + $0x30] sm:$0x8]
          %v329 = vsel %vm318, 0, %v328
          %330 = vst [vmem:[#allocation2 + $0x30] sm:$0x8] %v329
          %v331 = vld [vmem:[#allocation2 + $0x40] sm:$0x8]
          %v332 = vsel %vm318, 0, %v331
          %333 = vst [vmem:[#allocation2 + $0x40] sm:$0x8] %v332
          %v334 = vld [vmem:[#allocation2 + $0x50] sm:$0x8]
          %v335 = vsel %vm318, 0, %v334
          %336 = vst [vmem:[#allocation2 + $0x50] sm:$0x8] %v335
          %v337 = vld [vmem:[#allocation2 + $0x60] sm:$0x8]
          %v338 = vsel %vm318, 0, %v337
          %339 = vst [vmem:[#allocation2 + $0x60] sm:$0x8] %v338
          %v340 = vld [vmem:[#allocation2 + $0x70] sm:$0x8]
          %v341 = vsel %vm318, 0, %v340
          %342 = vst [vmem:[#allocation2 + $0x70] sm:$0x8] %v341
          %v343 = vld [vmem:[#allocation2 + $0x80] sm:$0x8]
          %v344 = vsel %vm318, 0, %v343
          %345 = vst [vmem:[#allocation2 + $0x80] sm:$0x8] %v344
          %v346 = vld [vmem:[#allocation2 + $0x90] sm:$0x8]
          %v347 = vsel %vm318, 0, %v346
          %348 = vst [vmem:[#allocation2 + $0x90] sm:$0x8] %v347
          %v349 = vld [vmem:[#allocation2 + $0xa0] sm:$0x8]
          %v350 = vsel %vm318, 0, %v349
          %351 = vst [vmem:[#allocation2 + $0xa0] sm:$0x8] %v350
          %v352 = vld [vmem:[#allocation2 + $0xb0] sm:$0x8]
          %v353 = vsel %vm318, 0, %v352
          %354 = vst [vmem:[#allocation2 + $0xb0] sm:$0x8] %v353
          %v355 = vld [vmem:[#allocation2 + $0xc0] sm:$0x8]
          %v356 = vsel %vm318, 0, %v355
          %357 = vst [vmem:[#allocation2 + $0xc0] sm:$0x8] %v356
          %v358 = vld [vmem:[#allocation2 + $0xd0] sm:$0x8]
          %v359 = vsel %vm318, 0, %v358
          %360 = vst [vmem:[#allocation2 + $0xd0] sm:$0x8] %v359
          %v361 = vld [vmem:[#allocation2 + $0xe0] sm:$0x8]
          %v362 = vsel %vm318, 0, %v361
          %363 = vst [vmem:[#allocation2 + $0xe0] sm:$0x8] %v362
          %v364 = vld [vmem:[#allocation2 + $0xf0] sm:$0x8]
          %v365 = vsel %vm318, 0, %v364
          %366 = vst [vmem:[#allocation2 + $0xf0] sm:$0x8] %v365
          %v367 = vld [vmem:[#allocation2 + $0x100] sm:$0x8]
          %v368 = vsel %vm318, 0, %v367
          %369 = vst [vmem:[#allocation2 + $0x100] sm:$0x8] %v368
          %v370 = vld [vmem:[#allocation2 + $0x110] sm:$0x8]
          %v371 = vsel %vm318, 0, %v370
          %372 = vst [vmem:[#allocation2 + $0x110] sm:$0x8] %v371
          %v373 = vld [vmem:[#allocation2 + $0x120] sm:$0x8]
          %v374 = vsel %vm318, 0, %v373
          %375 = vst [vmem:[#allocation2 + $0x120] sm:$0x8] %v374
          %vm376 = vcmask 1040384
          %vm377 = vsmask.f32 256
          %vm378 = vmand %vm376, %vm377
          %v379 = vld [vmem:[#allocation2 + $0xc] sm:$0x1]
          %v380 = vsel %vm378, 0, %v379
          %381 = vst [vmem:[#allocation2 + $0xc] sm:$0x1] %v380
          %v382 = vld [vmem:[#allocation2 + $0x1c] sm:$0x1]
          %v383 = vsel %vm378, 0, %v382
          %384 = vst [vmem:[#allocation2 + $0x1c] sm:$0x1] %v383
          %v385 = vld [vmem:[#allocation2 + $0x2c] sm:$0x1]
          %v386 = vsel %vm378, 0, %v385
          %387 = vst [vmem:[#allocation2 + $0x2c] sm:$0x1] %v386
          %v388 = vld [vmem:[#allocation2 + $0x3c] sm:$0x1]
          %v389 = vsel %vm378, 0, %v388
          %390 = vst [vmem:[#allocation2 + $0x3c] sm:$0x1] %v389
          %v391 = vld [vmem:[#allocation2 + $0x4c] sm:$0x1]
          %v392 = vsel %vm378, 0, %v391
          %393 = vst [vmem:[#allocation2 + $0x4c] sm:$0x1] %v392
          %v394 = vld [vmem:[#allocation2 + $0x5c] sm:$0x1]
          %v395 = vsel %vm378, 0, %v394
          %396 = vst [vmem:[#allocation2 + $0x5c] sm:$0x1] %v395
          %v397 = vld [vmem:[#allocation2 + $0x6c] sm:$0x1]
          %v398 = vsel %vm378, 0, %v397
          %399 = vst [vmem:[#allocation2 + $0x6c] sm:$0x1] %v398
          %v400 = vld [vmem:[#allocation2 + $0x7c] sm:$0x1]
          %v401 = vsel %vm378, 0, %v400
          %402 = vst [vmem:[#allocation2 + $0x7c] sm:$0x1] %v401
          %v403 = vld [vmem:[#allocation2 + $0x8c] sm:$0x1]
          %v404 = vsel %vm378, 0, %v403
          %405 = vst [vmem:[#allocation2 + $0x8c] sm:$0x1] %v404
          %v406 = vld [vmem:[#allocation2 + $0x9c] sm:$0x1]
          %v407 = vsel %vm378, 0, %v406
          %408 = vst [vmem:[#allocation2 + $0x9c] sm:$0x1] %v407
          %v409 = vld [vmem:[#allocation2 + $0xac] sm:$0x1]
          %v410 = vsel %vm378, 0, %v409
          %411 = vst [vmem:[#allocation2 + $0xac] sm:$0x1] %v410
          %v412 = vld [vmem:[#allocation2 + $0xbc] sm:$0x1]
          %v413 = vsel %vm378, 0, %v412
          %414 = vst [vmem:[#allocation2 + $0xbc] sm:$0x1] %v413
          %v415 = vld [vmem:[#allocation2 + $0xcc] sm:$0x1]
          %v416 = vsel %vm378, 0, %v415
          %417 = vst [vmem:[#allocation2 + $0xcc] sm:$0x1] %v416
          %v418 = vld [vmem:[#allocation2 + $0xdc] sm:$0x1]
          %v419 = vsel %vm378, 0, %v418
          %420 = vst [vmem:[#allocation2 + $0xdc] sm:$0x1] %v419
          %v421 = vld [vmem:[#allocation2 + $0xec] sm:$0x1]
          %v422 = vsel %vm378, 0, %v421
          %423 = vst [vmem:[#allocation2 + $0xec] sm:$0x1] %v422
          %v424 = vld [vmem:[#allocation2 + $0xfc] sm:$0x1]
          %v425 = vsel %vm378, 0, %v424
          %426 = vst [vmem:[#allocation2 + $0xfc] sm:$0x1] %v425
          %v427 = vld [vmem:[#allocation2 + $0x10c] sm:$0x1]
          %v428 = vsel %vm378, 0, %v427
          %429 = vst [vmem:[#allocation2 + $0x10c] sm:$0x1] %v428
          %v430 = vld [vmem:[#allocation2 + $0x11c] sm:$0x1]
          %v431 = vsel %vm378, 0, %v430
          %432 = vst [vmem:[#allocation2 + $0x11c] sm:$0x1] %v431
          %v433 = vld [vmem:[#allocation2 + $0x12c] sm:$0x1]
          %v434 = vsel %vm378, 0, %v433
          %435 = vst [vmem:[#allocation2 + $0x12c] sm:$0x1] %v434
          %v436 = vld [vmem:[#allocation3] sm:$0x8]
          %v437 = vsel %vm318, 0, %v436
          %438 = vst [vmem:[#allocation3] sm:$0x8] %v437
          %v439 = vld [vmem:[#allocation3 + $0x10] sm:$0x8]
          %v440 = vsel %vm318, 0, %v439
          %441 = vst [vmem:[#allocation3 + $0x10] sm:$0x8] %v440
          %v442 = vld [vmem:[#allocation3 + $0x20] sm:$0x8]
          %v443 = vsel %vm318, 0, %v442
          %444 = vst [vmem:[#allocation3 + $0x20] sm:$0x8] %v443
          %v445 = vld [vmem:[#allocation3 + $0x30] sm:$0x8]
          %v446 = vsel %vm318, 0, %v445
          %447 = vst [vmem:[#allocation3 + $0x30] sm:$0x8] %v446
          %v448 = vld [vmem:[#allocation3 + $0x40] sm:$0x8]
          %v449 = vsel %vm318, 0, %v448
          %450 = vst [vmem:[#allocation3 + $0x40] sm:$0x8] %v449
          %v451 = vld [vmem:[#allocation3 + $0x50] sm:$0x8]
          %v452 = vsel %vm318, 0, %v451
          %453 = vst [vmem:[#allocation3 + $0x50] sm:$0x8] %v452
          %v454 = vld [vmem:[#allocation3 + $0x60] sm:$0x8]
          %v455 = vsel %vm318, 0, %v454
          %456 = vst [vmem:[#allocation3 + $0x60] sm:$0x8] %v455
          %v457 = vld [vmem:[#allocation3 + $0x70] sm:$0x8]
          %v458 = vsel %vm318, 0, %v457
          %459 = vst [vmem:[#allocation3 + $0x70] sm:$0x8] %v458
          %v460 = vld [vmem:[#allocation3 + $0x80] sm:$0x8]
          %v461 = vsel %vm318, 0, %v460
          %462 = vst [vmem:[#allocation3 + $0x80] sm:$0x8] %v461
          %v463 = vld [vmem:[#allocation3 + $0x90] sm:$0x8]
          %v464 = vsel %vm318, 0, %v463
          %465 = vst [vmem:[#allocation3 + $0x90] sm:$0x8] %v464
          %v466 = vld [vmem:[#allocation3 + $0xa0] sm:$0x8]
          %v467 = vsel %vm318, 0, %v466
          %468 = vst [vmem:[#allocation3 + $0xa0] sm:$0x8] %v467
          %v469 = vld [vmem:[#allocation3 + $0xb0] sm:$0x8]
          %v470 = vsel %vm318, 0, %v469
          %471 = vst [vmem:[#allocation3 + $0xb0] sm:$0x8] %v470
          %v472 = vld [vmem:[#allocation3 + $0xc0] sm:$0x8]
          %v473 = vsel %vm318, 0, %v472
          %474 = vst [vmem:[#allocation3 + $0xc0] sm:$0x8] %v473
          %v475 = vld [vmem:[#allocation3 + $0xd0] sm:$0x8]
          %v476 = vsel %vm318, 0, %v475
          %477 = vst [vmem:[#allocation3 + $0xd0] sm:$0x8] %v476
          %v478 = vld [vmem:[#allocation3 + $0xe0] sm:$0x8]
          %v479 = vsel %vm318, 0, %v478
          %480 = vst [vmem:[#allocation3 + $0xe0] sm:$0x8] %v479
          %v481 = vld [vmem:[#allocation3 + $0xf0] sm:$0x8]
          %v482 = vsel %vm318, 0, %v481
          %483 = vst [vmem:[#allocation3 + $0xf0] sm:$0x8] %v482
          %v484 = vld [vmem:[#allocation3 + $0x100] sm:$0x8]
          %v485 = vsel %vm318, 0, %v484
          %486 = vst [vmem:[#allocation3 + $0x100] sm:$0x8] %v485
          %v487 = vld [vmem:[#allocation3 + $0x110] sm:$0x8]
          %v488 = vsel %vm318, 0, %v487
          %489 = vst [vmem:[#allocation3 + $0x110] sm:$0x8] %v488
          %v490 = vld [vmem:[#allocation3 + $0xc] sm:$0x1]
          %v491 = vsel %vm378, 0, %v490
          %492 = vst [vmem:[#allocation3 + $0xc] sm:$0x1] %v491
          %v493 = vld [vmem:[#allocation3 + $0x1c] sm:$0x1]
          %v494 = vsel %vm378, 0, %v493
          %495 = vst [vmem:[#allocation3 + $0x1c] sm:$0x1] %v494
          %v496 = vld [vmem:[#allocation3 + $0x2c] sm:$0x1]
          %v497 = vsel %vm378, 0, %v496
          %498 = vst [vmem:[#allocation3 + $0x2c] sm:$0x1] %v497
          %v499 = vld [vmem:[#allocation3 + $0x3c] sm:$0x1]
          %v500 = vsel %vm378, 0, %v499
          %501 = vst [vmem:[#allocation3 + $0x3c] sm:$0x1] %v500
          %v502 = vld [vmem:[#allocation3 + $0x4c] sm:$0x1]
          %v503 = vsel %vm378, 0, %v502
          %504 = vst [vmem:[#allocation3 + $0x4c] sm:$0x1] %v503
          %v505 = vld [vmem:[#allocation3 + $0x5c] sm:$0x1]
          %v506 = vsel %vm378, 0, %v505
          %507 = vst [vmem:[#allocation3 + $0x5c] sm:$0x1] %v506
          %v508 = vld [vmem:[#allocation3 + $0x6c] sm:$0x1]
          %v509 = vsel %vm378, 0, %v508
          %510 = vst [vmem:[#allocation3 + $0x6c] sm:$0x1] %v509
          %v511 = vld [vmem:[#allocation3 + $0x7c] sm:$0x1]
          %v512 = vsel %vm378, 0, %v511
          %513 = vst [vmem:[#allocation3 + $0x7c] sm:$0x1] %v512
          %v514 = vld [vmem:[#allocation3 + $0x8c] sm:$0x1]
          %v515 = vsel %vm378, 0, %v514
          %516 = vst [vmem:[#allocation3 + $0x8c] sm:$0x1] %v515
          %v517 = vld [vmem:[#allocation3 + $0x9c] sm:$0x1]
          %v518 = vsel %vm378, 0, %v517
          %519 = vst [vmem:[#allocation3 + $0x9c] sm:$0x1] %v518
          %v520 = vld [vmem:[#allocation3 + $0xac] sm:$0x1]
          %v521 = vsel %vm378, 0, %v520
          %522 = vst [vmem:[#allocation3 + $0xac] sm:$0x1] %v521
          %v523 = vld [vmem:[#allocation3 + $0xbc] sm:$0x1]
          %v524 = vsel %vm378, 0, %v523
          %525 = vst [vmem:[#allocation3 + $0xbc] sm:$0x1] %v524
          %v526 = vld [vmem:[#allocation3 + $0xcc] sm:$0x1]
          %v527 = vsel %vm378, 0, %v526
          %528 = vst [vmem:[#allocation3 + $0xcc] sm:$0x1] %v527
          %v529 = vld [vmem:[#allocation3 + $0xdc] sm:$0x1]
          %v530 = vsel %vm378, 0, %v529
          %531 = vst [vmem:[#allocation3 + $0xdc] sm:$0x1] %v530
          %v532 = vld [vmem:[#allocation3 + $0xec] sm:$0x1]
          %v533 = vsel %vm378, 0, %v532
          %534 = vst [vmem:[#allocation3 + $0xec] sm:$0x1] %v533
          %v535 = vld [vmem:[#allocation3 + $0xfc] sm:$0x1]
          %v536 = vsel %vm378, 0, %v535
          %537 = vst [vmem:[#allocation3 + $0xfc] sm:$0x1] %v536
          %v538 = vld [vmem:[#allocation3 + $0x10c] sm:$0x1]
          %v539 = vsel %vm378, 0, %v538
          %540 = vst [vmem:[#allocation3 + $0x10c] sm:$0x1] %v539
          %v541 = vld [vmem:[#allocation3 + $0x11c] sm:$0x1]
          %v542 = vsel %vm378, 0, %v541
          %543 = vst [vmem:[#allocation3 + $0x11c] sm:$0x1] %v542
          %v544 = vld [vmem:[%s251] sm:$0xff]
          %v545 = vld [vmem:[%s251 + $0x8] sm:$0xff]
          %v546 = vld [vmem:[%s251 + $0x10] sm:$0xff]
          %v547 = vld [vmem:[%s251 + $0x18] sm:$0xff]
          %v548 = vld [vmem:[%s251 + $0x20] sm:$0xff]
          %v549 = vld [vmem:[%s251 + $0x28] sm:$0xff]
          %v550 = vld [vmem:[%s251 + $0x30] sm:$0xff]
          %v551 = vld [vmem:[%s251 + $0x38] sm:$0xff]
          %v552 = vld [vmem:[%s251 + $0x40] sm:$0xff]
          %v553 = vld [vmem:[%s251 + $0x48] sm:$0xff]
          %v554 = vld [vmem:[%s251 + $0x50] sm:$0xff]
          %v555 = vld [vmem:[%s251 + $0x58] sm:$0xff]
          %v556 = vld [vmem:[%s251 + $0x60] sm:$0xff]
          %v557 = vld [vmem:[%s251 + $0x68] sm:$0xff]
          %v558 = vld [vmem:[%s251 + $0x70] sm:$0xff]
          %v559 = vld [vmem:[%s251 + $0x78] sm:$0xff]
          %v560 = vld [vmem:[%s251 + $0x80] sm:$0xff]
          %v561 = vld [vmem:[%s251 + $0x88] sm:$0xff]
          %v562 = vld [vmem:[%s251 + $0x90] sm:$0xff]
          %v563 = vld [vmem:[%s251 + $0x98] sm:$0xff]
          %v564 = vld [vmem:[%s251 + $0xa0] sm:$0xff]
          %v565 = vld [vmem:[%s251 + $0xa8] sm:$0xff]
          %v566 = vld [vmem:[%s251 + $0xb0] sm:$0xff]
          %v567 = vld [vmem:[%s251 + $0xb8] sm:$0xff]
          %v568 = vld [vmem:[%s251 + $0xc0] sm:$0xff]
          %v569 = vld [vmem:[%s251 + $0xc8] sm:$0xff]
          %v570 = vld [vmem:[%s251 + $0xd0] sm:$0xff]
          %v571 = vld [vmem:[%s251 + $0xd8] sm:$0xff]
          %v572 = vld [vmem:[%s251 + $0xe0] sm:$0xff]
          %v573 = vld [vmem:[%s251 + $0xe8] sm:$0xff]
          %v574 = vld [vmem:[%s251 + $0xf0] sm:$0xff]
          %v575 = vld [vmem:[%s251 + $0xf8] sm:$0xff]
          %v576 = vpack.c.bf16 %v545, %v544
          %v577 = vpack.c.bf16 %v547, %v546
          %v578 = vpack.c.bf16 %v549, %v548
          %v579 = vpack.c.bf16 %v551, %v550
          %v580 = vpack.c.bf16 %v553, %v552
          %v581 = vpack.c.bf16 %v555, %v554
          %v582 = vpack.c.bf16 %v557, %v556
          %v583 = vpack.c.bf16 %v559, %v558
          %v584 = vpack.c.bf16 %v561, %v560
          %v585 = vpack.c.bf16 %v563, %v562
          %v586 = vpack.c.bf16 %v565, %v564
          %v587 = vpack.c.bf16 %v567, %v566
          %v588 = vpack.c.bf16 %v569, %v568
          %v589 = vpack.c.bf16 %v571, %v570
          %v590 = vpack.c.bf16 %v573, %v572
          %v591 = vpack.c.bf16 %v575, %v574
          %v608 = vunpack.c.l.b16 %v576
          %v609 = vunpack.c.h.b16 %v576
          %v610 = vunpack.c.l.b16 %v577
          %v611 = vunpack.c.h.b16 %v577
          %v612 = vunpack.c.l.b16 %v578
          %v613 = vunpack.c.h.b16 %v578
          %v614 = vunpack.c.l.b16 %v579
          %v615 = vunpack.c.h.b16 %v579
          %v616 = vunpack.c.l.b16 %v580
          %v617 = vunpack.c.h.b16 %v580
          %v618 = vunpack.c.l.b16 %v581
          %v619 = vunpack.c.h.b16 %v581
          %v620 = vunpack.c.l.b16 %v582
          %v621 = vunpack.c.h.b16 %v582
          %v622 = vunpack.c.l.b16 %v583
          %v623 = vunpack.c.h.b16 %v583
          %v624 = vunpack.c.l.b16 %v584
          %v625 = vunpack.c.h.b16 %v584
          %v626 = vunpack.c.l.b16 %v585
          %v627 = vunpack.c.h.b16 %v585
          %v628 = vunpack.c.l.b16 %v586
          %v629 = vunpack.c.h.b16 %v586
          %v630 = vunpack.c.l.b16 %v587
          %v631 = vunpack.c.h.b16 %v587
          %v632 = vunpack.c.l.b16 %v588
          %v633 = vunpack.c.h.b16 %v588
          %v634 = vunpack.c.l.b16 %v589
          %v635 = vunpack.c.h.b16 %v589
          %v636 = vunpack.c.l.b16 %v590
          %v637 = vunpack.c.h.b16 %v590
          %v638 = vunpack.c.l.b16 %v591
          %v639 = vunpack.c.h.b16 %v591
          %v640 = vpack.c.b16 %v608, %v608
          %v641 = vpack.c.b16 %v609, %v609
          %v642 = vpack.c.b16 %v610, %v610
          %v643 = vpack.c.b16 %v611, %v611
          %v644 = vpack.c.b16 %v612, %v612
          %v645 = vpack.c.b16 %v613, %v613
          %v646 = vpack.c.b16 %v614, %v614
          %v647 = vpack.c.b16 %v615, %v615
          %v648 = vpack.c.b16 %v616, %v616
          %v649 = vpack.c.b16 %v617, %v617
          %v650 = vpack.c.b16 %v618, %v618
          %v651 = vpack.c.b16 %v619, %v619
          %v652 = vpack.c.b16 %v620, %v620
          %v653 = vpack.c.b16 %v621, %v621
          %v654 = vpack.c.b16 %v622, %v622
          %v655 = vpack.c.b16 %v623, %v623
          %v656 = vpack.c.b16 %v624, %v624
          %v657 = vpack.c.b16 %v625, %v625
          %v658 = vpack.c.b16 %v626, %v626
          %v659 = vpack.c.b16 %v627, %v627
          %v660 = vpack.c.b16 %v628, %v628
          %v661 = vpack.c.b16 %v629, %v629
          %v662 = vpack.c.b16 %v630, %v630
          %v663 = vpack.c.b16 %v631, %v631
          %v664 = vpack.c.b16 %v632, %v632
          %v665 = vpack.c.b16 %v633, %v633
          %v666 = vpack.c.b16 %v634, %v634
          %v667 = vpack.c.b16 %v635, %v635
          %v668 = vpack.c.b16 %v636, %v636
          %v669 = vpack.c.b16 %v637, %v637
          %v670 = vpack.c.b16 %v638, %v638
          %v671 = vpack.c.b16 %v639, %v639
          %s704 = scalar_lea.vmem [#allocation2], 16
          %705 = vst [vmem:[%s704 + $0x4] sm:$0xf] %v640
          %706 = vst [vmem:[%s704 + $0x8] sm:$0xf] %v641
          %707 = vst [vmem:[%s704 + $0x14] sm:$0xf] %v642
          %708 = vst [vmem:[%s704 + $0x18] sm:$0xf] %v643
          %709 = vst [vmem:[%s704 + $0x24] sm:$0xf] %v644
          %710 = vst [vmem:[%s704 + $0x28] sm:$0xf] %v645
          %711 = vst [vmem:[%s704 + $0x34] sm:$0xf] %v646
          %712 = vst [vmem:[%s704 + $0x38] sm:$0xf] %v647
          %713 = vst [vmem:[%s704 + $0x44] sm:$0xf] %v648
          %714 = vst [vmem:[%s704 + $0x48] sm:$0xf] %v649
          %715 = vst [vmem:[%s704 + $0x54] sm:$0xf] %v650
          %716 = vst [vmem:[%s704 + $0x58] sm:$0xf] %v651
          %717 = vst [vmem:[%s704 + $0x64] sm:$0xf] %v652
          %718 = vst [vmem:[%s704 + $0x68] sm:$0xf] %v653
          %719 = vst [vmem:[%s704 + $0x74] sm:$0xf] %v654
          %720 = vst [vmem:[%s704 + $0x78] sm:$0xf] %v655
          %721 = vst [vmem:[%s704 + $0x84] sm:$0xf] %v656
          %722 = vst [vmem:[%s704 + $0x88] sm:$0xf] %v657
          %723 = vst [vmem:[%s704 + $0x94] sm:$0xf] %v658
          %724 = vst [vmem:[%s704 + $0x98] sm:$0xf] %v659
          %725 = vst [vmem:[%s704 + $0xa4] sm:$0xf] %v660
          %726 = vst [vmem:[%s704 + $0xa8] sm:$0xf] %v661
          %727 = vst [vmem:[%s704 + $0xb4] sm:$0xf] %v662
          %728 = vst [vmem:[%s704 + $0xb8] sm:$0xf] %v663
          %729 = vst [vmem:[%s704 + $0xc4] sm:$0xf] %v664
          %730 = vst [vmem:[%s704 + $0xc8] sm:$0xf] %v665
          %731 = vst [vmem:[%s704 + $0xd4] sm:$0xf] %v666
          %732 = vst [vmem:[%s704 + $0xd8] sm:$0xf] %v667
          %733 = vst [vmem:[%s704 + $0xe4] sm:$0xf] %v668
          %734 = vst [vmem:[%s704 + $0xe8] sm:$0xf] %v669
          %735 = vst [vmem:[%s704 + $0xf4] sm:$0xf] %v670
          %736 = vst [vmem:[%s704 + $0xf8] sm:$0xf] %v671
        $region56: #{tpu_custom_call.1} parent=39 // pred_fallthru
          _
        %s737 = smul.u32 %s288, 4
        %s738 = smul.addr %s737, 4
        %s739 = scalar_lea.vmem [#allocation2], %s738
        %v740 = vld [vmem:[%s739] sm:$0x8]
        %v741 = vld [vmem:[%s739 + $0x4] sm:$0xf]
        %v742 = vld [vmem:[%s739 + $0x8] sm:$0xf]
        %v743 = vld [vmem:[%s739 + $0x10] sm:$0x8]
        %v744 = vld [vmem:[%s739 + $0x14] sm:$0xf]
        %v745 = vld [vmem:[%s739 + $0x18] sm:$0xf]
        %v746 = vld [vmem:[%s739 + $0x20] sm:$0x8]
        %v747 = vld [vmem:[%s739 + $0x24] sm:$0xf]
        %v748 = vld [vmem:[%s739 + $0x28] sm:$0xf]
        %v749 = vld [vmem:[%s739 + $0x30] sm:$0x8]
        %v750 = vld [vmem:[%s739 + $0x34] sm:$0xf]
        %v751 = vld [vmem:[%s739 + $0x38] sm:$0xf]
        %v752 = vld [vmem:[%s739 + $0x40] sm:$0x8]
        %v753 = vld [vmem:[%s739 + $0x44] sm:$0xf]
        %v754 = vld [vmem:[%s739 + $0x48] sm:$0xf]
        %v755 = vld [vmem:[%s739 + $0xc] sm:$0x1]
        %v756 = vld [vmem:[%s739 + $0x1c] sm:$0x1]
        %v757 = vld [vmem:[%s739 + $0x2c] sm:$0x1]
        %v758 = vld [vmem:[%s739 + $0x3c] sm:$0x1]
        %v759 = vld [vmem:[%s739 + $0x4c] sm:$0x1]
        %s760 = sadd.s32 %s288, 1
        %s761 = smul.u32 %s760, 4
        %s762 = smul.addr %s761, 4
        %s763 = scalar_lea.vmem [#allocation2], %s762
        %v764 = vld [vmem:[%s763] sm:$0x8]
        %v765 = vld [vmem:[%s763 + $0x4] sm:$0xf]
        %v766 = vld [vmem:[%s763 + $0x8] sm:$0xf]
        %v767 = vld [vmem:[%s763 + $0x10] sm:$0x8]
        %v768 = vld [vmem:[%s763 + $0x14] sm:$0xf]
        %v769 = vld [vmem:[%s763 + $0x18] sm:$0xf]
        %v770 = vld [vmem:[%s763 + $0x20] sm:$0x8]
        %v771 = vld [vmem:[%s763 + $0x24] sm:$0xf]
        %v772 = vld [vmem:[%s763 + $0x28] sm:$0xf]
        %v773 = vld [vmem:[%s763 + $0x30] sm:$0x8]
        %v774 = vld [vmem:[%s763 + $0x34] sm:$0xf]
        %v775 = vld [vmem:[%s763 + $0x38] sm:$0xf]
        %v776 = vld [vmem:[%s763 + $0x40] sm:$0x8]
        %v777 = vld [vmem:[%s763 + $0x44] sm:$0xf]
        %v778 = vld [vmem:[%s763 + $0x48] sm:$0xf]
        %v779 = vld [vmem:[%s763 + $0xc] sm:$0x1]
        %v780 = vld [vmem:[%s763 + $0x1c] sm:$0x1]
        %v781 = vld [vmem:[%s763 + $0x2c] sm:$0x1]
        %v782 = vld [vmem:[%s763 + $0x3c] sm:$0x1]
        %v783 = vld [vmem:[%s763 + $0x4c] sm:$0x1]
        %s784 = sadd.s32 %s288, 2
        %s785 = smul.u32 %s784, 4
        %s786 = smul.addr %s785, 4
        %s787 = scalar_lea.vmem [#allocation2], %s786
        %v788 = vld [vmem:[%s787] sm:$0x8]
        %v789 = vld [vmem:[%s787 + $0x4] sm:$0xf]
        %v790 = vld [vmem:[%s787 + $0x8] sm:$0xf]
        %v791 = vld [vmem:[%s787 + $0x10] sm:$0x8]
        %v792 = vld [vmem:[%s787 + $0x14] sm:$0xf]
        %v793 = vld [vmem:[%s787 + $0x18] sm:$0xf]
        %v794 = vld [vmem:[%s787 + $0x20] sm:$0x8]
        %v795 = vld [vmem:[%s787 + $0x24] sm:$0xf]
        %v796 = vld [vmem:[%s787 + $0x28] sm:$0xf]
        %v797 = vld [vmem:[%s787 + $0x30] sm:$0x8]
        %v798 = vld [vmem:[%s787 + $0x34] sm:$0xf]
        %v799 = vld [vmem:[%s787 + $0x38] sm:$0xf]
        %v800 = vld [vmem:[%s787 + $0x40] sm:$0x8]
        %v801 = vld [vmem:[%s787 + $0x44] sm:$0xf]
        %v802 = vld [vmem:[%s787 + $0x48] sm:$0xf]
        %v803 = vld [vmem:[%s787 + $0xc] sm:$0x1]
        %v804 = vld [vmem:[%s787 + $0x1c] sm:$0x1]
        %v805 = vld [vmem:[%s787 + $0x2c] sm:$0x1]
        %v806 = vld [vmem:[%s787 + $0x3c] sm:$0x1]
        %v807 = vld [vmem:[%s787 + $0x4c] sm:$0x1]
        %v823 = vunpack.c.l.b16 %v740
        %v824 = vunpack.c.l.b16 %v741
        %v825 = vunpack.c.l.b16 %v742
        %v826 = vunpack.c.l.b16 %v743
        %v827 = vunpack.c.l.b16 %v744
        %v828 = vunpack.c.l.b16 %v745
        %v829 = vunpack.c.l.b16 %v746
        %v830 = vunpack.c.l.b16 %v747
        %v831 = vunpack.c.l.b16 %v748
        %v832 = vunpack.c.l.b16 %v749
        %v833 = vunpack.c.l.b16 %v750
        %v834 = vunpack.c.l.b16 %v751
        %v835 = vunpack.c.l.b16 %v752
        %v836 = vunpack.c.l.b16 %v753
        %v837 = vunpack.c.l.b16 %v754
        %v838 = vpack.c.b16 %v824, %v823
        %v839 = vpack.c.b16 %v825, %v825
        %v840 = vpack.c.b16 %v827, %v826
        %v841 = vpack.c.b16 %v828, %v828
        %v842 = vpack.c.b16 %v830, %v829
        %v843 = vpack.c.b16 %v831, %v831
        %v844 = vpack.c.b16 %v833, %v832
        %v845 = vpack.c.b16 %v834, %v834
        %v846 = vpack.c.b16 %v836, %v835
        %v847 = vpack.c.b16 %v837, %v837
        %v848 = vpack.c.b16 %v825, %v824
        %v849 = vpack.c.b16 %v828, %v827
        %v850 = vpack.c.b16 %v831, %v830
        %v851 = vpack.c.b16 %v834, %v833
        %v852 = vpack.c.b16 %v837, %v836
        %v854 = vshrl.u32 %v848, 16
        %v856 = vrot.slane %v854, 4
        %v857 = vshll.u32 %v848, 16
        %v859 = vrot.slane %v857, 5
        %v860 = vor.u32 %v856, %v859
        %v862 = vshrl.u32 %v849, 16
        %v864 = vrot.slane %v862, 4
        %v865 = vshll.u32 %v849, 16
        %v867 = vrot.slane %v865, 5
        %v868 = vor.u32 %v864, %v867
        %v870 = vshrl.u32 %v850, 16
        %v872 = vrot.slane %v870, 4
        %v873 = vshll.u32 %v850, 16
        %v875 = vrot.slane %v873, 5
        %v876 = vor.u32 %v872, %v875
        %v878 = vshrl.u32 %v851, 16
        %v880 = vrot.slane %v878, 4
        %v881 = vshll.u32 %v851, 16
        %v883 = vrot.slane %v881, 5
        %v884 = vor.u32 %v880, %v883
        %v886 = vshrl.u32 %v852, 16
        %v888 = vrot.slane %v886, 4
        %v889 = vshll.u32 %v852, 16
        %v891 = vrot.slane %v889, 5
        %v892 = vor.u32 %v888, %v891
        %v898 = vunpack.c.l.b16 %v755
        %v899 = vunpack.c.l.b16 %v756
        %v900 = vunpack.c.l.b16 %v757
        %v901 = vunpack.c.l.b16 %v758
        %v902 = vunpack.c.l.b16 %v759
        %v903 = vpack.c.b16 %v898, %v898
        %v904 = vpack.c.b16 %v899, %v899
        %v905 = vpack.c.b16 %v900, %v900
        %v906 = vpack.c.b16 %v901, %v901
        %v907 = vpack.c.b16 %v902, %v902
        %vm908 = vcmask 1042432
        %v909 = vrot.slane %v848, 5
        %v910 = vrot.slane %v903, 5
        %v911 = vsel %vm908, %v909, %v910
        %v912 = vrot.slane %v849, 5
        %v913 = vrot.slane %v904, 5
        %v914 = vsel %vm908, %v912, %v913
        %v915 = vrot.slane %v850, 5
        %v916 = vrot.slane %v905, 5
        %v917 = vsel %vm908, %v915, %v916
        %v918 = vrot.slane %v851, 5
        %v919 = vrot.slane %v906, 5
        %v920 = vsel %vm908, %v918, %v919
        %v921 = vrot.slane %v852, 5
        %v922 = vrot.slane %v907, 5
        %v923 = vsel %vm908, %v921, %v922
        %v939 = vunpack.c.l.b16 %v764
        %v940 = vunpack.c.l.b16 %v765
        %v941 = vunpack.c.l.b16 %v766
        %v942 = vunpack.c.l.b16 %v767
        %v943 = vunpack.c.l.b16 %v768
        %v944 = vunpack.c.l.b16 %v769
        %v945 = vunpack.c.l.b16 %v770
        %v946 = vunpack.c.l.b16 %v771
        %v947 = vunpack.c.l.b16 %v772
        %v948 = vunpack.c.l.b16 %v773
        %v949 = vunpack.c.l.b16 %v774
        %v950 = vunpack.c.l.b16 %v775
        %v951 = vunpack.c.l.b16 %v776
        %v952 = vunpack.c.l.b16 %v777
        %v953 = vunpack.c.l.b16 %v778
        %v954 = vpack.c.b16 %v940, %v939
        %v955 = vpack.c.b16 %v941, %v941
        %v956 = vpack.c.b16 %v943, %v942
        %v957 = vpack.c.b16 %v944, %v944
        %v958 = vpack.c.b16 %v946, %v945
        %v959 = vpack.c.b16 %v947, %v947
        %v960 = vpack.c.b16 %v949, %v948
        %v961 = vpack.c.b16 %v950, %v950
        %v962 = vpack.c.b16 %v952, %v951
        %v963 = vpack.c.b16 %v953, %v953
        %v964 = vpack.c.b16 %v941, %v940
        %v965 = vpack.c.b16 %v944, %v943
        %v966 = vpack.c.b16 %v947, %v946
        %v967 = vpack.c.b16 %v950, %v949
        %v968 = vpack.c.b16 %v953, %v952
        %v970 = vshrl.u32 %v964, 16
        %v972 = vrot.slane %v970, 4
        %v973 = vshll.u32 %v964, 16
        %v975 = vrot.slane %v973, 5
        %v976 = vor.u32 %v972, %v975
        %v978 = vshrl.u32 %v965, 16
        %v980 = vrot.slane %v978, 4
        %v981 = vshll.u32 %v965, 16
        %v983 = vrot.slane %v981, 5
        %v984 = vor.u32 %v980, %v983
        %v986 = vshrl.u32 %v966, 16
        %v988 = vrot.slane %v986, 4
        %v989 = vshll.u32 %v966, 16
        %v991 = vrot.slane %v989, 5
        %v992 = vor.u32 %v988, %v991
        %v994 = vshrl.u32 %v967, 16
        %v996 = vrot.slane %v994, 4
        %v997 = vshll.u32 %v967, 16
        %v999 = vrot.slane %v997, 5
        %v1000 = vor.u32 %v996, %v999
        %v1002 = vshrl.u32 %v968, 16
        %v1004 = vrot.slane %v1002, 4
        %v1005 = vshll.u32 %v968, 16
        %v1007 = vrot.slane %v1005, 5
        %v1008 = vor.u32 %v1004, %v1007
        %v1014 = vunpack.c.l.b16 %v779
        %v1015 = vunpack.c.l.b16 %v780
        %v1016 = vunpack.c.l.b16 %v781
        %v1017 = vunpack.c.l.b16 %v782
        %v1018 = vunpack.c.l.b16 %v783
        %v1019 = vpack.c.b16 %v1014, %v1014
        %v1020 = vpack.c.b16 %v1015, %v1015
        %v1021 = vpack.c.b16 %v1016, %v1016
        %v1022 = vpack.c.b16 %v1017, %v1017
        %v1023 = vpack.c.b16 %v1018, %v1018
        %v1024 = vrot.slane %v964, 5
        %v1025 = vrot.slane %v1019, 5
        %v1026 = vsel %vm908, %v1024, %v1025
        %v1027 = vrot.slane %v965, 5
        %v1028 = vrot.slane %v1020, 5
        %v1029 = vsel %vm908, %v1027, %v1028
        %v1030 = vrot.slane %v966, 5
        %v1031 = vrot.slane %v1021, 5
        %v1032 = vsel %vm908, %v1030, %v1031
        %v1033 = vrot.slane %v967, 5
        %v1034 = vrot.slane %v1022, 5
        %v1035 = vsel %vm908, %v1033, %v1034
        %v1036 = vrot.slane %v968, 5
        %v1037 = vrot.slane %v1023, 5
        %v1038 = vsel %vm908, %v1036, %v1037
        %v1054 = vunpack.c.l.b16 %v788
        %v1055 = vunpack.c.l.b16 %v789
        %v1056 = vunpack.c.l.b16 %v790
        %v1057 = vunpack.c.l.b16 %v791
        %v1058 = vunpack.c.l.b16 %v792
        %v1059 = vunpack.c.l.b16 %v793
        %v1060 = vunpack.c.l.b16 %v794
        %v1061 = vunpack.c.l.b16 %v795
        %v1062 = vunpack.c.l.b16 %v796
        %v1063 = vunpack.c.l.b16 %v797
        %v1064 = vunpack.c.l.b16 %v798
        %v1065 = vunpack.c.l.b16 %v799
        %v1066 = vunpack.c.l.b16 %v800
        %v1067 = vunpack.c.l.b16 %v801
        %v1068 = vunpack.c.l.b16 %v802
        %v1069 = vpack.c.b16 %v1055, %v1054
        %v1070 = vpack.c.b16 %v1056, %v1056
        %v1071 = vpack.c.b16 %v1058, %v1057
        %v1072 = vpack.c.b16 %v1059, %v1059
        %v1073 = vpack.c.b16 %v1061, %v1060
        %v1074 = vpack.c.b16 %v1062, %v1062
        %v1075 = vpack.c.b16 %v1064, %v1063
        %v1076 = vpack.c.b16 %v1065, %v1065
        %v1077 = vpack.c.b16 %v1067, %v1066
        %v1078 = vpack.c.b16 %v1068, %v1068
        %v1079 = vpack.c.b16 %v1056, %v1055
        %v1080 = vpack.c.b16 %v1059, %v1058
        %v1081 = vpack.c.b16 %v1062, %v1061
        %v1082 = vpack.c.b16 %v1065, %v1064
        %v1083 = vpack.c.b16 %v1068, %v1067
        %v1085 = vshrl.u32 %v1079, 16
        %v1087 = vrot.slane %v1085, 4
        %v1088 = vshll.u32 %v1079, 16
        %v1090 = vrot.slane %v1088, 5
        %v1091 = vor.u32 %v1087, %v1090
        %v1093 = vshrl.u32 %v1080, 16
        %v1095 = vrot.slane %v1093, 4
        %v1096 = vshll.u32 %v1080, 16
        %v1098 = vrot.slane %v1096, 5
        %v1099 = vor.u32 %v1095, %v1098
        %v1101 = vshrl.u32 %v1081, 16
        %v1103 = vrot.slane %v1101, 4
        %v1104 = vshll.u32 %v1081, 16
        %v1106 = vrot.slane %v1104, 5
        %v1107 = vor.u32 %v1103, %v1106
        %v1109 = vshrl.u32 %v1082, 16
        %v1111 = vrot.slane %v1109, 4
        %v1112 = vshll.u32 %v1082, 16
        %v1114 = vrot.slane %v1112, 5
        %v1115 = vor.u32 %v1111, %v1114
        %v1117 = vshrl.u32 %v1083, 16
        %v1119 = vrot.slane %v1117, 4
        %v1120 = vshll.u32 %v1083, 16
        %v1122 = vrot.slane %v1120, 5
        %v1123 = vor.u32 %v1119, %v1122
        %v1129 = vunpack.c.l.b16 %v803
        %v1130 = vunpack.c.l.b16 %v804
        %v1131 = vunpack.c.l.b16 %v805
        %v1132 = vunpack.c.l.b16 %v806
        %v1133 = vunpack.c.l.b16 %v807
        %v1134 = vpack.c.b16 %v1129, %v1129
        %v1135 = vpack.c.b16 %v1130, %v1130
        %v1136 = vpack.c.b16 %v1131, %v1131
        %v1137 = vpack.c.b16 %v1132, %v1132
        %v1138 = vpack.c.b16 %v1133, %v1133
        %v1139 = vrot.slane %v1079, 5
        %v1140 = vrot.slane %v1134, 5
        %v1141 = vsel %vm908, %v1139, %v1140
        %v1142 = vrot.slane %v1080, 5
        %v1143 = vrot.slane %v1135, 5
        %v1144 = vsel %vm908, %v1142, %v1143
        %v1145 = vrot.slane %v1081, 5
        %v1146 = vrot.slane %v1136, 5
        %v1147 = vsel %vm908, %v1145, %v1146
        %v1148 = vrot.slane %v1082, 5
        %v1149 = vrot.slane %v1137, 5
        %v1150 = vsel %vm908, %v1148, %v1149
        %v1151 = vrot.slane %v1083, 5
        %v1152 = vrot.slane %v1138, 5
        %v1153 = vsel %vm908, %v1151, %v1152
        %v1154 = vld [vmem:[#allocation7] sm:$0xf]
        %v1155 = vld [vmem:[#allocation7 + $0x4] sm:$0xf]
        %v1156 = vld [vmem:[#allocation7 + $0x8] sm:$0xf]
        %v1157 = vld [vmem:[#allocation7 + $0xc] sm:$0xf]
        %v1158 = vld [vmem:[#allocation7 + $0x10] sm:$0xf]
        %v1159 = vld [vmem:[#allocation7 + $0x14] sm:$0xf]
        %v1160 = vld [vmem:[#allocation7 + $0x18] sm:$0xf]
        %v1161 = vld [vmem:[#allocation7 + $0x1c] sm:$0xf]
        %v1162 = vld [vmem:[#allocation7 + $0x20] sm:$0xf]
        %v1163 = vld [vmem:[#allocation7 + $0x24] sm:$0xf]
        %v1164 = vld [vmem:[#allocation7 + $0x28] sm:$0xf]
        %v1165 = vld [vmem:[#allocation7 + $0x2c] sm:$0xf]
        %v1166 = vld [vmem:[#allocation7 + $0x30] sm:$0xf]
        %v1167 = vld [vmem:[#allocation7 + $0x34] sm:$0xf]
        %v1168 = vld [vmem:[#allocation7 + $0x38] sm:$0xf]
        %v1169 = vld [vmem:[#allocation7 + $0x3c] sm:$0xf]
        %v1170 = vld [vmem:[#allocation7 + $0x40] sm:$0xf]
        %v1171 = vld [vmem:[#allocation7 + $0x44] sm:$0xf]
        %v1172 = vld [vmem:[#allocation7 + $0x48] sm:$0xf]
        %v1173 = vld [vmem:[#allocation7 + $0x4c] sm:$0xf]
        %v1174 = vld [vmem:[#allocation7 + $0x50] sm:$0xf]
        %v1175 = vld [vmem:[#allocation7 + $0x54] sm:$0xf]
        %v1176 = vld [vmem:[#allocation7 + $0x58] sm:$0xf]
        %v1177 = vld [vmem:[#allocation7 + $0x5c] sm:$0xf]
        %v1178 = vld [vmem:[#allocation7 + $0x60] sm:$0xf]
        %v1179 = vld [vmem:[#allocation7 + $0x64] sm:$0xf]
        %v1180 = vld [vmem:[#allocation7 + $0x68] sm:$0xf]
        %v1181 = vld [vmem:[#allocation7 + $0x6c] sm:$0xf]
        %v1182 = vld [vmem:[#allocation7 + $0x70] sm:$0xf]
        %v1183 = vld [vmem:[#allocation7 + $0x74] sm:$0xf]
        %v1184 = vld [vmem:[#allocation7 + $0x78] sm:$0xf]
        %v1185 = vld [vmem:[#allocation7 + $0x7c] sm:$0xf]
        %v1186 = vld [vmem:[#allocation7 + $0x80] sm:$0xf]
        %v1187 = vld [vmem:[#allocation7 + $0x84] sm:$0xf]
        %v1188 = vld [vmem:[#allocation7 + $0x88] sm:$0xf]
        %v1189 = vld [vmem:[#allocation7 + $0x8c] sm:$0xf]
        %v1190 = vld [vmem:[#allocation7 + $0x90] sm:$0xf]
        %v1191 = vld [vmem:[#allocation7 + $0x94] sm:$0xf]
        %v1192 = vld [vmem:[#allocation7 + $0x98] sm:$0xf]
        %v1193 = vld [vmem:[#allocation7 + $0x9c] sm:$0xf]
        %v1194 = vld [vmem:[#allocation7 + $0xa0] sm:$0xf]
        %v1195 = vld [vmem:[#allocation7 + $0xa4] sm:$0xf]
        %v1196 = vld [vmem:[#allocation7 + $0xa8] sm:$0xf]
        %v1197 = vld [vmem:[#allocation7 + $0xac] sm:$0xf]
        %v1198 = vld [vmem:[#allocation7 + $0xb0] sm:$0xf]
        %v1199 = vld [vmem:[#allocation7 + $0xb4] sm:$0xf]
        %v1200 = vld [vmem:[#allocation7 + $0xb8] sm:$0xf]
        %v1201 = vld [vmem:[#allocation7 + $0xbc] sm:$0xf]
        %v1202 = vld [vmem:[#allocation7 + $0xc0] sm:$0xf]
        %v1203 = vld [vmem:[#allocation7 + $0xc4] sm:$0xf]
        %v1204 = vld [vmem:[#allocation7 + $0xc8] sm:$0xf]
        %v1205 = vld [vmem:[#allocation7 + $0xcc] sm:$0xf]
        %v1206 = vld [vmem:[#allocation7 + $0xd0] sm:$0xf]
        %v1207 = vld [vmem:[#allocation7 + $0xd4] sm:$0xf]
        %v1208 = vld [vmem:[#allocation7 + $0xd8] sm:$0xf]
        %v1209 = vld [vmem:[#allocation7 + $0xdc] sm:$0xf]
        %v1210 = vld [vmem:[#allocation7 + $0xe0] sm:$0xf]
        %v1211 = vld [vmem:[#allocation7 + $0xe4] sm:$0xf]
        %v1212 = vld [vmem:[#allocation7 + $0xe8] sm:$0xf]
        %v1213 = vld [vmem:[#allocation7 + $0xec] sm:$0xf]
        %v1214 = vld [vmem:[#allocation7 + $0xf0] sm:$0xf]
        %v1215 = vld [vmem:[#allocation7 + $0xf4] sm:$0xf]
        %v1216 = vld [vmem:[#allocation7 + $0xf8] sm:$0xf]
        %v1217 = vld [vmem:[#allocation7 + $0xfc] sm:$0xf]
        %v1218 = vld [vmem:[#allocation7 + $0x100] sm:$0xf]
        %v1219 = vld [vmem:[#allocation7 + $0x104] sm:$0xf]
        %v1220 = vld [vmem:[#allocation7 + $0x108] sm:$0xf]
        %v1221 = vld [vmem:[#allocation7 + $0x10c] sm:$0xf]
        %v1222 = vld [vmem:[#allocation7 + $0x110] sm:$0xf]
        %v1223 = vld [vmem:[#allocation7 + $0x114] sm:$0xf]
        %v1224 = vld [vmem:[#allocation7 + $0x118] sm:$0xf]
        %v1225 = vld [vmem:[#allocation7 + $0x11c] sm:$0xf]
        %v1226 = vld [vmem:[#allocation7 + $0x120] sm:$0xf]
        %v1227 = vld [vmem:[#allocation7 + $0x124] sm:$0xf]
        %v1228 = vld [vmem:[#allocation7 + $0x128] sm:$0xf]
        %v1229 = vld [vmem:[#allocation7 + $0x12c] sm:$0xf]
        %v1230 = vld [vmem:[#allocation7 + $0x130] sm:$0xf]
        %v1231 = vld [vmem:[#allocation7 + $0x134] sm:$0xf]
        %v1232 = vld [vmem:[#allocation7 + $0x138] sm:$0xf]
        %v1233 = vld [vmem:[#allocation7 + $0x13c] sm:$0xf]
        %v1234 = vld [vmem:[#allocation7 + $0x140] sm:$0xf]
        %v1235 = vld [vmem:[#allocation7 + $0x144] sm:$0xf]
        %v1236 = vld [vmem:[#allocation7 + $0x148] sm:$0xf]
        %v1237 = vld [vmem:[#allocation7 + $0x14c] sm:$0xf]
        %v1238 = vld [vmem:[#allocation7 + $0x150] sm:$0xf]
        %v1239 = vld [vmem:[#allocation7 + $0x154] sm:$0xf]
        %v1240 = vld [vmem:[#allocation7 + $0x158] sm:$0xf]
        %v1241 = vld [vmem:[#allocation7 + $0x15c] sm:$0xf]
        %v1242 = vld [vmem:[#allocation7 + $0x160] sm:$0xf]
        %v1243 = vld [vmem:[#allocation7 + $0x164] sm:$0xf]
        %v1244 = vld [vmem:[#allocation7 + $0x168] sm:$0xf]
        %v1245 = vld [vmem:[#allocation7 + $0x16c] sm:$0xf]
        %v1246 = vld [vmem:[#allocation7 + $0x170] sm:$0xf]
        %v1247 = vld [vmem:[#allocation7 + $0x174] sm:$0xf]
        %v1248 = vld [vmem:[#allocation7 + $0x178] sm:$0xf]
        %v1249 = vld [vmem:[#allocation7 + $0x17c] sm:$0xf]
        %v1250 = vld [vmem:[#allocation7 + $0x180] sm:$0xf]
        %v1251 = vld [vmem:[#allocation7 + $0x184] sm:$0xf]
        %v1252 = vld [vmem:[#allocation7 + $0x188] sm:$0xf]
        %v1253 = vld [vmem:[#allocation7 + $0x18c] sm:$0xf]
        %v1254 = vld [vmem:[#allocation7 + $0x190] sm:$0xf]
        %v1255 = vld [vmem:[#allocation7 + $0x194] sm:$0xf]
        %v1256 = vld [vmem:[#allocation7 + $0x198] sm:$0xf]
        %v1257 = vld [vmem:[#allocation7 + $0x19c] sm:$0xf]
        %v1258 = vld [vmem:[#allocation7 + $0x1a0] sm:$0xf]
        %v1259 = vld [vmem:[#allocation7 + $0x1a4] sm:$0xf]
        %v1260 = vld [vmem:[#allocation7 + $0x1a8] sm:$0xf]
        %v1261 = vld [vmem:[#allocation7 + $0x1ac] sm:$0xf]
        %v1262 = vld [vmem:[#allocation7 + $0x1b0] sm:$0xf]
        %v1263 = vld [vmem:[#allocation7 + $0x1b4] sm:$0xf]
        %v1264 = vld [vmem:[#allocation7 + $0x1b8] sm:$0xf]
        %v1265 = vld [vmem:[#allocation7 + $0x1bc] sm:$0xf]
        %v1266 = vld [vmem:[#allocation7 + $0x1c0] sm:$0xf]
        %v1267 = vld [vmem:[#allocation7 + $0x1c4] sm:$0xf]
        %v1268 = vld [vmem:[#allocation7 + $0x1c8] sm:$0xf]
        %v1269 = vld [vmem:[#allocation7 + $0x1cc] sm:$0xf]
        %v1270 = vld [vmem:[#allocation7 + $0x1d0] sm:$0xf]
        %v1271 = vld [vmem:[#allocation7 + $0x1d4] sm:$0xf]
        %v1272 = vld [vmem:[#allocation7 + $0x1d8] sm:$0xf]
        %v1273 = vld [vmem:[#allocation7 + $0x1dc] sm:$0xf]
        %v1274 = vld [vmem:[#allocation7 + $0x1e0] sm:$0xf]
        %v1275 = vld [vmem:[#allocation7 + $0x1e4] sm:$0xf]
        %v1276 = vld [vmem:[#allocation7 + $0x1e8] sm:$0xf]
        %v1277 = vld [vmem:[#allocation7 + $0x1ec] sm:$0xf]
        %v1278 = vld [vmem:[#allocation7 + $0x1f0] sm:$0xf]
        %v1279 = vld [vmem:[#allocation7 + $0x1f4] sm:$0xf]
        %v1280 = vld [vmem:[#allocation7 + $0x1f8] sm:$0xf]
        %v1281 = vld [vmem:[#allocation7 + $0x1fc] sm:$0xf]
        %v1282 = vld [vmem:[#allocation7 + $0x200] sm:$0xf]
        %v1283 = vld [vmem:[#allocation7 + $0x204] sm:$0xf]
        %v1284 = vld [vmem:[#allocation7 + $0x208] sm:$0xf]
        %v1285 = vld [vmem:[#allocation7 + $0x20c] sm:$0xf]
        %v1286 = vld [vmem:[#allocation7 + $0x210] sm:$0xf]
        %v1287 = vld [vmem:[#allocation7 + $0x214] sm:$0xf]
        %v1288 = vld [vmem:[#allocation7 + $0x218] sm:$0xf]
        %v1289 = vld [vmem:[#allocation7 + $0x21c] sm:$0xf]
        %v1290 = vld [vmem:[#allocation7 + $0x220] sm:$0xf]
        %v1291 = vld [vmem:[#allocation7 + $0x224] sm:$0xf]
        %v1292 = vld [vmem:[#allocation7 + $0x228] sm:$0xf]
        %v1293 = vld [vmem:[#allocation7 + $0x22c] sm:$0xf]
        %v1294 = vld [vmem:[#allocation7 + $0x230] sm:$0xf]
        %v1295 = vld [vmem:[#allocation7 + $0x234] sm:$0xf]
        %v1296 = vld [vmem:[#allocation7 + $0x238] sm:$0xf]
        %v1297 = vld [vmem:[#allocation7 + $0x23c] sm:$0xf]
        %v1298 = vld [vmem:[%s2] sm:$0x1]
        %v1300 = vlaneseq
        %v1301 = vshrl.u32 %v1300, 7
        %v1302 = vsub.s32 0, %v1301
        %v1303 = vrot.slane %v1298, %v1302
        %vm1305 = vsmask.f32 4352
        %v1307 = vshrl.u32 %v838, 16
        %v1309 = vrot.slane %v1307, 3
        %v1310 = vshll.u32 %v838, 16
        %v1312 = vrot.slane %v1310, 4
        %v1313 = vor.u32 %v1309, %v1312
        %v1315 = vshrl.u32 %v839, 16
        %v1317 = vrot.slane %v1315, 3
        %v1318 = vshll.u32 %v839, 16
        %v1320 = vrot.slane %v1318, 4
        %v1321 = vor.u32 %v1317, %v1320
        %v1322 = vsel %vm1305, %v1313, %v1321
        %v1324 = vshrl.u32 %v860, 16
        %v1326 = vrot.slane %v1324, 3
        %v1327 = vshll.u32 %v860, 16
        %v1329 = vrot.slane %v1327, 4
        %v1330 = vor.u32 %v1326, %v1329
        %v1331 = vsel %vm1305, %v1330, %v1330
        %v1333 = vshrl.u32 %v909, 16
        %v1335 = vrot.slane %v1333, 3
        %v1336 = vshll.u32 %v909, 16
        %v1338 = vrot.slane %v1336, 4
        %v1339 = vor.u32 %v1335, %v1338
        %v1341 = vshrl.u32 %v911, 16
        %v1343 = vrot.slane %v1341, 3
        %v1344 = vshll.u32 %v911, 16
        %v1346 = vrot.slane %v1344, 4
        %v1347 = vor.u32 %v1343, %v1346
        %v1348 = vsel %vm1305, %v1339, %v1347
        %v1350 = vshrl.u32 %v954, 16
        %v1352 = vrot.slane %v1350, 3
        %v1353 = vshll.u32 %v954, 16
        %v1355 = vrot.slane %v1353, 4
        %v1356 = vor.u32 %v1352, %v1355
        %v1358 = vshrl.u32 %v955, 16
        %v1360 = vrot.slane %v1358, 3
        %v1361 = vshll.u32 %v955, 16
        %v1363 = vrot.slane %v1361, 4
        %v1364 = vor.u32 %v1360, %v1363
        %v1365 = vsel %vm1305, %v1356, %v1364
        %v1367 = vshrl.u32 %v976, 16
        %v1369 = vrot.slane %v1367, 3
        %v1370 = vshll.u32 %v976, 16
        %v1372 = vrot.slane %v1370, 4
        %v1373 = vor.u32 %v1369, %v1372
        %v1374 = vsel %vm1305, %v1373, %v1373
        %v1376 = vshrl.u32 %v1024, 16
        %v1378 = vrot.slane %v1376, 3
        %v1379 = vshll.u32 %v1024, 16
        %v1381 = vrot.slane %v1379, 4
        %v1382 = vor.u32 %v1378, %v1381
        %v1384 = vshrl.u32 %v1026, 16
        %v1386 = vrot.slane %v1384, 3
        %v1387 = vshll.u32 %v1026, 16
        %v1389 = vrot.slane %v1387, 4
        %v1390 = vor.u32 %v1386, %v1389
        %v1391 = vsel %vm1305, %v1382, %v1390
        %v1393 = vshrl.u32 %v1069, 16
        %v1395 = vrot.slane %v1393, 3
        %v1396 = vshll.u32 %v1069, 16
        %v1398 = vrot.slane %v1396, 4
        %v1399 = vor.u32 %v1395, %v1398
        %v1401 = vshrl.u32 %v1070, 16
        %v1403 = vrot.slane %v1401, 3
        %v1404 = vshll.u32 %v1070, 16
        %v1406 = vrot.slane %v1404, 4
        %v1407 = vor.u32 %v1403, %v1406
        %v1408 = vsel %vm1305, %v1399, %v1407
        %v1410 = vshrl.u32 %v1091, 16
        %v1412 = vrot.slane %v1410, 3
        %v1413 = vshll.u32 %v1091, 16
        %v1415 = vrot.slane %v1413, 4
        %v1416 = vor.u32 %v1412, %v1415
        %v1417 = vsel %vm1305, %v1416, %v1416
        %v1419 = vshrl.u32 %v1139, 16
        %v1421 = vrot.slane %v1419, 3
        %v1422 = vshll.u32 %v1139, 16
        %v1424 = vrot.slane %v1422, 4
        %v1425 = vor.u32 %v1421, %v1424
        %v1427 = vshrl.u32 %v1141, 16
        %v1429 = vrot.slane %v1427, 3
        %v1430 = vshll.u32 %v1141, 16
        %v1432 = vrot.slane %v1430, 4
        %v1433 = vor.u32 %v1429, %v1432
        %v1434 = vsel %vm1305, %v1425, %v1433
        %v1436 = vshrl.u32 %v840, 16
        %v1438 = vrot.slane %v1436, 3
        %v1439 = vshll.u32 %v840, 16
        %v1441 = vrot.slane %v1439, 4
        %v1442 = vor.u32 %v1438, %v1441
        %v1444 = vshrl.u32 %v841, 16
        %v1446 = vrot.slane %v1444, 3
        %v1447 = vshll.u32 %v841, 16
        %v1449 = vrot.slane %v1447, 4
        %v1450 = vor.u32 %v1446, %v1449
        %v1451 = vsel %vm1305, %v1442, %v1450
        %v1453 = vshrl.u32 %v868, 16
        %v1455 = vrot.slane %v1453, 3
        %v1456 = vshll.u32 %v868, 16
        %v1458 = vrot.slane %v1456, 4
        %v1459 = vor.u32 %v1455, %v1458
        %v1460 = vsel %vm1305, %v1459, %v1459
        %v1462 = vshrl.u32 %v912, 16
        %v1464 = vrot.slane %v1462, 3
        %v1465 = vshll.u32 %v912, 16
        %v1467 = vrot.slane %v1465, 4
        %v1468 = vor.u32 %v1464, %v1467
        %v1470 = vshrl.u32 %v914, 16
        %v1472 = vrot.slane %v1470, 3
        %v1473 = vshll.u32 %v914, 16
        %v1475 = vrot.slane %v1473, 4
        %v1476 = vor.u32 %v1472, %v1475
        %v1477 = vsel %vm1305, %v1468, %v1476
        %v1479 = vshrl.u32 %v956, 16
        %v1481 = vrot.slane %v1479, 3
        %v1482 = vshll.u32 %v956, 16
        %v1484 = vrot.slane %v1482, 4
        %v1485 = vor.u32 %v1481, %v1484
        %v1487 = vshrl.u32 %v957, 16
        %v1489 = vrot.slane %v1487, 3
        %v1490 = vshll.u32 %v957, 16
        %v1492 = vrot.slane %v1490, 4
        %v1493 = vor.u32 %v1489, %v1492
        %v1494 = vsel %vm1305, %v1485, %v1493
        %v1496 = vshrl.u32 %v984, 16
        %v1498 = vrot.slane %v1496, 3
        %v1499 = vshll.u32 %v984, 16
        %v1501 = vrot.slane %v1499, 4
        %v1502 = vor.u32 %v1498, %v1501
        %v1503 = vsel %vm1305, %v1502, %v1502
        %v1505 = vshrl.u32 %v1027, 16
        %v1507 = vrot.slane %v1505, 3
        %v1508 = vshll.u32 %v1027, 16
        %v1510 = vrot.slane %v1508, 4
        %v1511 = vor.u32 %v1507, %v1510
        %v1513 = vshrl.u32 %v1029, 16
        %v1515 = vrot.slane %v1513, 3
        %v1516 = vshll.u32 %v1029, 16
        %v1518 = vrot.slane %v1516, 4
        %v1519 = vor.u32 %v1515, %v1518
        %v1520 = vsel %vm1305, %v1511, %v1519
        %v1522 = vshrl.u32 %v1071, 16
        %v1524 = vrot.slane %v1522, 3
        %v1525 = vshll.u32 %v1071, 16
        %v1527 = vrot.slane %v1525, 4
        %v1528 = vor.u32 %v1524, %v1527
        %v1530 = vshrl.u32 %v1072, 16
        %v1532 = vrot.slane %v1530, 3
        %v1533 = vshll.u32 %v1072, 16
        %v1535 = vrot.slane %v1533, 4
        %v1536 = vor.u32 %v1532, %v1535
        %v1537 = vsel %vm1305, %v1528, %v1536
        %v1539 = vshrl.u32 %v1099, 16
        %v1541 = vrot.slane %v1539, 3
        %v1542 = vshll.u32 %v1099, 16
        %v1544 = vrot.slane %v1542, 4
        %v1545 = vor.u32 %v1541, %v1544
        %v1546 = vsel %vm1305, %v1545, %v1545
        %v1548 = vshrl.u32 %v1142, 16
        %v1550 = vrot.slane %v1548, 3
        %v1551 = vshll.u32 %v1142, 16
        %v1553 = vrot.slane %v1551, 4
        %v1554 = vor.u32 %v1550, %v1553
        %v1556 = vshrl.u32 %v1144, 16
        %v1558 = vrot.slane %v1556, 3
        %v1559 = vshll.u32 %v1144, 16
        %v1561 = vrot.slane %v1559, 4
        %v1562 = vor.u32 %v1558, %v1561
        %v1563 = vsel %vm1305, %v1554, %v1562
        %v1565 = vshrl.u32 %v842, 16
        %v1567 = vrot.slane %v1565, 3
        %v1568 = vshll.u32 %v842, 16
        %v1570 = vrot.slane %v1568, 4
        %v1571 = vor.u32 %v1567, %v1570
        %v1573 = vshrl.u32 %v843, 16
        %v1575 = vrot.slane %v1573, 3
        %v1576 = vshll.u32 %v843, 16
        %v1578 = vrot.slane %v1576, 4
        %v1579 = vor.u32 %v1575, %v1578
        %v1580 = vsel %vm1305, %v1571, %v1579
        %v1582 = vshrl.u32 %v876, 16
        %v1584 = vrot.slane %v1582, 3
        %v1585 = vshll.u32 %v876, 16
        %v1587 = vrot.slane %v1585, 4
        %v1588 = vor.u32 %v1584, %v1587
        %v1589 = vsel %vm1305, %v1588, %v1588
        %v1591 = vshrl.u32 %v915, 16
        %v1593 = vrot.slane %v1591, 3
        %v1594 = vshll.u32 %v915, 16
        %v1596 = vrot.slane %v1594, 4
        %v1597 = vor.u32 %v1593, %v1596
        %v1599 = vshrl.u32 %v917, 16
        %v1601 = vrot.slane %v1599, 3
        %v1602 = vshll.u32 %v917, 16
        %v1604 = vrot.slane %v1602, 4
        %v1605 = vor.u32 %v1601, %v1604
        %v1606 = vsel %vm1305, %v1597, %v1605
        %v1608 = vshrl.u32 %v958, 16
        %v1610 = vrot.slane %v1608, 3
        %v1611 = vshll.u32 %v958, 16
        %v1613 = vrot.slane %v1611, 4
        %v1614 = vor.u32 %v1610, %v1613
        %v1616 = vshrl.u32 %v959, 16
        %v1618 = vrot.slane %v1616, 3
        %v1619 = vshll.u32 %v959, 16
        %v1621 = vrot.slane %v1619, 4
        %v1622 = vor.u32 %v1618, %v1621
        %v1623 = vsel %vm1305, %v1614, %v1622
        %v1625 = vshrl.u32 %v992, 16
        %v1627 = vrot.slane %v1625, 3
        %v1628 = vshll.u32 %v992, 16
        %v1630 = vrot.slane %v1628, 4
        %v1631 = vor.u32 %v1627, %v1630
        %v1632 = vsel %vm1305, %v1631, %v1631
        %v1634 = vshrl.u32 %v1030, 16
        %v1636 = vrot.slane %v1634, 3
        %v1637 = vshll.u32 %v1030, 16
        %v1639 = vrot.slane %v1637, 4
        %v1640 = vor.u32 %v1636, %v1639
        %v1642 = vshrl.u32 %v1032, 16
        %v1644 = vrot.slane %v1642, 3
        %v1645 = vshll.u32 %v1032, 16
        %v1647 = vrot.slane %v1645, 4
        %v1648 = vor.u32 %v1644, %v1647
        %v1649 = vsel %vm1305, %v1640, %v1648
        %v1651 = vshrl.u32 %v1073, 16
        %v1653 = vrot.slane %v1651, 3
        %v1654 = vshll.u32 %v1073, 16
        %v1656 = vrot.slane %v1654, 4
        %v1657 = vor.u32 %v1653, %v1656
        %v1659 = vshrl.u32 %v1074, 16
        %v1661 = vrot.slane %v1659, 3
        %v1662 = vshll.u32 %v1074, 16
        %v1664 = vrot.slane %v1662, 4
        %v1665 = vor.u32 %v1661, %v1664
        %v1666 = vsel %vm1305, %v1657, %v1665
        %v1668 = vshrl.u32 %v1107, 16
        %v1670 = vrot.slane %v1668, 3
        %v1671 = vshll.u32 %v1107, 16
        %v1673 = vrot.slane %v1671, 4
        %v1674 = vor.u32 %v1670, %v1673
        %v1675 = vsel %vm1305, %v1674, %v1674
        %v1677 = vshrl.u32 %v1145, 16
        %v1679 = vrot.slane %v1677, 3
        %v1680 = vshll.u32 %v1145, 16
        %v1682 = vrot.slane %v1680, 4
        %v1683 = vor.u32 %v1679, %v1682
        %v1685 = vshrl.u32 %v1147, 16
        %v1687 = vrot.slane %v1685, 3
        %v1688 = vshll.u32 %v1147, 16
        %v1690 = vrot.slane %v1688, 4
        %v1691 = vor.u32 %v1687, %v1690
        %v1692 = vsel %vm1305, %v1683, %v1691
        %v1694 = vshrl.u32 %v844, 16
        %v1696 = vrot.slane %v1694, 3
        %v1697 = vshll.u32 %v844, 16
        %v1699 = vrot.slane %v1697, 4
        %v1700 = vor.u32 %v1696, %v1699
        %v1702 = vshrl.u32 %v845, 16
        %v1704 = vrot.slane %v1702, 3
        %v1705 = vshll.u32 %v845, 16
        %v1707 = vrot.slane %v1705, 4
        %v1708 = vor.u32 %v1704, %v1707
        %v1709 = vsel %vm1305, %v1700, %v1708
        %v1711 = vshrl.u32 %v884, 16
        %v1713 = vrot.slane %v1711, 3
        %v1714 = vshll.u32 %v884, 16
        %v1716 = vrot.slane %v1714, 4
        %v1717 = vor.u32 %v1713, %v1716
        %v1718 = vsel %vm1305, %v1717, %v1717
        %v1720 = vshrl.u32 %v918, 16
        %v1722 = vrot.slane %v1720, 3
        %v1723 = vshll.u32 %v918, 16
        %v1725 = vrot.slane %v1723, 4
        %v1726 = vor.u32 %v1722, %v1725
        %v1728 = vshrl.u32 %v920, 16
        %v1730 = vrot.slane %v1728, 3
        %v1731 = vshll.u32 %v920, 16
        %v1733 = vrot.slane %v1731, 4
        %v1734 = vor.u32 %v1730, %v1733
        %v1735 = vsel %vm1305, %v1726, %v1734
        %v1737 = vshrl.u32 %v960, 16
        %v1739 = vrot.slane %v1737, 3
        %v1740 = vshll.u32 %v960, 16
        %v1742 = vrot.slane %v1740, 4
        %v1743 = vor.u32 %v1739, %v1742
        %v1745 = vshrl.u32 %v961, 16
        %v1747 = vrot.slane %v1745, 3
        %v1748 = vshll.u32 %v961, 16
        %v1750 = vrot.slane %v1748, 4
        %v1751 = vor.u32 %v1747, %v1750
        %v1752 = vsel %vm1305, %v1743, %v1751
        %v1754 = vshrl.u32 %v1000, 16
        %v1756 = vrot.slane %v1754, 3
        %v1757 = vshll.u32 %v1000, 16
        %v1759 = vrot.slane %v1757, 4
        %v1760 = vor.u32 %v1756, %v1759
        %v1761 = vsel %vm1305, %v1760, %v1760
        %v1763 = vshrl.u32 %v1033, 16
        %v1765 = vrot.slane %v1763, 3
        %v1766 = vshll.u32 %v1033, 16
        %v1768 = vrot.slane %v1766, 4
        %v1769 = vor.u32 %v1765, %v1768
        %v1771 = vshrl.u32 %v1035, 16
        %v1773 = vrot.slane %v1771, 3
        %v1774 = vshll.u32 %v1035, 16
        %v1776 = vrot.slane %v1774, 4
        %v1777 = vor.u32 %v1773, %v1776
        %v1778 = vsel %vm1305, %v1769, %v1777
        %v1780 = vshrl.u32 %v1075, 16
        %v1782 = vrot.slane %v1780, 3
        %v1783 = vshll.u32 %v1075, 16
        %v1785 = vrot.slane %v1783, 4
        %v1786 = vor.u32 %v1782, %v1785
        %v1788 = vshrl.u32 %v1076, 16
        %v1790 = vrot.slane %v1788, 3
        %v1791 = vshll.u32 %v1076, 16
        %v1793 = vrot.slane %v1791, 4
        %v1794 = vor.u32 %v1790, %v1793
        %v1795 = vsel %vm1305, %v1786, %v1794
        %v1797 = vshrl.u32 %v1115, 16
        %v1799 = vrot.slane %v1797, 3
        %v1800 = vshll.u32 %v1115, 16
        %v1802 = vrot.slane %v1800, 4
        %v1803 = vor.u32 %v1799, %v1802
        %v1804 = vsel %vm1305, %v1803, %v1803
        %v1806 = vshrl.u32 %v1148, 16
        %v1808 = vrot.slane %v1806, 3
        %v1809 = vshll.u32 %v1148, 16
        %v1811 = vrot.slane %v1809, 4
        %v1812 = vor.u32 %v1808, %v1811
        %v1814 = vshrl.u32 %v1150, 16
        %v1816 = vrot.slane %v1814, 3
        %v1817 = vshll.u32 %v1150, 16
        %v1819 = vrot.slane %v1817, 4
        %v1820 = vor.u32 %v1816, %v1819
        %v1821 = vsel %vm1305, %v1812, %v1820
        %v1823 = vshrl.u32 %v846, 16
        %v1825 = vrot.slane %v1823, 3
        %v1826 = vshll.u32 %v846, 16
        %v1828 = vrot.slane %v1826, 4
        %v1829 = vor.u32 %v1825, %v1828
        %v1831 = vshrl.u32 %v847, 16
        %v1833 = vrot.slane %v1831, 3
        %v1834 = vshll.u32 %v847, 16
        %v1836 = vrot.slane %v1834, 4
        %v1837 = vor.u32 %v1833, %v1836
        %v1838 = vsel %vm1305, %v1829, %v1837
        %v1840 = vshrl.u32 %v892, 16
        %v1842 = vrot.slane %v1840, 3
        %v1843 = vshll.u32 %v892, 16
        %v1845 = vrot.slane %v1843, 4
        %v1846 = vor.u32 %v1842, %v1845
        %v1847 = vsel %vm1305, %v1846, %v1846
        %v1849 = vshrl.u32 %v921, 16
        %v1851 = vrot.slane %v1849, 3
        %v1852 = vshll.u32 %v921, 16
        %v1854 = vrot.slane %v1852, 4
        %v1855 = vor.u32 %v1851, %v1854
        %v1857 = vshrl.u32 %v923, 16
        %v1859 = vrot.slane %v1857, 3
        %v1860 = vshll.u32 %v923, 16
        %v1862 = vrot.slane %v1860, 4
        %v1863 = vor.u32 %v1859, %v1862
        %v1864 = vsel %vm1305, %v1855, %v1863
        %v1866 = vshrl.u32 %v962, 16
        %v1868 = vrot.slane %v1866, 3
        %v1869 = vshll.u32 %v962, 16
        %v1871 = vrot.slane %v1869, 4
        %v1872 = vor.u32 %v1868, %v1871
        %v1874 = vshrl.u32 %v963, 16
        %v1876 = vrot.slane %v1874, 3
        %v1877 = vshll.u32 %v963, 16
        %v1879 = vrot.slane %v1877, 4
        %v1880 = vor.u32 %v1876, %v1879
        %v1881 = vsel %vm1305, %v1872, %v1880
        %v1883 = vshrl.u32 %v1008, 16
        %v1885 = vrot.slane %v1883, 3
        %v1886 = vshll.u32 %v1008, 16
        %v1888 = vrot.slane %v1886, 4
        %v1889 = vor.u32 %v1885, %v1888
        %v1890 = vsel %vm1305, %v1889, %v1889
        %v1892 = vshrl.u32 %v1036, 16
        %v1894 = vrot.slane %v1892, 3
        %v1895 = vshll.u32 %v1036, 16
        %v1897 = vrot.slane %v1895, 4
        %v1898 = vor.u32 %v1894, %v1897
        %v1900 = vshrl.u32 %v1038, 16
        %v1902 = vrot.slane %v1900, 3
        %v1903 = vshll.u32 %v1038, 16
        %v1905 = vrot.slane %v1903, 4
        %v1906 = vor.u32 %v1902, %v1905
        %v1907 = vsel %vm1305, %v1898, %v1906
        %v1909 = vshrl.u32 %v1077, 16
        %v1911 = vrot.slane %v1909, 3
        %v1912 = vshll.u32 %v1077, 16
        %v1914 = vrot.slane %v1912, 4
        %v1915 = vor.u32 %v1911, %v1914
        %v1917 = vshrl.u32 %v1078, 16
        %v1919 = vrot.slane %v1917, 3
        %v1920 = vshll.u32 %v1078, 16
        %v1922 = vrot.slane %v1920, 4
        %v1923 = vor.u32 %v1919, %v1922
        %v1924 = vsel %vm1305, %v1915, %v1923
        %v1926 = vshrl.u32 %v1123, 16
        %v1928 = vrot.slane %v1926, 3
        %v1929 = vshll.u32 %v1123, 16
        %v1931 = vrot.slane %v1929, 4
        %v1932 = vor.u32 %v1928, %v1931
        %v1933 = vsel %vm1305, %v1932, %v1932
        %v1935 = vshrl.u32 %v1151, 16
        %v1937 = vrot.slane %v1935, 3
        %v1938 = vshll.u32 %v1151, 16
        %v1940 = vrot.slane %v1938, 4
        %v1941 = vor.u32 %v1937, %v1940
        %v1943 = vshrl.u32 %v1153, 16
        %v1945 = vrot.slane %v1943, 3
        %v1946 = vshll.u32 %v1153, 16
        %v1948 = vrot.slane %v1946, 4
        %v1949 = vor.u32 %v1945, %v1948
        %v1950 = vsel %vm1305, %v1941, %v1949
        %v2140 = vunpack.c.l.b16 %v1154
        %v2141 = vunpack.c.l.b16 %v1155
        %v2142 = vunpack.c.l.b16 %v1156
        %v2143 = vunpack.c.l.b16 %v1157
        %v2144 = vunpack.c.l.b16 %v1158
        %v2145 = vunpack.c.l.b16 %v1159
        %v2146 = vunpack.c.l.b16 %v1160
        %v2147 = vunpack.c.l.b16 %v1161
        %v2148 = vunpack.c.l.b16 %v1162
        %v2149 = vunpack.c.l.b16 %v1163
        %v2150 = vunpack.c.l.b16 %v1164
        %v2151 = vunpack.c.l.b16 %v1165
        %v2152 = vunpack.c.l.b16 %v1166
        %v2153 = vunpack.c.l.b16 %v1167
        %v2154 = vunpack.c.l.b16 %v1168
        %v2155 = vunpack.c.l.b16 %v1169
        %v2156 = vunpack.c.l.b16 %v1170
        %v2157 = vunpack.c.l.b16 %v1171
        %v2158 = vunpack.c.l.b16 %v1172
        %v2159 = vunpack.c.l.b16 %v1173
        %v2160 = vunpack.c.l.b16 %v1174
        %v2161 = vunpack.c.l.b16 %v1175
        %v2162 = vunpack.c.l.b16 %v1176
        %v2163 = vunpack.c.l.b16 %v1177
        %v2164 = vunpack.c.l.b16 %v1178
        %v2165 = vunpack.c.l.b16 %v1179
        %v2166 = vunpack.c.l.b16 %v1180
        %v2167 = vunpack.c.l.b16 %v1181
        %v2168 = vunpack.c.l.b16 %v1182
        %v2169 = vunpack.c.l.b16 %v1183
        %v2170 = vunpack.c.l.b16 %v1184
        %v2171 = vunpack.c.l.b16 %v1185
        %v2172 = vunpack.c.l.b16 %v1186
        %v2173 = vunpack.c.l.b16 %v1187
        %v2174 = vunpack.c.l.b16 %v1188
        %v2175 = vunpack.c.l.b16 %v1189
        %v2176 = vunpack.c.l.b16 %v1190
        %v2177 = vunpack.c.l.b16 %v1191
        %v2178 = vunpack.c.l.b16 %v1192
        %v2179 = vunpack.c.l.b16 %v1193
        %v2180 = vunpack.c.l.b16 %v1194
        %v2181 = vunpack.c.l.b16 %v1195
        %v2182 = vunpack.c.l.b16 %v1196
        %v2183 = vunpack.c.l.b16 %v1197
        %v2184 = vunpack.c.l.b16 %v1198
        %v2185 = vunpack.c.l.b16 %v1199
        %v2186 = vunpack.c.l.b16 %v1200
        %v2187 = vunpack.c.l.b16 %v1201
        %v2188 = vunpack.c.l.b16 %v1202
        %v2189 = vunpack.c.l.b16 %v1203
        %v2190 = vunpack.c.l.b16 %v1204
        %v2191 = vunpack.c.l.b16 %v1205
        %v2192 = vunpack.c.l.b16 %v1206
        %v2193 = vunpack.c.l.b16 %v1207
        %v2194 = vunpack.c.l.b16 %v1208
        %v2195 = vunpack.c.l.b16 %v1209
        %v2196 = vunpack.c.l.b16 %v1210
        %v2197 = vunpack.c.l.b16 %v1211
        %v2198 = vunpack.c.l.b16 %v1212
        %v2199 = vunpack.c.l.b16 %v1213
        %v2200 = vunpack.c.l.b16 %v1214
        %v2201 = vunpack.c.l.b16 %v1215
        %v2202 = vunpack.c.l.b16 %v1216
        %v2203 = vunpack.c.l.b16 %v1217
        %v2204 = vunpack.c.l.b16 %v1218
        %v2205 = vunpack.c.l.b16 %v1219
        %v2206 = vunpack.c.l.b16 %v1220
        %v2207 = vunpack.c.l.b16 %v1221
        %v2208 = vunpack.c.l.b16 %v1222
        %v2209 = vunpack.c.l.b16 %v1223
        %v2210 = vunpack.c.l.b16 %v1224
        %v2211 = vunpack.c.l.b16 %v1225
        %v2212 = vunpack.c.l.b16 %v1226
        %v2213 = vunpack.c.l.b16 %v1227
        %v2214 = vunpack.c.l.b16 %v1228
        %v2215 = vunpack.c.l.b16 %v1229
        %v2216 = vunpack.c.l.b16 %v1230
        %v2217 = vunpack.c.l.b16 %v1231
        %v2218 = vunpack.c.l.b16 %v1232
        %v2219 = vunpack.c.l.b16 %v1233
        %v2220 = vunpack.c.l.b16 %v1234
        %v2221 = vunpack.c.l.b16 %v1235
        %v2222 = vunpack.c.l.b16 %v1236
        %v2223 = vunpack.c.l.b16 %v1237
        %v2224 = vunpack.c.l.b16 %v1238
        %v2225 = vunpack.c.l.b16 %v1239
        %v2226 = vunpack.c.l.b16 %v1240
        %v2227 = vunpack.c.l.b16 %v1241
        %v2228 = vunpack.c.l.b16 %v1242
        %v2229 = vunpack.c.l.b16 %v1243
        %v2230 = vunpack.c.l.b16 %v1244
        %v2231 = vunpack.c.l.b16 %v1245
        %v2232 = vunpack.c.l.b16 %v1246
        %v2233 = vunpack.c.l.b16 %v1247
        %v2234 = vunpack.c.l.b16 %v1248
        %v2235 = vunpack.c.l.b16 %v1249
        %v2236 = vunpack.c.l.b16 %v1250
        %v2237 = vunpack.c.l.b16 %v1251
        %v2238 = vunpack.c.l.b16 %v1252
        %v2239 = vunpack.c.l.b16 %v1253
        %v2240 = vunpack.c.l.b16 %v1254
        %v2241 = vunpack.c.l.b16 %v1255
        %v2242 = vunpack.c.l.b16 %v1256
        %v2243 = vunpack.c.l.b16 %v1257
        %v2244 = vunpack.c.l.b16 %v1258
        %v2245 = vunpack.c.l.b16 %v1259
        %v2246 = vunpack.c.l.b16 %v1260
        %v2247 = vunpack.c.l.b16 %v1261
        %v2248 = vunpack.c.l.b16 %v1262
        %v2249 = vunpack.c.l.b16 %v1263
        %v2250 = vunpack.c.l.b16 %v1264
        %v2251 = vunpack.c.l.b16 %v1265
        %v2252 = vunpack.c.l.b16 %v1266
        %v2253 = vunpack.c.l.b16 %v1267
        %v2254 = vunpack.c.l.b16 %v1268
        %v2255 = vunpack.c.l.b16 %v1269
        %v2256 = vunpack.c.l.b16 %v1270
        %v2257 = vunpack.c.l.b16 %v1271
        %v2258 = vunpack.c.l.b16 %v1272
        %v2259 = vunpack.c.l.b16 %v1273
        %v2260 = vunpack.c.l.b16 %v1274
        %v2261 = vunpack.c.l.b16 %v1275
        %v2262 = vunpack.c.l.b16 %v1276
        %v2263 = vunpack.c.l.b16 %v1277
        %v2264 = vunpack.c.l.b16 %v1278
        %v2265 = vunpack.c.l.b16 %v1279
        %v2266 = vunpack.c.l.b16 %v1280
        %v2267 = vunpack.c.l.b16 %v1281
        %v2268 = vunpack.c.l.b16 %v1282
        %v2269 = vunpack.c.l.b16 %v1283
        %v2270 = vunpack.c.l.b16 %v1284
        %v2271 = vunpack.c.l.b16 %v1285
        %v2272 = vunpack.c.l.b16 %v1286
        %v2273 = vunpack.c.l.b16 %v1287
        %v2274 = vunpack.c.l.b16 %v1288
        %v2275 = vunpack.c.l.b16 %v1289
        %v2276 = vunpack.c.l.b16 %v1290
        %v2277 = vunpack.c.l.b16 %v1291
        %v2278 = vunpack.c.l.b16 %v1292
        %v2279 = vunpack.c.l.b16 %v1293
        %v2280 = vunpack.c.l.b16 %v1294
        %v2281 = vunpack.c.l.b16 %v1295
        %v2282 = vunpack.c.l.b16 %v1296
        %v2283 = vunpack.c.l.b16 %v1297
        %v2284 = vpack.c.b16 %v2141, %v2140
        %v2285 = vpack.c.b16 %v2143, %v2142
        %v2286 = vpack.c.b16 %v2145, %v2144
        %v2287 = vpack.c.b16 %v2147, %v2146
        %v2288 = vpack.c.b16 %v2149, %v2148
        %v2289 = vpack.c.b16 %v2151, %v2150
        %v2290 = vpack.c.b16 %v2153, %v2152
        %v2291 = vpack.c.b16 %v2155, %v2154
        %v2292 = vpack.c.b16 %v2157, %v2156
        %v2293 = vpack.c.b16 %v2159, %v2158
        %v2294 = vpack.c.b16 %v2161, %v2160
        %v2295 = vpack.c.b16 %v2163, %v2162
        %v2296 = vpack.c.b16 %v2165, %v2164
        %v2297 = vpack.c.b16 %v2167, %v2166
        %v2298 = vpack.c.b16 %v2169, %v2168
        %v2299 = vpack.c.b16 %v2171, %v2170
        %v2300 = vpack.c.b16 %v2173, %v2172
        %v2301 = vpack.c.b16 %v2175, %v2174
        %v2302 = vpack.c.b16 %v2177, %v2176
        %v2303 = vpack.c.b16 %v2179, %v2178
        %v2304 = vpack.c.b16 %v2181, %v2180
        %v2305 = vpack.c.b16 %v2183, %v2182
        %v2306 = vpack.c.b16 %v2185, %v2184
        %v2307 = vpack.c.b16 %v2187, %v2186
        %v2308 = vpack.c.b16 %v2189, %v2188
        %v2309 = vpack.c.b16 %v2191, %v2190
        %v2310 = vpack.c.b16 %v2193, %v2192
        %v2311 = vpack.c.b16 %v2195, %v2194
        %v2312 = vpack.c.b16 %v2197, %v2196
        %v2313 = vpack.c.b16 %v2199, %v2198
        %v2314 = vpack.c.b16 %v2201, %v2200
        %v2315 = vpack.c.b16 %v2203, %v2202
        %v2316 = vpack.c.b16 %v2205, %v2204
        %v2317 = vpack.c.b16 %v2207, %v2206
        %v2318 = vpack.c.b16 %v2209, %v2208
        %v2319 = vpack.c.b16 %v2211, %v2210
        %v2320 = vpack.c.b16 %v2213, %v2212
        %v2321 = vpack.c.b16 %v2215, %v2214
        %v2322 = vpack.c.b16 %v2217, %v2216
        %v2323 = vpack.c.b16 %v2219, %v2218
        %v2324 = vpack.c.b16 %v2221, %v2220
        %v2325 = vpack.c.b16 %v2223, %v2222
        %v2326 = vpack.c.b16 %v2225, %v2224
        %v2327 = vpack.c.b16 %v2227, %v2226
        %v2328 = vpack.c.b16 %v2229, %v2228
        %v2329 = vpack.c.b16 %v2231, %v2230
        %v2330 = vpack.c.b16 %v2233, %v2232
        %v2331 = vpack.c.b16 %v2235, %v2234
        %v2332 = vpack.c.b16 %v2237, %v2236
        %v2333 = vpack.c.b16 %v2239, %v2238
        %v2334 = vpack.c.b16 %v2241, %v2240
        %v2335 = vpack.c.b16 %v2243, %v2242
        %v2336 = vpack.c.b16 %v2245, %v2244
        %v2337 = vpack.c.b16 %v2247, %v2246
        %v2338 = vpack.c.b16 %v2249, %v2248
        %v2339 = vpack.c.b16 %v2251, %v2250
        %v2340 = vpack.c.b16 %v2253, %v2252
        %v2341 = vpack.c.b16 %v2255, %v2254
        %v2342 = vpack.c.b16 %v2257, %v2256
        %v2343 = vpack.c.b16 %v2259, %v2258
        %v2344 = vpack.c.b16 %v2261, %v2260
        %v2345 = vpack.c.b16 %v2263, %v2262
        %v2346 = vpack.c.b16 %v2265, %v2264
        %v2347 = vpack.c.b16 %v2267, %v2266
        %v2348 = vpack.c.b16 %v2269, %v2268
        %v2349 = vpack.c.b16 %v2271, %v2270
        %v2350 = vpack.c.b16 %v2273, %v2272
        %v2351 = vpack.c.b16 %v2275, %v2274
        %v2352 = vpack.c.b16 %v2277, %v2276
        %v2353 = vpack.c.b16 %v2279, %v2278
        %v2354 = vpack.c.b16 %v2281, %v2280
        %v2355 = vpack.c.b16 %v2283, %v2282
        %2428 = vmatprep.subr.bf16.mxu0 0
        %2429 = vmatpush1.bf16.msra.mxu0 %v2291
        %2430 = vmatprep.subr.bf16.mxu0 0
        %2431 = vmatpush1.bf16.msra.mxu0 %v2290
        %2432 = vmatprep.subr.bf16.mxu0 0
        %2433 = vmatpush1.bf16.msra.mxu0 %v2289
        %2434 = vmatprep.subr.bf16.mxu0 0
        %2435 = vmatpush1.bf16.msra.mxu0 %v2288
        %2436 = vmatprep.subr.bf16.mxu0 0
        %2437 = vmatpush1.bf16.msra.mxu0 %v2287
        %2438 = vmatprep.subr.bf16.mxu0 0
        %2439 = vmatpush1.bf16.msra.mxu0 %v2286
        %2440 = vmatprep.subr.bf16.mxu0 0
        %2441 = vmatpush1.bf16.msra.mxu0 %v2285
        %2442 = vmatprep.subr.bf16.mxu0 0
        %2443 = vmatpush1.bf16.msra.mxu0 %v2284
        %2444 = vmatprep.subr.bf16.mxu0 0
        %2445 = vmatpush2.bf16.msra.mxu0 %v2299
        %2446 = vmatprep.subr.bf16.mxu0 0
        %2447 = vmatpush2.bf16.msra.mxu0 %v2298
        %2448 = vmatprep.subr.bf16.mxu0 0
        %2449 = vmatpush2.bf16.msra.mxu0 %v2297
        %2450 = vmatprep.subr.bf16.mxu0 0
        %2451 = vmatpush2.bf16.msra.mxu0 %v2296
        %2452 = vmatprep.subr.bf16.mxu0 0
        %2453 = vmatpush2.bf16.msra.mxu0 %v2295
        %2454 = vmatprep.subr.bf16.mxu0 0
        %2455 = vmatpush2.bf16.msra.mxu0 %v2294
        %2456 = vmatprep.subr.bf16.mxu0 0
        %2457 = vmatpush2.bf16.msra.mxu0 %v2293
        %2458 = vmatprep.subr.bf16.mxu0 0
        %2459 = vmatpush2.bf16.msra.mxu0 %v2292
        %2460 = vmatprep.mubr.bf16.mxu0 %v1331
        %2461 = vmatmul.mubr.bf16.gmra.mxu0 %v1322
        %v2462 = vpop.f32.mrf.mxu0
        %v2463 = vadd.f32 %v1303, %v2462
        %v2464 = vpop.f32.mrf.mxu0
        %v2465 = vpop.f32.mrf.mxu0
        %v2466 = vadd.f32 %v1303, %v2465
        %v2467 = vpop.f32.mrf.mxu0
        %2468 = vmatprep.mubr.bf16.mxu0 %v1460
        %2469 = vmatmul.mubr.bf16.gmra.mxu0 %v1451
        %v2470 = vpop.f32.mrf.mxu0
        %v2471 = vadd.f32 %v1303, %v2470
        %v2472 = vpop.f32.mrf.mxu0
        %v2473 = vpop.f32.mrf.mxu0
        %v2474 = vadd.f32 %v1303, %v2473
        %v2475 = vpop.f32.mrf.mxu0
        %2476 = vmatprep.mubr.bf16.mxu0 %v1589
        %2477 = vmatmul.mubr.bf16.gmra.mxu0 %v1580
        %v2478 = vpop.f32.mrf.mxu0
        %v2479 = vadd.f32 %v1303, %v2478
        %v2480 = vpop.f32.mrf.mxu0
        %v2481 = vpop.f32.mrf.mxu0
        %v2482 = vadd.f32 %v1303, %v2481
        %v2483 = vpop.f32.mrf.mxu0
        %2484 = vmatprep.mubr.bf16.mxu0 %v1718
        %2485 = vmatmul.mubr.bf16.gmra.mxu0 %v1709
        %v2486 = vpop.f32.mrf.mxu0
        %v2487 = vadd.f32 %v1303, %v2486
        %v2488 = vpop.f32.mrf.mxu0
        %v2489 = vpop.f32.mrf.mxu0
        %v2490 = vadd.f32 %v1303, %v2489
        %v2491 = vpop.f32.mrf.mxu0
        %2492 = vmatprep.mubr.bf16.mxu0 %v1847
        %2493 = vmatmul.mubr.bf16.gmra.mxu0 %v1838
        %v2494 = vpop.f32.mrf.mxu0
        %v2495 = vadd.f32 %v1303, %v2494
        %v2496 = vpop.f32.mrf.mxu0
        %v2497 = vpop.f32.mrf.mxu0
        %v2498 = vadd.f32 %v1303, %v2497
        %v2499 = vpop.f32.mrf.mxu0
        %2500 = vdwg.mxu0
        %2501 = vmatprep.subr.bf16.mxu0 0
        %2502 = vmatpush1.bf16.msra.mxu0 %v2307
        %2503 = vmatprep.subr.bf16.mxu0 0
        %2504 = vmatpush1.bf16.msra.mxu0 %v2306
        %2505 = vmatprep.subr.bf16.mxu0 0
        %2506 = vmatpush1.bf16.msra.mxu0 %v2305
        %2507 = vmatprep.subr.bf16.mxu0 0
        %2508 = vmatpush1.bf16.msra.mxu0 %v2304
        %2509 = vmatprep.subr.bf16.mxu0 0
        %2510 = vmatpush1.bf16.msra.mxu0 %v2303
        %2511 = vmatprep.subr.bf16.mxu0 0
        %2512 = vmatpush1.bf16.msra.mxu0 %v2302
        %2513 = vmatprep.subr.bf16.mxu0 0
        %2514 = vmatpush1.bf16.msra.mxu0 %v2301
        %2515 = vmatprep.subr.bf16.mxu0 0
        %2516 = vmatpush1.bf16.msra.mxu0 %v2300
        %2517 = vmatprep.subr.bf16.mxu0 0
        %2518 = vmatpush2.bf16.msra.mxu0 %v2315
        %2519 = vmatprep.subr.bf16.mxu0 0
        %2520 = vmatpush2.bf16.msra.mxu0 %v2314
        %2521 = vmatprep.subr.bf16.mxu0 0
        %2522 = vmatpush2.bf16.msra.mxu0 %v2313
        %2523 = vmatprep.subr.bf16.mxu0 0
        %2524 = vmatpush2.bf16.msra.mxu0 %v2312
        %2525 = vmatprep.subr.bf16.mxu0 0
        %2526 = vmatpush2.bf16.msra.mxu0 %v2311
        %2527 = vmatprep.subr.bf16.mxu0 0
        %2528 = vmatpush2.bf16.msra.mxu0 %v2310
        %2529 = vmatprep.subr.bf16.mxu0 0
        %2530 = vmatpush2.bf16.msra.mxu0 %v2309
        %2531 = vmatprep.subr.bf16.mxu0 0
        %2532 = vmatpush2.bf16.msra.mxu0 %v2308
        %2533 = vmatprep.mubr.bf16.mxu0 %v1365
        %2534 = vmatmul.mubr.bf16.gmra.mxu0 %v1348
        %v2535 = vpop.f32.mrf.mxu0
        %v2536 = vadd.f32 %v2463, %v2535
        %v2537 = vpop.f32.mrf.mxu0
        %v2538 = vpop.f32.mrf.mxu0
        %v2539 = vadd.f32 %v2466, %v2538
        %v2540 = vpop.f32.mrf.mxu0
        %2541 = vmatprep.mubr.bf16.mxu0 %v1494
        %2542 = vmatmul.mubr.bf16.gmra.mxu0 %v1477
        %v2543 = vpop.f32.mrf.mxu0
        %v2544 = vadd.f32 %v2471, %v2543
        %v2545 = vpop.f32.mrf.mxu0
        %v2546 = vpop.f32.mrf.mxu0
        %v2547 = vadd.f32 %v2474, %v2546
        %v2548 = vpop.f32.mrf.mxu0
        %2549 = vmatprep.mubr.bf16.mxu0 %v1623
        %2550 = vmatmul.mubr.bf16.gmra.mxu0 %v1606
        %v2551 = vpop.f32.mrf.mxu0
        %v2552 = vadd.f32 %v2479, %v2551
        %v2553 = vpop.f32.mrf.mxu0
        %v2554 = vpop.f32.mrf.mxu0
        %v2555 = vadd.f32 %v2482, %v2554
        %v2556 = vpop.f32.mrf.mxu0
        %2557 = vmatprep.mubr.bf16.mxu0 %v1752
        %2558 = vmatmul.mubr.bf16.gmra.mxu0 %v1735
        %v2559 = vpop.f32.mrf.mxu0
        %v2560 = vadd.f32 %v2487, %v2559
        %v2561 = vpop.f32.mrf.mxu0
        %v2562 = vpop.f32.mrf.mxu0
        %v2563 = vadd.f32 %v2490, %v2562
        %v2564 = vpop.f32.mrf.mxu0
        %2565 = vmatprep.mubr.bf16.mxu0 %v1881
        %2566 = vmatmul.mubr.bf16.gmra.mxu0 %v1864
        %v2567 = vpop.f32.mrf.mxu0
        %v2568 = vadd.f32 %v2495, %v2567
        %v2569 = vpop.f32.mrf.mxu0
        %v2570 = vpop.f32.mrf.mxu0
        %v2571 = vadd.f32 %v2498, %v2570
        %v2572 = vpop.f32.mrf.mxu0
        %2573 = vdwg.mxu0
        %2574 = vmatprep.subr.bf16.mxu0 0
        %2575 = vmatpush1.bf16.msra.mxu0 %v2323
        %2576 = vmatprep.subr.bf16.mxu0 0
        %2577 = vmatpush1.bf16.msra.mxu0 %v2322
        %2578 = vmatprep.subr.bf16.mxu0 0
        %2579 = vmatpush1.bf16.msra.mxu0 %v2321
        %2580 = vmatprep.subr.bf16.mxu0 0
        %2581 = vmatpush1.bf16.msra.mxu0 %v2320
        %2582 = vmatprep.subr.bf16.mxu0 0
        %2583 = vmatpush1.bf16.msra.mxu0 %v2319
        %2584 = vmatprep.subr.bf16.mxu0 0
        %2585 = vmatpush1.bf16.msra.mxu0 %v2318
        %2586 = vmatprep.subr.bf16.mxu0 0
        %2587 = vmatpush1.bf16.msra.mxu0 %v2317
        %2588 = vmatprep.subr.bf16.mxu0 0
        %2589 = vmatpush1.bf16.msra.mxu0 %v2316
        %2590 = vmatprep.subr.bf16.mxu0 0
        %2591 = vmatpush2.bf16.msra.mxu0 %v2331
        %2592 = vmatprep.subr.bf16.mxu0 0
        %2593 = vmatpush2.bf16.msra.mxu0 %v2330
        %2594 = vmatprep.subr.bf16.mxu0 0
        %2595 = vmatpush2.bf16.msra.mxu0 %v2329
        %2596 = vmatprep.subr.bf16.mxu0 0
        %2597 = vmatpush2.bf16.msra.mxu0 %v2328
        %2598 = vmatprep.subr.bf16.mxu0 0
        %2599 = vmatpush2.bf16.msra.mxu0 %v2327
        %2600 = vmatprep.subr.bf16.mxu0 0
        %2601 = vmatpush2.bf16.msra.mxu0 %v2326
        %2602 = vmatprep.subr.bf16.mxu0 0
        %2603 = vmatpush2.bf16.msra.mxu0 %v2325
        %2604 = vmatprep.subr.bf16.mxu0 0
        %2605 = vmatpush2.bf16.msra.mxu0 %v2324
        %2606 = vmatprep.mubr.bf16.mxu0 %v1391
        %2607 = vmatmul.mubr.bf16.gmra.mxu0 %v1374
        %v2608 = vpop.f32.mrf.mxu0
        %v2609 = vadd.f32 %v2536, %v2608
        %v2610 = vpop.f32.mrf.mxu0
        %v2611 = vpop.f32.mrf.mxu0
        %v2612 = vadd.f32 %v2539, %v2611
        %v2613 = vpop.f32.mrf.mxu0
        %2614 = vmatprep.mubr.bf16.mxu0 %v1520
        %2615 = vmatmul.mubr.bf16.gmra.mxu0 %v1503
        %v2616 = vpop.f32.mrf.mxu0
        %v2617 = vadd.f32 %v2544, %v2616
        %v2618 = vpop.f32.mrf.mxu0
        %v2619 = vpop.f32.mrf.mxu0
        %v2620 = vadd.f32 %v2547, %v2619
        %v2621 = vpop.f32.mrf.mxu0
        %2622 = vmatprep.mubr.bf16.mxu0 %v1649
        %2623 = vmatmul.mubr.bf16.gmra.mxu0 %v1632
        %v2624 = vpop.f32.mrf.mxu0
        %v2625 = vadd.f32 %v2552, %v2624
        %v2626 = vpop.f32.mrf.mxu0
        %v2627 = vpop.f32.mrf.mxu0
        %v2628 = vadd.f32 %v2555, %v2627
        %v2629 = vpop.f32.mrf.mxu0
        %2630 = vmatprep.mubr.bf16.mxu0 %v1778
        %2631 = vmatmul.mubr.bf16.gmra.mxu0 %v1761
        %v2632 = vpop.f32.mrf.mxu0
        %v2633 = vadd.f32 %v2560, %v2632
        %v2634 = vpop.f32.mrf.mxu0
        %v2635 = vpop.f32.mrf.mxu0
        %v2636 = vadd.f32 %v2563, %v2635
        %v2637 = vpop.f32.mrf.mxu0
        %2638 = vmatprep.mubr.bf16.mxu0 %v1907
        %2639 = vmatmul.mubr.bf16.gmra.mxu0 %v1890
        %v2640 = vpop.f32.mrf.mxu0
        %v2641 = vadd.f32 %v2568, %v2640
        %v2642 = vpop.f32.mrf.mxu0
        %v2643 = vpop.f32.mrf.mxu0
        %v2644 = vadd.f32 %v2571, %v2643
        %v2645 = vpop.f32.mrf.mxu0
        %2646 = vdwg.mxu0
        %2647 = vmatprep.subr.bf16.mxu0 0
        %2648 = vmatpush1.bf16.msra.mxu0 %v2339
        %2649 = vmatprep.subr.bf16.mxu0 0
        %2650 = vmatpush1.bf16.msra.mxu0 %v2338
        %2651 = vmatprep.subr.bf16.mxu0 0
        %2652 = vmatpush1.bf16.msra.mxu0 %v2337
        %2653 = vmatprep.subr.bf16.mxu0 0
        %2654 = vmatpush1.bf16.msra.mxu0 %v2336
        %2655 = vmatprep.subr.bf16.mxu0 0
        %2656 = vmatpush1.bf16.msra.mxu0 %v2335
        %2657 = vmatprep.subr.bf16.mxu0 0
        %2658 = vmatpush1.bf16.msra.mxu0 %v2334
        %2659 = vmatprep.subr.bf16.mxu0 0
        %2660 = vmatpush1.bf16.msra.mxu0 %v2333
        %2661 = vmatprep.subr.bf16.mxu0 0
        %2662 = vmatpush1.bf16.msra.mxu0 %v2332
        %2663 = vmatprep.subr.bf16.mxu0 0
        %2664 = vmatpush2.bf16.msra.mxu0 %v2347
        %2665 = vmatprep.subr.bf16.mxu0 0
        %2666 = vmatpush2.bf16.msra.mxu0 %v2346
        %2667 = vmatprep.subr.bf16.mxu0 0
        %2668 = vmatpush2.bf16.msra.mxu0 %v2345
        %2669 = vmatprep.subr.bf16.mxu0 0
        %2670 = vmatpush2.bf16.msra.mxu0 %v2344
        %2671 = vmatprep.subr.bf16.mxu0 0
        %2672 = vmatpush2.bf16.msra.mxu0 %v2343
        %2673 = vmatprep.subr.bf16.mxu0 0
        %2674 = vmatpush2.bf16.msra.mxu0 %v2342
        %2675 = vmatprep.subr.bf16.mxu0 0
        %2676 = vmatpush2.bf16.msra.mxu0 %v2341
        %2677 = vmatprep.subr.bf16.mxu0 0
        %2678 = vmatpush2.bf16.msra.mxu0 %v2340
        %2679 = vmatprep.mubr.bf16.mxu0 %v1417
        %2680 = vmatmul.mubr.bf16.gmra.mxu0 %v1408
        %v2681 = vpop.f32.mrf.mxu0
        %v2682 = vadd.f32 %v2609, %v2681
        %v2683 = vpop.f32.mrf.mxu0
        %v2684 = vpop.f32.mrf.mxu0
        %v2685 = vadd.f32 %v2612, %v2684
        %v2686 = vpop.f32.mrf.mxu0
        %2687 = vmatprep.mubr.bf16.mxu0 %v1546
        %2688 = vmatmul.mubr.bf16.gmra.mxu0 %v1537
        %v2689 = vpop.f32.mrf.mxu0
        %v2690 = vadd.f32 %v2617, %v2689
        %v2691 = vpop.f32.mrf.mxu0
        %v2692 = vpop.f32.mrf.mxu0
        %v2693 = vadd.f32 %v2620, %v2692
        %v2694 = vpop.f32.mrf.mxu0
        %2695 = vmatprep.mubr.bf16.mxu0 %v1675
        %2696 = vmatmul.mubr.bf16.gmra.mxu0 %v1666
        %v2697 = vpop.f32.mrf.mxu0
        %v2698 = vadd.f32 %v2625, %v2697
        %v2699 = vpop.f32.mrf.mxu0
        %v2700 = vpop.f32.mrf.mxu0
        %v2701 = vadd.f32 %v2628, %v2700
        %v2702 = vpop.f32.mrf.mxu0
        %2703 = vmatprep.mubr.bf16.mxu0 %v1804
        %2704 = vmatmul.mubr.bf16.gmra.mxu0 %v1795
        %v2705 = vpop.f32.mrf.mxu0
        %v2706 = vadd.f32 %v2633, %v2705
        %v2707 = vpop.f32.mrf.mxu0
        %v2708 = vpop.f32.mrf.mxu0
        %v2709 = vadd.f32 %v2636, %v2708
        %v2710 = vpop.f32.mrf.mxu0
        %2711 = vmatprep.mubr.bf16.mxu0 %v1933
        %2712 = vmatmul.mubr.bf16.gmra.mxu0 %v1924
        %v2713 = vpop.f32.mrf.mxu0
        %v2714 = vadd.f32 %v2641, %v2713
        %v2715 = vpop.f32.mrf.mxu0
        %v2716 = vpop.f32.mrf.mxu0
        %v2717 = vadd.f32 %v2644, %v2716
        %v2718 = vpop.f32.mrf.mxu0
        %2719 = vdwg.mxu0
        %2720 = vmatprep.subr.bf16.mxu0 0
        %2721 = vmatpush1.bf16.msra.mxu0 %v2355
        %2722 = vmatprep.subr.bf16.mxu0 0
        %2723 = vmatpush1.bf16.msra.mxu0 %v2354
        %2724 = vmatprep.subr.bf16.mxu0 0
        %2725 = vmatpush1.bf16.msra.mxu0 %v2353
        %2726 = vmatprep.subr.bf16.mxu0 0
        %2727 = vmatpush1.bf16.msra.mxu0 %v2352
        %2728 = vmatprep.subr.bf16.mxu0 0
        %2729 = vmatpush1.bf16.msra.mxu0 %v2351
        %2730 = vmatprep.subr.bf16.mxu0 0
        %2731 = vmatpush1.bf16.msra.mxu0 %v2350
        %2732 = vmatprep.subr.bf16.mxu0 0
        %2733 = vmatpush1.bf16.msra.mxu0 %v2349
        %2734 = vmatprep.subr.bf16.mxu0 0
        %2735 = vmatpush1.bf16.msra.mxu0 %v2348
        %2736 = vmatprep.subr.bf16.mxu0 0
        %2737 = vmatpush2.bf16.msra.mxu0 0
        %2738 = vmatprep.subr.bf16.mxu0 0
        %2739 = vmatpush2.bf16.msra.mxu0 0
        %2740 = vmatprep.subr.bf16.mxu0 0
        %2741 = vmatpush2.bf16.msra.mxu0 0
        %2742 = vmatprep.subr.bf16.mxu0 0
        %2743 = vmatpush2.bf16.msra.mxu0 0
        %2744 = vmatprep.subr.bf16.mxu0 0
        %2745 = vmatpush2.bf16.msra.mxu0 0
        %2746 = vmatprep.subr.bf16.mxu0 0
        %2747 = vmatpush2.bf16.msra.mxu0 0
        %2748 = vmatprep.subr.bf16.mxu0 0
        %2749 = vmatpush2.bf16.msra.mxu0 0
        %2750 = vmatprep.subr.bf16.mxu0 0
        %2751 = vmatpush2.bf16.msra.mxu0 0
        %2752 = vmatprep.mubr.bf16.mxu0 0
        %2753 = vmatmul.mubr.bf16.gmra.mxu0 %v1434
        %v2754 = vpop.f32.mrf.mxu0
        %v2755 = vadd.f32 %v2682, %v2754
        %v2756 = vpop.f32.mrf.mxu0
        %v2757 = vpop.f32.mrf.mxu0
        %v2758 = vadd.f32 %v2685, %v2757
        %v2759 = vpop.f32.mrf.mxu0
        %2760 = vmatprep.mubr.bf16.mxu0 0
        %2761 = vmatmul.mubr.bf16.gmra.mxu0 %v1563
        %v2762 = vpop.f32.mrf.mxu0
        %v2763 = vadd.f32 %v2690, %v2762
        %v2764 = vpop.f32.mrf.mxu0
        %v2765 = vpop.f32.mrf.mxu0
        %v2766 = vadd.f32 %v2693, %v2765
        %v2767 = vpop.f32.mrf.mxu0
        %2768 = vmatprep.mubr.bf16.mxu0 0
        %2769 = vmatmul.mubr.bf16.gmra.mxu0 %v1692
        %v2770 = vpop.f32.mrf.mxu0
        %v2771 = vadd.f32 %v2698, %v2770
        %v2772 = vpop.f32.mrf.mxu0
        %v2773 = vpop.f32.mrf.mxu0
        %v2774 = vadd.f32 %v2701, %v2773
        %v2775 = vpop.f32.mrf.mxu0
        %2776 = vmatprep.mubr.bf16.mxu0 0
        %2777 = vmatmul.mubr.bf16.gmra.mxu0 %v1821
        %v2778 = vpop.f32.mrf.mxu0
        %v2779 = vadd.f32 %v2706, %v2778
        %v2780 = vpop.f32.mrf.mxu0
        %v2781 = vpop.f32.mrf.mxu0
        %v2782 = vadd.f32 %v2709, %v2781
        %v2783 = vpop.f32.mrf.mxu0
        %2784 = vmatprep.mubr.bf16.mxu0 0
        %2785 = vmatmul.mubr.bf16.gmra.mxu0 %v1950
        %v2786 = vpop.f32.mrf.mxu0
        %v2787 = vadd.f32 %v2714, %v2786
        %v2788 = vpop.f32.mrf.mxu0
        %v2789 = vpop.f32.mrf.mxu0
        %v2790 = vadd.f32 %v2717, %v2789
        %v2791 = vpop.f32.mrf.mxu0
        %2792 = vdwg.mxu0
        %v2793 = vmax.f32 %v2755, 0.0
        %v2794 = vmax.f32 %v2758, 0.0
        %v2795 = vmax.f32 %v2763, 0.0
        %v2796 = vmax.f32 %v2766, 0.0
        %v2797 = vmax.f32 %v2771, 0.0
        %v2798 = vmax.f32 %v2774, 0.0
        %v2799 = vmax.f32 %v2779, 0.0
        %v2800 = vmax.f32 %v2782, 0.0
        %v2801 = vmax.f32 %v2787, 0.0
        %v2802 = vmax.f32 %v2790, 0.0
        %v2803 = vpack.c.bf16 %v2794, %v2793
        %v2804 = vpack.c.bf16 %v2796, %v2795
        %v2805 = vpack.c.bf16 %v2798, %v2797
        %v2806 = vpack.c.bf16 %v2800, %v2799
        %v2807 = vpack.c.bf16 %v2802, %v2801
        %v2813 = vunpack.c.l.b16 %v2803
        %v2814 = vunpack.c.h.b16 %v2803
        %v2815 = vunpack.c.l.b16 %v2804
        %v2816 = vunpack.c.h.b16 %v2804
        %v2817 = vunpack.c.l.b16 %v2805
        %v2818 = vunpack.c.h.b16 %v2805
        %v2819 = vunpack.c.l.b16 %v2806
        %v2820 = vunpack.c.h.b16 %v2806
        %v2821 = vunpack.c.l.b16 %v2807
        %v2822 = vunpack.c.h.b16 %v2807
        %v2823 = vpack.c.b16 %v2813, %v2813
        %v2824 = vpack.c.b16 %v2814, %v2814
        %v2825 = vpack.c.b16 %v2815, %v2815
        %v2826 = vpack.c.b16 %v2816, %v2816
        %v2827 = vpack.c.b16 %v2817, %v2817
        %v2828 = vpack.c.b16 %v2818, %v2818
        %v2829 = vpack.c.b16 %v2819, %v2819
        %v2830 = vpack.c.b16 %v2820, %v2820
        %v2831 = vpack.c.b16 %v2821, %v2821
        %v2832 = vpack.c.b16 %v2822, %v2822
        %s2843 = smul.addr %s761, 4
        %s2844 = scalar_lea.vmem [#allocation3], %s2843
        %2845 = vst [vmem:[%s2844 + $0x4] sm:$0xf] %v2823
        %2846 = vst [vmem:[%s2844 + $0x8] sm:$0xf] %v2824
        %2847 = vst [vmem:[%s2844 + $0x14] sm:$0xf] %v2825
        %2848 = vst [vmem:[%s2844 + $0x18] sm:$0xf] %v2826
        %2849 = vst [vmem:[%s2844 + $0x24] sm:$0xf] %v2827
        %2850 = vst [vmem:[%s2844 + $0x28] sm:$0xf] %v2828
        %2851 = vst [vmem:[%s2844 + $0x34] sm:$0xf] %v2829
        %2852 = vst [vmem:[%s2844 + $0x38] sm:$0xf] %v2830
        %2853 = vst [vmem:[%s2844 + $0x44] sm:$0xf] %v2831
        %2854 = vst [vmem:[%s2844 + $0x48] sm:$0xf] %v2832
        %p2855 = scmp.eq.s32.totalorder %s28, 3
        // Predicated region
        $region57: #{tpu_custom_call.1} parent=39 // pred_check
          %p2856 = pneg %p2855
        $region58: #{tpu_custom_call.1} parent=39 // pred_check_branch
          %2858 = sbr.rel (%p2856) target = $region60
        $region59: #{tpu_custom_call.1} parent=39 // pred_region
          %s2859 = scalar_lea.vmem [#allocation3], 272
          %2860 = vst [vmem:[%s2859 + $0x4] sm:$0xf] 0
          %2861 = vst [vmem:[%s2859 + $0x8] sm:$0xf] 0
        $region60: #{tpu_custom_call.1} parent=39 // pred_fallthru
          _
        %s2862 = smul.addr %s737, 4
        %s2863 = scalar_lea.vmem [#allocation3], %s2862
        %v2864 = vld [vmem:[%s2863] sm:$0x8]
        %v2865 = vld [vmem:[%s2863 + $0x4] sm:$0xf]
        %v2866 = vld [vmem:[%s2863 + $0x8] sm:$0xf]
        %v2867 = vld [vmem:[%s2863 + $0x10] sm:$0x8]
        %v2868 = vld [vmem:[%s2863 + $0x14] sm:$0xf]
        %v2869 = vld [vmem:[%s2863 + $0x18] sm:$0xf]
        %v2870 = vld [vmem:[%s2863 + $0x20] sm:$0x8]
        %v2871 = vld [vmem:[%s2863 + $0x24] sm:$0xf]
        %v2872 = vld [vmem:[%s2863 + $0x28] sm:$0xf]
        %v2873 = vld [vmem:[%s2863 + $0x30] sm:$0x8]
        %v2874 = vld [vmem:[%s2863 + $0x34] sm:$0xf]
        %v2875 = vld [vmem:[%s2863 + $0x38] sm:$0xf]
        %v2876 = vld [vmem:[%s2863 + $0xc] sm:$0x1]
        %v2877 = vld [vmem:[%s2863 + $0x1c] sm:$0x1]
        %v2878 = vld [vmem:[%s2863 + $0x2c] sm:$0x1]
        %v2879 = vld [vmem:[%s2863 + $0x3c] sm:$0x1]
        %v2880 = vld [vmem:[%s2844] sm:$0x8]
        %v2881 = vld [vmem:[%s2844 + $0x4] sm:$0xf]
        %v2882 = vld [vmem:[%s2844 + $0x8] sm:$0xf]
        %v2883 = vld [vmem:[%s2844 + $0x10] sm:$0x8]
        %v2884 = vld [vmem:[%s2844 + $0x14] sm:$0xf]
        %v2885 = vld [vmem:[%s2844 + $0x18] sm:$0xf]
        %v2886 = vld [vmem:[%s2844 + $0x20] sm:$0x8]
        %v2887 = vld [vmem:[%s2844 + $0x24] sm:$0xf]
        %v2888 = vld [vmem:[%s2844 + $0x28] sm:$0xf]
        %v2889 = vld [vmem:[%s2844 + $0x30] sm:$0x8]
        %v2890 = vld [vmem:[%s2844 + $0x34] sm:$0xf]
        %v2891 = vld [vmem:[%s2844 + $0x38] sm:$0xf]
        %v2892 = vld [vmem:[%s2844 + $0xc] sm:$0x1]
        %v2893 = vld [vmem:[%s2844 + $0x1c] sm:$0x1]
        %v2894 = vld [vmem:[%s2844 + $0x2c] sm:$0x1]
        %v2895 = vld [vmem:[%s2844 + $0x3c] sm:$0x1]
        %s2896 = smul.addr %s785, 4
        %s2897 = scalar_lea.vmem [#allocation3], %s2896
        %v2898 = vld [vmem:[%s2897] sm:$0x8]
        %v2899 = vld [vmem:[%s2897 + $0x4] sm:$0xf]
        %v2900 = vld [vmem:[%s2897 + $0x8] sm:$0xf]
        %v2901 = vld [vmem:[%s2897 + $0x10] sm:$0x8]
        %v2902 = vld [vmem:[%s2897 + $0x14] sm:$0xf]
        %v2903 = vld [vmem:[%s2897 + $0x18] sm:$0xf]
        %v2904 = vld [vmem:[%s2897 + $0x20] sm:$0x8]
        %v2905 = vld [vmem:[%s2897 + $0x24] sm:$0xf]
        %v2906 = vld [vmem:[%s2897 + $0x28] sm:$0xf]
        %v2907 = vld [vmem:[%s2897 + $0x30] sm:$0x8]
        %v2908 = vld [vmem:[%s2897 + $0x34] sm:$0xf]
        %v2909 = vld [vmem:[%s2897 + $0x38] sm:$0xf]
        %v2910 = vld [vmem:[%s2897 + $0xc] sm:$0x1]
        %v2911 = vld [vmem:[%s2897 + $0x1c] sm:$0x1]
        %v2912 = vld [vmem:[%s2897 + $0x2c] sm:$0x1]
        %v2913 = vld [vmem:[%s2897 + $0x3c] sm:$0x1]
        %v2926 = vunpack.c.l.b16 %v2864
        %v2927 = vunpack.c.l.b16 %v2865
        %v2928 = vunpack.c.l.b16 %v2866
        %v2929 = vunpack.c.l.b16 %v2867
        %v2930 = vunpack.c.l.b16 %v2868
        %v2931 = vunpack.c.l.b16 %v2869
        %v2932 = vunpack.c.l.b16 %v2870
        %v2933 = vunpack.c.l.b16 %v2871
        %v2934 = vunpack.c.l.b16 %v2872
        %v2935 = vunpack.c.l.b16 %v2873
        %v2936 = vunpack.c.l.b16 %v2874
        %v2937 = vunpack.c.l.b16 %v2875
        %v2938 = vpack.c.b16 %v2927, %v2926
        %v2939 = vpack.c.b16 %v2928, %v2928
        %v2940 = vpack.c.b16 %v2930, %v2929
        %v2941 = vpack.c.b16 %v2931, %v2931
        %v2942 = vpack.c.b16 %v2933, %v2932
        %v2943 = vpack.c.b16 %v2934, %v2934
        %v2944 = vpack.c.b16 %v2936, %v2935
        %v2945 = vpack.c.b16 %v2937, %v2937
        %v2946 = vpack.c.b16 %v2928, %v2927
        %v2947 = vpack.c.b16 %v2931, %v2930
        %v2948 = vpack.c.b16 %v2934, %v2933
        %v2949 = vpack.c.b16 %v2937, %v2936
        %v2951 = vshrl.u32 %v2946, 16
        %v2953 = vrot.slane %v2951, 4
        %v2954 = vshll.u32 %v2946, 16
        %v2956 = vrot.slane %v2954, 5
        %v2957 = vor.u32 %v2953, %v2956
        %v2959 = vshrl.u32 %v2947, 16
        %v2961 = vrot.slane %v2959, 4
        %v2962 = vshll.u32 %v2947, 16
        %v2964 = vrot.slane %v2962, 5
        %v2965 = vor.u32 %v2961, %v2964
        %v2967 = vshrl.u32 %v2948, 16
        %v2969 = vrot.slane %v2967, 4
        %v2970 = vshll.u32 %v2948, 16
        %v2972 = vrot.slane %v2970, 5
        %v2973 = vor.u32 %v2969, %v2972
        %v2975 = vshrl.u32 %v2949, 16
        %v2977 = vrot.slane %v2975, 4
        %v2978 = vshll.u32 %v2949, 16
        %v2980 = vrot.slane %v2978, 5
        %v2981 = vor.u32 %v2977, %v2980
        %v2986 = vunpack.c.l.b16 %v2876
        %v2987 = vunpack.c.l.b16 %v2877
        %v2988 = vunpack.c.l.b16 %v2878
        %v2989 = vunpack.c.l.b16 %v2879
        %v2990 = vpack.c.b16 %v2986, %v2986
        %v2991 = vpack.c.b16 %v2987, %v2987
        %v2992 = vpack.c.b16 %v2988, %v2988
        %v2993 = vpack.c.b16 %v2989, %v2989
        %v2994 = vrot.slane %v2946, 5
        %v2995 = vrot.slane %v2990, 5
        %v2996 = vsel %vm908, %v2994, %v2995
        %v2997 = vrot.slane %v2947, 5
        %v2998 = vrot.slane %v2991, 5
        %v2999 = vsel %vm908, %v2997, %v2998
        %v3000 = vrot.slane %v2948, 5
        %v3001 = vrot.slane %v2992, 5
        %v3002 = vsel %vm908, %v3000, %v3001
        %v3003 = vrot.slane %v2949, 5
        %v3004 = vrot.slane %v2993, 5
        %v3005 = vsel %vm908, %v3003, %v3004
        %v3018 = vunpack.c.l.b16 %v2880
        %v3019 = vunpack.c.l.b16 %v2881
        %v3020 = vunpack.c.l.b16 %v2882
        %v3021 = vunpack.c.l.b16 %v2883
        %v3022 = vunpack.c.l.b16 %v2884
        %v3023 = vunpack.c.l.b16 %v2885
        %v3024 = vunpack.c.l.b16 %v2886
        %v3025 = vunpack.c.l.b16 %v2887
        %v3026 = vunpack.c.l.b16 %v2888
        %v3027 = vunpack.c.l.b16 %v2889
        %v3028 = vunpack.c.l.b16 %v2890
        %v3029 = vunpack.c.l.b16 %v2891
        %v3030 = vpack.c.b16 %v3019, %v3018
        %v3031 = vpack.c.b16 %v3020, %v3020
        %v3032 = vpack.c.b16 %v3022, %v3021
        %v3033 = vpack.c.b16 %v3023, %v3023
        %v3034 = vpack.c.b16 %v3025, %v3024
        %v3035 = vpack.c.b16 %v3026, %v3026
        %v3036 = vpack.c.b16 %v3028, %v3027
        %v3037 = vpack.c.b16 %v3029, %v3029
        %v3038 = vpack.c.b16 %v3020, %v3019
        %v3039 = vpack.c.b16 %v3023, %v3022
        %v3040 = vpack.c.b16 %v3026, %v3025
        %v3041 = vpack.c.b16 %v3029, %v3028
        %v3043 = vshrl.u32 %v3038, 16
        %v3045 = vrot.slane %v3043, 4
        %v3046 = vshll.u32 %v3038, 16
        %v3048 = vrot.slane %v3046, 5
        %v3049 = vor.u32 %v3045, %v3048
        %v3051 = vshrl.u32 %v3039, 16
        %v3053 = vrot.slane %v3051, 4
        %v3054 = vshll.u32 %v3039, 16
        %v3056 = vrot.slane %v3054, 5
        %v3057 = vor.u32 %v3053, %v3056
        %v3059 = vshrl.u32 %v3040, 16
        %v3061 = vrot.slane %v3059, 4
        %v3062 = vshll.u32 %v3040, 16
        %v3064 = vrot.slane %v3062, 5
        %v3065 = vor.u32 %v3061, %v3064
        %v3067 = vshrl.u32 %v3041, 16
        %v3069 = vrot.slane %v3067, 4
        %v3070 = vshll.u32 %v3041, 16
        %v3072 = vrot.slane %v3070, 5
        %v3073 = vor.u32 %v3069, %v3072
        %v3078 = vunpack.c.l.b16 %v2892
        %v3079 = vunpack.c.l.b16 %v2893
        %v3080 = vunpack.c.l.b16 %v2894
        %v3081 = vunpack.c.l.b16 %v2895
        %v3082 = vpack.c.b16 %v3078, %v3078
        %v3083 = vpack.c.b16 %v3079, %v3079
        %v3084 = vpack.c.b16 %v3080, %v3080
        %v3085 = vpack.c.b16 %v3081, %v3081
        %v3086 = vrot.slane %v3038, 5
        %v3087 = vrot.slane %v3082, 5
        %v3088 = vsel %vm908, %v3086, %v3087
        %v3089 = vrot.slane %v3039, 5
        %v3090 = vrot.slane %v3083, 5
        %v3091 = vsel %vm908, %v3089, %v3090
        %v3092 = vrot.slane %v3040, 5
        %v3093 = vrot.slane %v3084, 5
        %v3094 = vsel %vm908, %v3092, %v3093
        %v3095 = vrot.slane %v3041, 5
        %v3096 = vrot.slane %v3085, 5
        %v3097 = vsel %vm908, %v3095, %v3096
        %v3110 = vunpack.c.l.b16 %v2898
        %v3111 = vunpack.c.l.b16 %v2899
        %v3112 = vunpack.c.l.b16 %v2900
        %v3113 = vunpack.c.l.b16 %v2901
        %v3114 = vunpack.c.l.b16 %v2902
        %v3115 = vunpack.c.l.b16 %v2903
        %v3116 = vunpack.c.l.b16 %v2904
        %v3117 = vunpack.c.l.b16 %v2905
        %v3118 = vunpack.c.l.b16 %v2906
        %v3119 = vunpack.c.l.b16 %v2907
        %v3120 = vunpack.c.l.b16 %v2908
        %v3121 = vunpack.c.l.b16 %v2909
        %v3122 = vpack.c.b16 %v3111, %v3110
        %v3123 = vpack.c.b16 %v3112, %v3112
        %v3124 = vpack.c.b16 %v3114, %v3113
        %v3125 = vpack.c.b16 %v3115, %v3115
        %v3126 = vpack.c.b16 %v3117, %v3116
        %v3127 = vpack.c.b16 %v3118, %v3118
        %v3128 = vpack.c.b16 %v3120, %v3119
        %v3129 = vpack.c.b16 %v3121, %v3121
        %v3130 = vpack.c.b16 %v3112, %v3111
        %v3131 = vpack.c.b16 %v3115, %v3114
        %v3132 = vpack.c.b16 %v3118, %v3117
        %v3133 = vpack.c.b16 %v3121, %v3120
        %v3135 = vshrl.u32 %v3130, 16
        %v3137 = vrot.slane %v3135, 4
        %v3138 = vshll.u32 %v3130, 16
        %v3140 = vrot.slane %v3138, 5
        %v3141 = vor.u32 %v3137, %v3140
        %v3143 = vshrl.u32 %v3131, 16
        %v3145 = vrot.slane %v3143, 4
        %v3146 = vshll.u32 %v3131, 16
        %v3148 = vrot.slane %v3146, 5
        %v3149 = vor.u32 %v3145, %v3148
        %v3151 = vshrl.u32 %v3132, 16
        %v3153 = vrot.slane %v3151, 4
        %v3154 = vshll.u32 %v3132, 16
        %v3156 = vrot.slane %v3154, 5
        %v3157 = vor.u32 %v3153, %v3156
        %v3159 = vshrl.u32 %v3133, 16
        %v3161 = vrot.slane %v3159, 4
        %v3162 = vshll.u32 %v3133, 16
        %v3164 = vrot.slane %v3162, 5
        %v3165 = vor.u32 %v3161, %v3164
        %v3170 = vunpack.c.l.b16 %v2910
        %v3171 = vunpack.c.l.b16 %v2911
        %v3172 = vunpack.c.l.b16 %v2912
        %v3173 = vunpack.c.l.b16 %v2913
        %v3174 = vpack.c.b16 %v3170, %v3170
        %v3175 = vpack.c.b16 %v3171, %v3171
        %v3176 = vpack.c.b16 %v3172, %v3172
        %v3177 = vpack.c.b16 %v3173, %v3173
        %v3178 = vrot.slane %v3130, 5
        %v3179 = vrot.slane %v3174, 5
        %v3180 = vsel %vm908, %v3178, %v3179
        %v3181 = vrot.slane %v3131, 5
        %v3182 = vrot.slane %v3175, 5
        %v3183 = vsel %vm908, %v3181, %v3182
        %v3184 = vrot.slane %v3132, 5
        %v3185 = vrot.slane %v3176, 5
        %v3186 = vsel %vm908, %v3184, %v3185
        %v3187 = vrot.slane %v3133, 5
        %v3188 = vrot.slane %v3177, 5
        %v3189 = vsel %vm908, %v3187, %v3188
        %v3190 = vld [vmem:[#allocation9] sm:$0xf]
        %v3191 = vld [vmem:[#allocation9 + $0x4] sm:$0xf]
        %v3192 = vld [vmem:[#allocation9 + $0x8] sm:$0xf]
        %v3193 = vld [vmem:[#allocation9 + $0xc] sm:$0xf]
        %v3194 = vld [vmem:[#allocation9 + $0x10] sm:$0xf]
        %v3195 = vld [vmem:[#allocation9 + $0x14] sm:$0xf]
        %v3196 = vld [vmem:[#allocation9 + $0x18] sm:$0xf]
        %v3197 = vld [vmem:[#allocation9 + $0x1c] sm:$0xf]
        %v3198 = vld [vmem:[#allocation9 + $0x20] sm:$0xf]
        %v3199 = vld [vmem:[#allocation9 + $0x24] sm:$0xf]
        %v3200 = vld [vmem:[#allocation9 + $0x28] sm:$0xf]
        %v3201 = vld [vmem:[#allocation9 + $0x2c] sm:$0xf]
        %v3202 = vld [vmem:[#allocation9 + $0x30] sm:$0xf]
        %v3203 = vld [vmem:[#allocation9 + $0x34] sm:$0xf]
        %v3204 = vld [vmem:[#allocation9 + $0x38] sm:$0xf]
        %v3205 = vld [vmem:[#allocation9 + $0x3c] sm:$0xf]
        %v3206 = vld [vmem:[#allocation9 + $0x40] sm:$0xf]
        %v3207 = vld [vmem:[#allocation9 + $0x44] sm:$0xf]
        %v3208 = vld [vmem:[#allocation9 + $0x48] sm:$0xf]
        %v3209 = vld [vmem:[#allocation9 + $0x4c] sm:$0xf]
        %v3210 = vld [vmem:[#allocation9 + $0x50] sm:$0xf]
        %v3211 = vld [vmem:[#allocation9 + $0x54] sm:$0xf]
        %v3212 = vld [vmem:[#allocation9 + $0x58] sm:$0xf]
        %v3213 = vld [vmem:[#allocation9 + $0x5c] sm:$0xf]
        %v3214 = vld [vmem:[#allocation9 + $0x60] sm:$0xf]
        %v3215 = vld [vmem:[#allocation9 + $0x64] sm:$0xf]
        %v3216 = vld [vmem:[#allocation9 + $0x68] sm:$0xf]
        %v3217 = vld [vmem:[#allocation9 + $0x6c] sm:$0xf]
        %v3218 = vld [vmem:[#allocation9 + $0x70] sm:$0xf]
        %v3219 = vld [vmem:[#allocation9 + $0x74] sm:$0xf]
        %v3220 = vld [vmem:[#allocation9 + $0x78] sm:$0xf]
        %v3221 = vld [vmem:[#allocation9 + $0x7c] sm:$0xf]
        %v3222 = vld [vmem:[#allocation9 + $0x80] sm:$0xf]
        %v3223 = vld [vmem:[#allocation9 + $0x84] sm:$0xf]
        %v3224 = vld [vmem:[#allocation9 + $0x88] sm:$0xf]
        %v3225 = vld [vmem:[#allocation9 + $0x8c] sm:$0xf]
        %v3226 = vld [vmem:[#allocation9 + $0x90] sm:$0xf]
        %v3227 = vld [vmem:[#allocation9 + $0x94] sm:$0xf]
        %v3228 = vld [vmem:[#allocation9 + $0x98] sm:$0xf]
        %v3229 = vld [vmem:[#allocation9 + $0x9c] sm:$0xf]
        %v3230 = vld [vmem:[#allocation9 + $0xa0] sm:$0xf]
        %v3231 = vld [vmem:[#allocation9 + $0xa4] sm:$0xf]
        %v3232 = vld [vmem:[#allocation9 + $0xa8] sm:$0xf]
        %v3233 = vld [vmem:[#allocation9 + $0xac] sm:$0xf]
        %v3234 = vld [vmem:[#allocation9 + $0xb0] sm:$0xf]
        %v3235 = vld [vmem:[#allocation9 + $0xb4] sm:$0xf]
        %v3236 = vld [vmem:[#allocation9 + $0xb8] sm:$0xf]
        %v3237 = vld [vmem:[#allocation9 + $0xbc] sm:$0xf]
        %v3238 = vld [vmem:[#allocation9 + $0xc0] sm:$0xf]
        %v3239 = vld [vmem:[#allocation9 + $0xc4] sm:$0xf]
        %v3240 = vld [vmem:[#allocation9 + $0xc8] sm:$0xf]
        %v3241 = vld [vmem:[#allocation9 + $0xcc] sm:$0xf]
        %v3242 = vld [vmem:[#allocation9 + $0xd0] sm:$0xf]
        %v3243 = vld [vmem:[#allocation9 + $0xd4] sm:$0xf]
        %v3244 = vld [vmem:[#allocation9 + $0xd8] sm:$0xf]
        %v3245 = vld [vmem:[#allocation9 + $0xdc] sm:$0xf]
        %v3246 = vld [vmem:[#allocation9 + $0xe0] sm:$0xf]
        %v3247 = vld [vmem:[#allocation9 + $0xe4] sm:$0xf]
        %v3248 = vld [vmem:[#allocation9 + $0xe8] sm:$0xf]
        %v3249 = vld [vmem:[#allocation9 + $0xec] sm:$0xf]
        %v3250 = vld [vmem:[#allocation9 + $0xf0] sm:$0xf]
        %v3251 = vld [vmem:[#allocation9 + $0xf4] sm:$0xf]
        %v3252 = vld [vmem:[#allocation9 + $0xf8] sm:$0xf]
        %v3253 = vld [vmem:[#allocation9 + $0xfc] sm:$0xf]
        %v3254 = vld [vmem:[#allocation9 + $0x100] sm:$0xf]
        %v3255 = vld [vmem:[#allocation9 + $0x104] sm:$0xf]
        %v3256 = vld [vmem:[#allocation9 + $0x108] sm:$0xf]
        %v3257 = vld [vmem:[#allocation9 + $0x10c] sm:$0xf]
        %v3258 = vld [vmem:[#allocation9 + $0x110] sm:$0xf]
        %v3259 = vld [vmem:[#allocation9 + $0x114] sm:$0xf]
        %v3260 = vld [vmem:[#allocation9 + $0x118] sm:$0xf]
        %v3261 = vld [vmem:[#allocation9 + $0x11c] sm:$0xf]
        %v3262 = vld [vmem:[#allocation9 + $0x120] sm:$0xf]
        %v3263 = vld [vmem:[#allocation9 + $0x124] sm:$0xf]
        %v3264 = vld [vmem:[#allocation9 + $0x128] sm:$0xf]
        %v3265 = vld [vmem:[#allocation9 + $0x12c] sm:$0xf]
        %v3266 = vld [vmem:[#allocation9 + $0x130] sm:$0xf]
        %v3267 = vld [vmem:[#allocation9 + $0x134] sm:$0xf]
        %v3268 = vld [vmem:[#allocation9 + $0x138] sm:$0xf]
        %v3269 = vld [vmem:[#allocation9 + $0x13c] sm:$0xf]
        %v3270 = vld [vmem:[#allocation9 + $0x140] sm:$0xf]
        %v3271 = vld [vmem:[#allocation9 + $0x144] sm:$0xf]
        %v3272 = vld [vmem:[#allocation9 + $0x148] sm:$0xf]
        %v3273 = vld [vmem:[#allocation9 + $0x14c] sm:$0xf]
        %v3274 = vld [vmem:[#allocation9 + $0x150] sm:$0xf]
        %v3275 = vld [vmem:[#allocation9 + $0x154] sm:$0xf]
        %v3276 = vld [vmem:[#allocation9 + $0x158] sm:$0xf]
        %v3277 = vld [vmem:[#allocation9 + $0x15c] sm:$0xf]
        %v3278 = vld [vmem:[#allocation9 + $0x160] sm:$0xf]
        %v3279 = vld [vmem:[#allocation9 + $0x164] sm:$0xf]
        %v3280 = vld [vmem:[#allocation9 + $0x168] sm:$0xf]
        %v3281 = vld [vmem:[#allocation9 + $0x16c] sm:$0xf]
        %v3282 = vld [vmem:[#allocation9 + $0x170] sm:$0xf]
        %v3283 = vld [vmem:[#allocation9 + $0x174] sm:$0xf]
        %v3284 = vld [vmem:[#allocation9 + $0x178] sm:$0xf]
        %v3285 = vld [vmem:[#allocation9 + $0x17c] sm:$0xf]
        %v3286 = vld [vmem:[#allocation9 + $0x180] sm:$0xf]
        %v3287 = vld [vmem:[#allocation9 + $0x184] sm:$0xf]
        %v3288 = vld [vmem:[#allocation9 + $0x188] sm:$0xf]
        %v3289 = vld [vmem:[#allocation9 + $0x18c] sm:$0xf]
        %v3290 = vld [vmem:[#allocation9 + $0x190] sm:$0xf]
        %v3291 = vld [vmem:[#allocation9 + $0x194] sm:$0xf]
        %v3292 = vld [vmem:[#allocation9 + $0x198] sm:$0xf]
        %v3293 = vld [vmem:[#allocation9 + $0x19c] sm:$0xf]
        %v3294 = vld [vmem:[#allocation9 + $0x1a0] sm:$0xf]
        %v3295 = vld [vmem:[#allocation9 + $0x1a4] sm:$0xf]
        %v3296 = vld [vmem:[#allocation9 + $0x1a8] sm:$0xf]
        %v3297 = vld [vmem:[#allocation9 + $0x1ac] sm:$0xf]
        %v3298 = vld [vmem:[#allocation9 + $0x1b0] sm:$0xf]
        %v3299 = vld [vmem:[#allocation9 + $0x1b4] sm:$0xf]
        %v3300 = vld [vmem:[#allocation9 + $0x1b8] sm:$0xf]
        %v3301 = vld [vmem:[#allocation9 + $0x1bc] sm:$0xf]
        %v3302 = vld [vmem:[#allocation9 + $0x1c0] sm:$0xf]
        %v3303 = vld [vmem:[#allocation9 + $0x1c4] sm:$0xf]
        %v3304 = vld [vmem:[#allocation9 + $0x1c8] sm:$0xf]
        %v3305 = vld [vmem:[#allocation9 + $0x1cc] sm:$0xf]
        %v3306 = vld [vmem:[#allocation9 + $0x1d0] sm:$0xf]
        %v3307 = vld [vmem:[#allocation9 + $0x1d4] sm:$0xf]
        %v3308 = vld [vmem:[#allocation9 + $0x1d8] sm:$0xf]
        %v3309 = vld [vmem:[#allocation9 + $0x1dc] sm:$0xf]
        %v3310 = vld [vmem:[#allocation9 + $0x1e0] sm:$0xf]
        %v3311 = vld [vmem:[#allocation9 + $0x1e4] sm:$0xf]
        %v3312 = vld [vmem:[#allocation9 + $0x1e8] sm:$0xf]
        %v3313 = vld [vmem:[#allocation9 + $0x1ec] sm:$0xf]
        %v3314 = vld [vmem:[#allocation9 + $0x1f0] sm:$0xf]
        %v3315 = vld [vmem:[#allocation9 + $0x1f4] sm:$0xf]
        %v3316 = vld [vmem:[#allocation9 + $0x1f8] sm:$0xf]
        %v3317 = vld [vmem:[#allocation9 + $0x1fc] sm:$0xf]
        %v3318 = vld [vmem:[#allocation9 + $0x200] sm:$0xf]
        %v3319 = vld [vmem:[#allocation9 + $0x204] sm:$0xf]
        %v3320 = vld [vmem:[#allocation9 + $0x208] sm:$0xf]
        %v3321 = vld [vmem:[#allocation9 + $0x20c] sm:$0xf]
        %v3322 = vld [vmem:[#allocation9 + $0x210] sm:$0xf]
        %v3323 = vld [vmem:[#allocation9 + $0x214] sm:$0xf]
        %v3324 = vld [vmem:[#allocation9 + $0x218] sm:$0xf]
        %v3325 = vld [vmem:[#allocation9 + $0x21c] sm:$0xf]
        %v3326 = vld [vmem:[#allocation9 + $0x220] sm:$0xf]
        %v3327 = vld [vmem:[#allocation9 + $0x224] sm:$0xf]
        %v3328 = vld [vmem:[#allocation9 + $0x228] sm:$0xf]
        %v3329 = vld [vmem:[#allocation9 + $0x22c] sm:$0xf]
        %v3330 = vld [vmem:[#allocation9 + $0x230] sm:$0xf]
        %v3331 = vld [vmem:[#allocation9 + $0x234] sm:$0xf]
        %v3332 = vld [vmem:[#allocation9 + $0x238] sm:$0xf]
        %v3333 = vld [vmem:[#allocation9 + $0x23c] sm:$0xf]
        %s3334 = smul.u32 %s288, 16
        %s3335 = scalar_lea.vmem %s251, %s3334 [#allocation4]
        %v3336 = vld [vmem:[%s3335] sm:$0xff]
        %v3337 = vld [vmem:[%s3335 + $0x8] sm:$0xff]
        %v3338 = vld [vmem:[%s3335 + $0x10] sm:$0xff]
        %v3339 = vld [vmem:[%s3335 + $0x18] sm:$0xff]
        %v3340 = vld [vmem:[%s3335 + $0x20] sm:$0xff]
        %v3341 = vld [vmem:[%s3335 + $0x28] sm:$0xff]
        %v3342 = vld [vmem:[%s3335 + $0x30] sm:$0xff]
        %v3343 = vld [vmem:[%s3335 + $0x38] sm:$0xff]
        %v3344 = vld [vmem:[%s4] sm:$0x1]
        %v3346 = vlaneseq
        %v3347 = vshrl.u32 %v3346, 7
        %v3348 = vsub.s32 0, %v3347
        %v3349 = vrot.slane %v3344, %v3348
        %v3352 = vshrl.u32 %v2938, 16
        %v3354 = vrot.slane %v3352, 3
        %v3355 = vshll.u32 %v2938, 16
        %v3357 = vrot.slane %v3355, 4
        %v3358 = vor.u32 %v3354, %v3357
        %v3360 = vshrl.u32 %v2939, 16
        %v3362 = vrot.slane %v3360, 3
        %v3363 = vshll.u32 %v2939, 16
        %v3365 = vrot.slane %v3363, 4
        %v3366 = vor.u32 %v3362, %v3365
        %v3367 = vsel %vm1305, %v3358, %v3366
        %v3369 = vshrl.u32 %v2957, 16
        %v3371 = vrot.slane %v3369, 3
        %v3372 = vshll.u32 %v2957, 16
        %v3374 = vrot.slane %v3372, 4
        %v3375 = vor.u32 %v3371, %v3374
        %v3376 = vsel %vm1305, %v3375, %v3375
        %v3378 = vshrl.u32 %v2994, 16
        %v3380 = vrot.slane %v3378, 3
        %v3381 = vshll.u32 %v2994, 16
        %v3383 = vrot.slane %v3381, 4
        %v3384 = vor.u32 %v3380, %v3383
        %v3386 = vshrl.u32 %v2996, 16
        %v3388 = vrot.slane %v3386, 3
        %v3389 = vshll.u32 %v2996, 16
        %v3391 = vrot.slane %v3389, 4
        %v3392 = vor.u32 %v3388, %v3391
        %v3393 = vsel %vm1305, %v3384, %v3392
        %v3395 = vshrl.u32 %v3030, 16
        %v3397 = vrot.slane %v3395, 3
        %v3398 = vshll.u32 %v3030, 16
        %v3400 = vrot.slane %v3398, 4
        %v3401 = vor.u32 %v3397, %v3400
        %v3403 = vshrl.u32 %v3031, 16
        %v3405 = vrot.slane %v3403, 3
        %v3406 = vshll.u32 %v3031, 16
        %v3408 = vrot.slane %v3406, 4
        %v3409 = vor.u32 %v3405, %v3408
        %v3410 = vsel %vm1305, %v3401, %v3409
        %v3412 = vshrl.u32 %v3049, 16
        %v3414 = vrot.slane %v3412, 3
        %v3415 = vshll.u32 %v3049, 16
        %v3417 = vrot.slane %v3415, 4
        %v3418 = vor.u32 %v3414, %v3417
        %v3419 = vsel %vm1305, %v3418, %v3418
        %v3421 = vshrl.u32 %v3086, 16
        %v3423 = vrot.slane %v3421, 3
        %v3424 = vshll.u32 %v3086, 16
        %v3426 = vrot.slane %v3424, 4
        %v3427 = vor.u32 %v3423, %v3426
        %v3429 = vshrl.u32 %v3088, 16
        %v3431 = vrot.slane %v3429, 3
        %v3432 = vshll.u32 %v3088, 16
        %v3434 = vrot.slane %v3432, 4
        %v3435 = vor.u32 %v3431, %v3434
        %v3436 = vsel %vm1305, %v3427, %v3435
        %v3438 = vshrl.u32 %v3122, 16
        %v3440 = vrot.slane %v3438, 3
        %v3441 = vshll.u32 %v3122, 16
        %v3443 = vrot.slane %v3441, 4
        %v3444 = vor.u32 %v3440, %v3443
        %v3446 = vshrl.u32 %v3123, 16
        %v3448 = vrot.slane %v3446, 3
        %v3449 = vshll.u32 %v3123, 16
        %v3451 = vrot.slane %v3449, 4
        %v3452 = vor.u32 %v3448, %v3451
        %v3453 = vsel %vm1305, %v3444, %v3452
        %v3455 = vshrl.u32 %v3141, 16
        %v3457 = vrot.slane %v3455, 3
        %v3458 = vshll.u32 %v3141, 16
        %v3460 = vrot.slane %v3458, 4
        %v3461 = vor.u32 %v3457, %v3460
        %v3462 = vsel %vm1305, %v3461, %v3461
        %v3464 = vshrl.u32 %v3178, 16
        %v3466 = vrot.slane %v3464, 3
        %v3467 = vshll.u32 %v3178, 16
        %v3469 = vrot.slane %v3467, 4
        %v3470 = vor.u32 %v3466, %v3469
        %v3472 = vshrl.u32 %v3180, 16
        %v3474 = vrot.slane %v3472, 3
        %v3475 = vshll.u32 %v3180, 16
        %v3477 = vrot.slane %v3475, 4
        %v3478 = vor.u32 %v3474, %v3477
        %v3479 = vsel %vm1305, %v3470, %v3478
        %v3481 = vshrl.u32 %v2940, 16
        %v3483 = vrot.slane %v3481, 3
        %v3484 = vshll.u32 %v2940, 16
        %v3486 = vrot.slane %v3484, 4
        %v3487 = vor.u32 %v3483, %v3486
        %v3489 = vshrl.u32 %v2941, 16
        %v3491 = vrot.slane %v3489, 3
        %v3492 = vshll.u32 %v2941, 16
        %v3494 = vrot.slane %v3492, 4
        %v3495 = vor.u32 %v3491, %v3494
        %v3496 = vsel %vm1305, %v3487, %v3495
        %v3498 = vshrl.u32 %v2965, 16
        %v3500 = vrot.slane %v3498, 3
        %v3501 = vshll.u32 %v2965, 16
        %v3503 = vrot.slane %v3501, 4
        %v3504 = vor.u32 %v3500, %v3503
        %v3505 = vsel %vm1305, %v3504, %v3504
        %v3507 = vshrl.u32 %v2997, 16
        %v3509 = vrot.slane %v3507, 3
        %v3510 = vshll.u32 %v2997, 16
        %v3512 = vrot.slane %v3510, 4
        %v3513 = vor.u32 %v3509, %v3512
        %v3515 = vshrl.u32 %v2999, 16
        %v3517 = vrot.slane %v3515, 3
        %v3518 = vshll.u32 %v2999, 16
        %v3520 = vrot.slane %v3518, 4
        %v3521 = vor.u32 %v3517, %v3520
        %v3522 = vsel %vm1305, %v3513, %v3521
        %v3524 = vshrl.u32 %v3032, 16
        %v3526 = vrot.slane %v3524, 3
        %v3527 = vshll.u32 %v3032, 16
        %v3529 = vrot.slane %v3527, 4
        %v3530 = vor.u32 %v3526, %v3529
        %v3532 = vshrl.u32 %v3033, 16
        %v3534 = vrot.slane %v3532, 3
        %v3535 = vshll.u32 %v3033, 16
        %v3537 = vrot.slane %v3535, 4
        %v3538 = vor.u32 %v3534, %v3537
        %v3539 = vsel %vm1305, %v3530, %v3538
        %v3541 = vshrl.u32 %v3057, 16
        %v3543 = vrot.slane %v3541, 3
        %v3544 = vshll.u32 %v3057, 16
        %v3546 = vrot.slane %v3544, 4
        %v3547 = vor.u32 %v3543, %v3546
        %v3548 = vsel %vm1305, %v3547, %v3547
        %v3550 = vshrl.u32 %v3089, 16
        %v3552 = vrot.slane %v3550, 3
        %v3553 = vshll.u32 %v3089, 16
        %v3555 = vrot.slane %v3553, 4
        %v3556 = vor.u32 %v3552, %v3555
        %v3558 = vshrl.u32 %v3091, 16
        %v3560 = vrot.slane %v3558, 3
        %v3561 = vshll.u32 %v3091, 16
        %v3563 = vrot.slane %v3561, 4
        %v3564 = vor.u32 %v3560, %v3563
        %v3565 = vsel %vm1305, %v3556, %v3564
        %v3567 = vshrl.u32 %v3124, 16
        %v3569 = vrot.slane %v3567, 3
        %v3570 = vshll.u32 %v3124, 16
        %v3572 = vrot.slane %v3570, 4
        %v3573 = vor.u32 %v3569, %v3572
        %v3575 = vshrl.u32 %v3125, 16
        %v3577 = vrot.slane %v3575, 3
        %v3578 = vshll.u32 %v3125, 16
        %v3580 = vrot.slane %v3578, 4
        %v3581 = vor.u32 %v3577, %v3580
        %v3582 = vsel %vm1305, %v3573, %v3581
        %v3584 = vshrl.u32 %v3149, 16
        %v3586 = vrot.slane %v3584, 3
        %v3587 = vshll.u32 %v3149, 16
        %v3589 = vrot.slane %v3587, 4
        %v3590 = vor.u32 %v3586, %v3589
        %v3591 = vsel %vm1305, %v3590, %v3590
        %v3593 = vshrl.u32 %v3181, 16
        %v3595 = vrot.slane %v3593, 3
        %v3596 = vshll.u32 %v3181, 16
        %v3598 = vrot.slane %v3596, 4
        %v3599 = vor.u32 %v3595, %v3598
        %v3601 = vshrl.u32 %v3183, 16
        %v3603 = vrot.slane %v3601, 3
        %v3604 = vshll.u32 %v3183, 16
        %v3606 = vrot.slane %v3604, 4
        %v3607 = vor.u32 %v3603, %v3606
        %v3608 = vsel %vm1305, %v3599, %v3607
        %v3610 = vshrl.u32 %v2942, 16
        %v3612 = vrot.slane %v3610, 3
        %v3613 = vshll.u32 %v2942, 16
        %v3615 = vrot.slane %v3613, 4
        %v3616 = vor.u32 %v3612, %v3615
        %v3618 = vshrl.u32 %v2943, 16
        %v3620 = vrot.slane %v3618, 3
        %v3621 = vshll.u32 %v2943, 16
        %v3623 = vrot.slane %v3621, 4
        %v3624 = vor.u32 %v3620, %v3623
        %v3625 = vsel %vm1305, %v3616, %v3624
        %v3627 = vshrl.u32 %v2973, 16
        %v3629 = vrot.slane %v3627, 3
        %v3630 = vshll.u32 %v2973, 16
        %v3632 = vrot.slane %v3630, 4
        %v3633 = vor.u32 %v3629, %v3632
        %v3634 = vsel %vm1305, %v3633, %v3633
        %v3636 = vshrl.u32 %v3000, 16
        %v3638 = vrot.slane %v3636, 3
        %v3639 = vshll.u32 %v3000, 16
        %v3641 = vrot.slane %v3639, 4
        %v3642 = vor.u32 %v3638, %v3641
        %v3644 = vshrl.u32 %v3002, 16
        %v3646 = vrot.slane %v3644, 3
        %v3647 = vshll.u32 %v3002, 16
        %v3649 = vrot.slane %v3647, 4
        %v3650 = vor.u32 %v3646, %v3649
        %v3651 = vsel %vm1305, %v3642, %v3650
        %v3653 = vshrl.u32 %v3034, 16
        %v3655 = vrot.slane %v3653, 3
        %v3656 = vshll.u32 %v3034, 16
        %v3658 = vrot.slane %v3656, 4
        %v3659 = vor.u32 %v3655, %v3658
        %v3661 = vshrl.u32 %v3035, 16
        %v3663 = vrot.slane %v3661, 3
        %v3664 = vshll.u32 %v3035, 16
        %v3666 = vrot.slane %v3664, 4
        %v3667 = vor.u32 %v3663, %v3666
        %v3668 = vsel %vm1305, %v3659, %v3667
        %v3670 = vshrl.u32 %v3065, 16
        %v3672 = vrot.slane %v3670, 3
        %v3673 = vshll.u32 %v3065, 16
        %v3675 = vrot.slane %v3673, 4
        %v3676 = vor.u32 %v3672, %v3675
        %v3677 = vsel %vm1305, %v3676, %v3676
        %v3679 = vshrl.u32 %v3092, 16
        %v3681 = vrot.slane %v3679, 3
        %v3682 = vshll.u32 %v3092, 16
        %v3684 = vrot.slane %v3682, 4
        %v3685 = vor.u32 %v3681, %v3684
        %v3687 = vshrl.u32 %v3094, 16
        %v3689 = vrot.slane %v3687, 3
        %v3690 = vshll.u32 %v3094, 16
        %v3692 = vrot.slane %v3690, 4
        %v3693 = vor.u32 %v3689, %v3692
        %v3694 = vsel %vm1305, %v3685, %v3693
        %v3696 = vshrl.u32 %v3126, 16
        %v3698 = vrot.slane %v3696, 3
        %v3699 = vshll.u32 %v3126, 16
        %v3701 = vrot.slane %v3699, 4
        %v3702 = vor.u32 %v3698, %v3701
        %v3704 = vshrl.u32 %v3127, 16
        %v3706 = vrot.slane %v3704, 3
        %v3707 = vshll.u32 %v3127, 16
        %v3709 = vrot.slane %v3707, 4
        %v3710 = vor.u32 %v3706, %v3709
        %v3711 = vsel %vm1305, %v3702, %v3710
        %v3713 = vshrl.u32 %v3157, 16
        %v3715 = vrot.slane %v3713, 3
        %v3716 = vshll.u32 %v3157, 16
        %v3718 = vrot.slane %v3716, 4
        %v3719 = vor.u32 %v3715, %v3718
        %v3720 = vsel %vm1305, %v3719, %v3719
        %v3722 = vshrl.u32 %v3184, 16
        %v3724 = vrot.slane %v3722, 3
        %v3725 = vshll.u32 %v3184, 16
        %v3727 = vrot.slane %v3725, 4
        %v3728 = vor.u32 %v3724, %v3727
        %v3730 = vshrl.u32 %v3186, 16
        %v3732 = vrot.slane %v3730, 3
        %v3733 = vshll.u32 %v3186, 16
        %v3735 = vrot.slane %v3733, 4
        %v3736 = vor.u32 %v3732, %v3735
        %v3737 = vsel %vm1305, %v3728, %v3736
        %v3739 = vshrl.u32 %v2944, 16
        %v3741 = vrot.slane %v3739, 3
        %v3742 = vshll.u32 %v2944, 16
        %v3744 = vrot.slane %v3742, 4
        %v3745 = vor.u32 %v3741, %v3744
        %v3747 = vshrl.u32 %v2945, 16
        %v3749 = vrot.slane %v3747, 3
        %v3750 = vshll.u32 %v2945, 16
        %v3752 = vrot.slane %v3750, 4
        %v3753 = vor.u32 %v3749, %v3752
        %v3754 = vsel %vm1305, %v3745, %v3753
        %v3756 = vshrl.u32 %v2981, 16
        %v3758 = vrot.slane %v3756, 3
        %v3759 = vshll.u32 %v2981, 16
        %v3761 = vrot.slane %v3759, 4
        %v3762 = vor.u32 %v3758, %v3761
        %v3763 = vsel %vm1305, %v3762, %v3762
        %v3765 = vshrl.u32 %v3003, 16
        %v3767 = vrot.slane %v3765, 3
        %v3768 = vshll.u32 %v3003, 16
        %v3770 = vrot.slane %v3768, 4
        %v3771 = vor.u32 %v3767, %v3770
        %v3773 = vshrl.u32 %v3005, 16
        %v3775 = vrot.slane %v3773, 3
        %v3776 = vshll.u32 %v3005, 16
        %v3778 = vrot.slane %v3776, 4
        %v3779 = vor.u32 %v3775, %v3778
        %v3780 = vsel %vm1305, %v3771, %v3779
        %v3782 = vshrl.u32 %v3036, 16
        %v3784 = vrot.slane %v3782, 3
        %v3785 = vshll.u32 %v3036, 16
        %v3787 = vrot.slane %v3785, 4
        %v3788 = vor.u32 %v3784, %v3787
        %v3790 = vshrl.u32 %v3037, 16
        %v3792 = vrot.slane %v3790, 3
        %v3793 = vshll.u32 %v3037, 16
        %v3795 = vrot.slane %v3793, 4
        %v3796 = vor.u32 %v3792, %v3795
        %v3797 = vsel %vm1305, %v3788, %v3796
        %v3799 = vshrl.u32 %v3073, 16
        %v3801 = vrot.slane %v3799, 3
        %v3802 = vshll.u32 %v3073, 16
        %v3804 = vrot.slane %v3802, 4
        %v3805 = vor.u32 %v3801, %v3804
        %v3806 = vsel %vm1305, %v3805, %v3805
        %v3808 = vshrl.u32 %v3095, 16
        %v3810 = vrot.slane %v3808, 3
        %v3811 = vshll.u32 %v3095, 16
        %v3813 = vrot.slane %v3811, 4
        %v3814 = vor.u32 %v3810, %v3813
        %v3816 = vshrl.u32 %v3097, 16
        %v3818 = vrot.slane %v3816, 3
        %v3819 = vshll.u32 %v3097, 16
        %v3821 = vrot.slane %v3819, 4
        %v3822 = vor.u32 %v3818, %v3821
        %v3823 = vsel %vm1305, %v3814, %v3822
        %v3825 = vshrl.u32 %v3128, 16
        %v3827 = vrot.slane %v3825, 3
        %v3828 = vshll.u32 %v3128, 16
        %v3830 = vrot.slane %v3828, 4
        %v3831 = vor.u32 %v3827, %v3830
        %v3833 = vshrl.u32 %v3129, 16
        %v3835 = vrot.slane %v3833, 3
        %v3836 = vshll.u32 %v3129, 16
        %v3838 = vrot.slane %v3836, 4
        %v3839 = vor.u32 %v3835, %v3838
        %v3840 = vsel %vm1305, %v3831, %v3839
        %v3842 = vshrl.u32 %v3165, 16
        %v3844 = vrot.slane %v3842, 3
        %v3845 = vshll.u32 %v3165, 16
        %v3847 = vrot.slane %v3845, 4
        %v3848 = vor.u32 %v3844, %v3847
        %v3849 = vsel %vm1305, %v3848, %v3848
        %v3851 = vshrl.u32 %v3187, 16
        %v3853 = vrot.slane %v3851, 3
        %v3854 = vshll.u32 %v3187, 16
        %v3856 = vrot.slane %v3854, 4
        %v3857 = vor.u32 %v3853, %v3856
        %v3859 = vshrl.u32 %v3189, 16
        %v3861 = vrot.slane %v3859, 3
        %v3862 = vshll.u32 %v3189, 16
        %v3864 = vrot.slane %v3862, 4
        %v3865 = vor.u32 %v3861, %v3864
        %v3866 = vsel %vm1305, %v3857, %v3865
        %v4047 = vunpack.c.l.b16 %v3190
        %v4048 = vunpack.c.l.b16 %v3191
        %v4049 = vunpack.c.l.b16 %v3192
        %v4050 = vunpack.c.l.b16 %v3193
        %v4051 = vunpack.c.l.b16 %v3194
        %v4052 = vunpack.c.l.b16 %v3195
        %v4053 = vunpack.c.l.b16 %v3196
        %v4054 = vunpack.c.l.b16 %v3197
        %v4055 = vunpack.c.l.b16 %v3198
        %v4056 = vunpack.c.l.b16 %v3199
        %v4057 = vunpack.c.l.b16 %v3200
        %v4058 = vunpack.c.l.b16 %v3201
        %v4059 = vunpack.c.l.b16 %v3202
        %v4060 = vunpack.c.l.b16 %v3203
        %v4061 = vunpack.c.l.b16 %v3204
        %v4062 = vunpack.c.l.b16 %v3205
        %v4063 = vunpack.c.l.b16 %v3206
        %v4064 = vunpack.c.l.b16 %v3207
        %v4065 = vunpack.c.l.b16 %v3208
        %v4066 = vunpack.c.l.b16 %v3209
        %v4067 = vunpack.c.l.b16 %v3210
        %v4068 = vunpack.c.l.b16 %v3211
        %v4069 = vunpack.c.l.b16 %v3212
        %v4070 = vunpack.c.l.b16 %v3213
        %v4071 = vunpack.c.l.b16 %v3214
        %v4072 = vunpack.c.l.b16 %v3215
        %v4073 = vunpack.c.l.b16 %v3216
        %v4074 = vunpack.c.l.b16 %v3217
        %v4075 = vunpack.c.l.b16 %v3218
        %v4076 = vunpack.c.l.b16 %v3219
        %v4077 = vunpack.c.l.b16 %v3220
        %v4078 = vunpack.c.l.b16 %v3221
        %v4079 = vunpack.c.l.b16 %v3222
        %v4080 = vunpack.c.l.b16 %v3223
        %v4081 = vunpack.c.l.b16 %v3224
        %v4082 = vunpack.c.l.b16 %v3225
        %v4083 = vunpack.c.l.b16 %v3226
        %v4084 = vunpack.c.l.b16 %v3227
        %v4085 = vunpack.c.l.b16 %v3228
        %v4086 = vunpack.c.l.b16 %v3229
        %v4087 = vunpack.c.l.b16 %v3230
        %v4088 = vunpack.c.l.b16 %v3231
        %v4089 = vunpack.c.l.b16 %v3232
        %v4090 = vunpack.c.l.b16 %v3233
        %v4091 = vunpack.c.l.b16 %v3234
        %v4092 = vunpack.c.l.b16 %v3235
        %v4093 = vunpack.c.l.b16 %v3236
        %v4094 = vunpack.c.l.b16 %v3237
        %v4095 = vunpack.c.l.b16 %v3238
        %v4096 = vunpack.c.l.b16 %v3239
        %v4097 = vunpack.c.l.b16 %v3240
        %v4098 = vunpack.c.l.b16 %v3241
        %v4099 = vunpack.c.l.b16 %v3242
        %v4100 = vunpack.c.l.b16 %v3243
        %v4101 = vunpack.c.l.b16 %v3244
        %v4102 = vunpack.c.l.b16 %v3245
        %v4103 = vunpack.c.l.b16 %v3246
        %v4104 = vunpack.c.l.b16 %v3247
        %v4105 = vunpack.c.l.b16 %v3248
        %v4106 = vunpack.c.l.b16 %v3249
        %v4107 = vunpack.c.l.b16 %v3250
        %v4108 = vunpack.c.l.b16 %v3251
        %v4109 = vunpack.c.l.b16 %v3252
        %v4110 = vunpack.c.l.b16 %v3253
        %v4111 = vunpack.c.l.b16 %v3254
        %v4112 = vunpack.c.l.b16 %v3255
        %v4113 = vunpack.c.l.b16 %v3256
        %v4114 = vunpack.c.l.b16 %v3257
        %v4115 = vunpack.c.l.b16 %v3258
        %v4116 = vunpack.c.l.b16 %v3259
        %v4117 = vunpack.c.l.b16 %v3260
        %v4118 = vunpack.c.l.b16 %v3261
        %v4119 = vunpack.c.l.b16 %v3262
        %v4120 = vunpack.c.l.b16 %v3263
        %v4121 = vunpack.c.l.b16 %v3264
        %v4122 = vunpack.c.l.b16 %v3265
        %v4123 = vunpack.c.l.b16 %v3266
        %v4124 = vunpack.c.l.b16 %v3267
        %v4125 = vunpack.c.l.b16 %v3268
        %v4126 = vunpack.c.l.b16 %v3269
        %v4127 = vunpack.c.l.b16 %v3270
        %v4128 = vunpack.c.l.b16 %v3271
        %v4129 = vunpack.c.l.b16 %v3272
        %v4130 = vunpack.c.l.b16 %v3273
        %v4131 = vunpack.c.l.b16 %v3274
        %v4132 = vunpack.c.l.b16 %v3275
        %v4133 = vunpack.c.l.b16 %v3276
        %v4134 = vunpack.c.l.b16 %v3277
        %v4135 = vunpack.c.l.b16 %v3278
        %v4136 = vunpack.c.l.b16 %v3279
        %v4137 = vunpack.c.l.b16 %v3280
        %v4138 = vunpack.c.l.b16 %v3281
        %v4139 = vunpack.c.l.b16 %v3282
        %v4140 = vunpack.c.l.b16 %v3283
        %v4141 = vunpack.c.l.b16 %v3284
        %v4142 = vunpack.c.l.b16 %v3285
        %v4143 = vunpack.c.l.b16 %v3286
        %v4144 = vunpack.c.l.b16 %v3287
        %v4145 = vunpack.c.l.b16 %v3288
        %v4146 = vunpack.c.l.b16 %v3289
        %v4147 = vunpack.c.l.b16 %v3290
        %v4148 = vunpack.c.l.b16 %v3291
        %v4149 = vunpack.c.l.b16 %v3292
        %v4150 = vunpack.c.l.b16 %v3293
        %v4151 = vunpack.c.l.b16 %v3294
        %v4152 = vunpack.c.l.b16 %v3295
        %v4153 = vunpack.c.l.b16 %v3296
        %v4154 = vunpack.c.l.b16 %v3297
        %v4155 = vunpack.c.l.b16 %v3298
        %v4156 = vunpack.c.l.b16 %v3299
        %v4157 = vunpack.c.l.b16 %v3300
        %v4158 = vunpack.c.l.b16 %v3301
        %v4159 = vunpack.c.l.b16 %v3302
        %v4160 = vunpack.c.l.b16 %v3303
        %v4161 = vunpack.c.l.b16 %v3304
        %v4162 = vunpack.c.l.b16 %v3305
        %v4163 = vunpack.c.l.b16 %v3306
        %v4164 = vunpack.c.l.b16 %v3307
        %v4165 = vunpack.c.l.b16 %v3308
        %v4166 = vunpack.c.l.b16 %v3309
        %v4167 = vunpack.c.l.b16 %v3310
        %v4168 = vunpack.c.l.b16 %v3311
        %v4169 = vunpack.c.l.b16 %v3312
        %v4170 = vunpack.c.l.b16 %v3313
        %v4171 = vunpack.c.l.b16 %v3314
        %v4172 = vunpack.c.l.b16 %v3315
        %v4173 = vunpack.c.l.b16 %v3316
        %v4174 = vunpack.c.l.b16 %v3317
        %v4175 = vunpack.c.l.b16 %v3318
        %v4176 = vunpack.c.l.b16 %v3319
        %v4177 = vunpack.c.l.b16 %v3320
        %v4178 = vunpack.c.l.b16 %v3321
        %v4179 = vunpack.c.l.b16 %v3322
        %v4180 = vunpack.c.l.b16 %v3323
        %v4181 = vunpack.c.l.b16 %v3324
        %v4182 = vunpack.c.l.b16 %v3325
        %v4183 = vunpack.c.l.b16 %v3326
        %v4184 = vunpack.c.l.b16 %v3327
        %v4185 = vunpack.c.l.b16 %v3328
        %v4186 = vunpack.c.l.b16 %v3329
        %v4187 = vunpack.c.l.b16 %v3330
        %v4188 = vunpack.c.l.b16 %v3331
        %v4189 = vunpack.c.l.b16 %v3332
        %v4190 = vunpack.c.l.b16 %v3333
        %v4191 = vpack.c.b16 %v4048, %v4047
        %v4192 = vpack.c.b16 %v4050, %v4049
        %v4193 = vpack.c.b16 %v4052, %v4051
        %v4194 = vpack.c.b16 %v4054, %v4053
        %v4195 = vpack.c.b16 %v4056, %v4055
        %v4196 = vpack.c.b16 %v4058, %v4057
        %v4197 = vpack.c.b16 %v4060, %v4059
        %v4198 = vpack.c.b16 %v4062, %v4061
        %v4199 = vpack.c.b16 %v4064, %v4063
        %v4200 = vpack.c.b16 %v4066, %v4065
        %v4201 = vpack.c.b16 %v4068, %v4067
        %v4202 = vpack.c.b16 %v4070, %v4069
        %v4203 = vpack.c.b16 %v4072, %v4071
        %v4204 = vpack.c.b16 %v4074, %v4073
        %v4205 = vpack.c.b16 %v4076, %v4075
        %v4206 = vpack.c.b16 %v4078, %v4077
        %v4207 = vpack.c.b16 %v4080, %v4079
        %v4208 = vpack.c.b16 %v4082, %v4081
        %v4209 = vpack.c.b16 %v4084, %v4083
        %v4210 = vpack.c.b16 %v4086, %v4085
        %v4211 = vpack.c.b16 %v4088, %v4087
        %v4212 = vpack.c.b16 %v4090, %v4089
        %v4213 = vpack.c.b16 %v4092, %v4091
        %v4214 = vpack.c.b16 %v4094, %v4093
        %v4215 = vpack.c.b16 %v4096, %v4095
        %v4216 = vpack.c.b16 %v4098, %v4097
        %v4217 = vpack.c.b16 %v4100, %v4099
        %v4218 = vpack.c.b16 %v4102, %v4101
        %v4219 = vpack.c.b16 %v4104, %v4103
        %v4220 = vpack.c.b16 %v4106, %v4105
        %v4221 = vpack.c.b16 %v4108, %v4107
        %v4222 = vpack.c.b16 %v4110, %v4109
        %v4223 = vpack.c.b16 %v4112, %v4111
        %v4224 = vpack.c.b16 %v4114, %v4113
        %v4225 = vpack.c.b16 %v4116, %v4115
        %v4226 = vpack.c.b16 %v4118, %v4117
        %v4227 = vpack.c.b16 %v4120, %v4119
        %v4228 = vpack.c.b16 %v4122, %v4121
        %v4229 = vpack.c.b16 %v4124, %v4123
        %v4230 = vpack.c.b16 %v4126, %v4125
        %v4231 = vpack.c.b16 %v4128, %v4127
        %v4232 = vpack.c.b16 %v4130, %v4129
        %v4233 = vpack.c.b16 %v4132, %v4131
        %v4234 = vpack.c.b16 %v4134, %v4133
        %v4235 = vpack.c.b16 %v4136, %v4135
        %v4236 = vpack.c.b16 %v4138, %v4137
        %v4237 = vpack.c.b16 %v4140, %v4139
        %v4238 = vpack.c.b16 %v4142, %v4141
        %v4239 = vpack.c.b16 %v4144, %v4143
        %v4240 = vpack.c.b16 %v4146, %v4145
        %v4241 = vpack.c.b16 %v4148, %v4147
        %v4242 = vpack.c.b16 %v4150, %v4149
        %v4243 = vpack.c.b16 %v4152, %v4151
        %v4244 = vpack.c.b16 %v4154, %v4153
        %v4245 = vpack.c.b16 %v4156, %v4155
        %v4246 = vpack.c.b16 %v4158, %v4157
        %v4247 = vpack.c.b16 %v4160, %v4159
        %v4248 = vpack.c.b16 %v4162, %v4161
        %v4249 = vpack.c.b16 %v4164, %v4163
        %v4250 = vpack.c.b16 %v4166, %v4165
        %v4251 = vpack.c.b16 %v4168, %v4167
        %v4252 = vpack.c.b16 %v4170, %v4169
        %v4253 = vpack.c.b16 %v4172, %v4171
        %v4254 = vpack.c.b16 %v4174, %v4173
        %v4255 = vpack.c.b16 %v4176, %v4175
        %v4256 = vpack.c.b16 %v4178, %v4177
        %v4257 = vpack.c.b16 %v4180, %v4179
        %v4258 = vpack.c.b16 %v4182, %v4181
        %v4259 = vpack.c.b16 %v4184, %v4183
        %v4260 = vpack.c.b16 %v4186, %v4185
        %v4261 = vpack.c.b16 %v4188, %v4187
        %v4262 = vpack.c.b16 %v4190, %v4189
        %4335 = vmatprep.subr.bf16.mxu0 0
        %4336 = vmatpush1.bf16.msra.mxu0 %v4198
        %4337 = vmatprep.subr.bf16.mxu0 0
        %4338 = vmatpush1.bf16.msra.mxu0 %v4197
        %4339 = vmatprep.subr.bf16.mxu0 0
        %4340 = vmatpush1.bf16.msra.mxu0 %v4196
        %4341 = vmatprep.subr.bf16.mxu0 0
        %4342 = vmatpush1.bf16.msra.mxu0 %v4195
        %4343 = vmatprep.subr.bf16.mxu0 0
        %4344 = vmatpush1.bf16.msra.mxu0 %v4194
        %4345 = vmatprep.subr.bf16.mxu0 0
        %4346 = vmatpush1.bf16.msra.mxu0 %v4193
        %4347 = vmatprep.subr.bf16.mxu0 0
        %4348 = vmatpush1.bf16.msra.mxu0 %v4192
        %4349 = vmatprep.subr.bf16.mxu0 0
        %4350 = vmatpush1.bf16.msra.mxu0 %v4191
        %4351 = vmatprep.subr.bf16.mxu0 0
        %4352 = vmatpush2.bf16.msra.mxu0 %v4206
        %4353 = vmatprep.subr.bf16.mxu0 0
        %4354 = vmatpush2.bf16.msra.mxu0 %v4205
        %4355 = vmatprep.subr.bf16.mxu0 0
        %4356 = vmatpush2.bf16.msra.mxu0 %v4204
        %4357 = vmatprep.subr.bf16.mxu0 0
        %4358 = vmatpush2.bf16.msra.mxu0 %v4203
        %4359 = vmatprep.subr.bf16.mxu0 0
        %4360 = vmatpush2.bf16.msra.mxu0 %v4202
        %4361 = vmatprep.subr.bf16.mxu0 0
        %4362 = vmatpush2.bf16.msra.mxu0 %v4201
        %4363 = vmatprep.subr.bf16.mxu0 0
        %4364 = vmatpush2.bf16.msra.mxu0 %v4200
        %4365 = vmatprep.subr.bf16.mxu0 0
        %4366 = vmatpush2.bf16.msra.mxu0 %v4199
        %4367 = vmatprep.mubr.bf16.mxu0 %v3376
        %4368 = vmatmul.mubr.bf16.gmra.mxu0 %v3367
        %v4369 = vpop.f32.mrf.mxu0
        %v4370 = vadd.f32 %v3349, %v4369
        %v4371 = vpop.f32.mrf.mxu0
        %v4372 = vpop.f32.mrf.mxu0
        %v4373 = vadd.f32 %v3349, %v4372
        %v4374 = vpop.f32.mrf.mxu0
        %4375 = vmatprep.mubr.bf16.mxu0 %v3505
        %4376 = vmatmul.mubr.bf16.gmra.mxu0 %v3496
        %v4377 = vpop.f32.mrf.mxu0
        %v4378 = vadd.f32 %v3349, %v4377
        %v4379 = vpop.f32.mrf.mxu0
        %v4380 = vpop.f32.mrf.mxu0
        %v4381 = vadd.f32 %v3349, %v4380
        %v4382 = vpop.f32.mrf.mxu0
        %4383 = vmatprep.mubr.bf16.mxu0 %v3634
        %4384 = vmatmul.mubr.bf16.gmra.mxu0 %v3625
        %v4385 = vpop.f32.mrf.mxu0
        %v4386 = vadd.f32 %v3349, %v4385
        %v4387 = vpop.f32.mrf.mxu0
        %v4388 = vpop.f32.mrf.mxu0
        %v4389 = vadd.f32 %v3349, %v4388
        %v4390 = vpop.f32.mrf.mxu0
        %4391 = vmatprep.mubr.bf16.mxu0 %v3763
        %4392 = vmatmul.mubr.bf16.gmra.mxu0 %v3754
        %v4393 = vpop.f32.mrf.mxu0
        %v4394 = vadd.f32 %v3349, %v4393
        %v4395 = vpop.f32.mrf.mxu0
        %v4396 = vpop.f32.mrf.mxu0
        %v4397 = vadd.f32 %v3349, %v4396
        %v4398 = vpop.f32.mrf.mxu0
        %4399 = vdwg.mxu0
        %4400 = vmatprep.subr.bf16.mxu0 0
        %4401 = vmatpush1.bf16.msra.mxu0 %v4214
        %4402 = vmatprep.subr.bf16.mxu0 0
        %4403 = vmatpush1.bf16.msra.mxu0 %v4213
        %4404 = vmatprep.subr.bf16.mxu0 0
        %4405 = vmatpush1.bf16.msra.mxu0 %v4212
        %4406 = vmatprep.subr.bf16.mxu0 0
        %4407 = vmatpush1.bf16.msra.mxu0 %v4211
        %4408 = vmatprep.subr.bf16.mxu0 0
        %4409 = vmatpush1.bf16.msra.mxu0 %v4210
        %4410 = vmatprep.subr.bf16.mxu0 0
        %4411 = vmatpush1.bf16.msra.mxu0 %v4209
        %4412 = vmatprep.subr.bf16.mxu0 0
        %4413 = vmatpush1.bf16.msra.mxu0 %v4208
        %4414 = vmatprep.subr.bf16.mxu0 0
        %4415 = vmatpush1.bf16.msra.mxu0 %v4207
        %4416 = vmatprep.subr.bf16.mxu0 0
        %4417 = vmatpush2.bf16.msra.mxu0 %v4222
        %4418 = vmatprep.subr.bf16.mxu0 0
        %4419 = vmatpush2.bf16.msra.mxu0 %v4221
        %4420 = vmatprep.subr.bf16.mxu0 0
        %4421 = vmatpush2.bf16.msra.mxu0 %v4220
        %4422 = vmatprep.subr.bf16.mxu0 0
        %4423 = vmatpush2.bf16.msra.mxu0 %v4219
        %4424 = vmatprep.subr.bf16.mxu0 0
        %4425 = vmatpush2.bf16.msra.mxu0 %v4218
        %4426 = vmatprep.subr.bf16.mxu0 0
        %4427 = vmatpush2.bf16.msra.mxu0 %v4217
        %4428 = vmatprep.subr.bf16.mxu0 0
        %4429 = vmatpush2.bf16.msra.mxu0 %v4216
        %4430 = vmatprep.subr.bf16.mxu0 0
        %4431 = vmatpush2.bf16.msra.mxu0 %v4215
        %4432 = vmatprep.mubr.bf16.mxu0 %v3410
        %4433 = vmatmul.mubr.bf16.gmra.mxu0 %v3393
        %v4434 = vpop.f32.mrf.mxu0
        %v4435 = vadd.f32 %v4370, %v4434
        %v4436 = vpop.f32.mrf.mxu0
        %v4437 = vpop.f32.mrf.mxu0
        %v4438 = vadd.f32 %v4373, %v4437
        %v4439 = vpop.f32.mrf.mxu0
        %4440 = vmatprep.mubr.bf16.mxu0 %v3539
        %4441 = vmatmul.mubr.bf16.gmra.mxu0 %v3522
        %v4442 = vpop.f32.mrf.mxu0
        %v4443 = vadd.f32 %v4378, %v4442
        %v4444 = vpop.f32.mrf.mxu0
        %v4445 = vpop.f32.mrf.mxu0
        %v4446 = vadd.f32 %v4381, %v4445
        %v4447 = vpop.f32.mrf.mxu0
        %4448 = vmatprep.mubr.bf16.mxu0 %v3668
        %4449 = vmatmul.mubr.bf16.gmra.mxu0 %v3651
        %v4450 = vpop.f32.mrf.mxu0
        %v4451 = vadd.f32 %v4386, %v4450
        %v4452 = vpop.f32.mrf.mxu0
        %v4453 = vpop.f32.mrf.mxu0
        %v4454 = vadd.f32 %v4389, %v4453
        %v4455 = vpop.f32.mrf.mxu0
        %4456 = vmatprep.mubr.bf16.mxu0 %v3797
        %4457 = vmatmul.mubr.bf16.gmra.mxu0 %v3780
        %v4458 = vpop.f32.mrf.mxu0
        %v4459 = vadd.f32 %v4394, %v4458
        %v4460 = vpop.f32.mrf.mxu0
        %v4461 = vpop.f32.mrf.mxu0
        %v4462 = vadd.f32 %v4397, %v4461
        %v4463 = vpop.f32.mrf.mxu0
        %4464 = vdwg.mxu0
        %4465 = vmatprep.subr.bf16.mxu0 0
        %4466 = vmatpush1.bf16.msra.mxu0 %v4230
        %4467 = vmatprep.subr.bf16.mxu0 0
        %4468 = vmatpush1.bf16.msra.mxu0 %v4229
        %4469 = vmatprep.subr.bf16.mxu0 0
        %4470 = vmatpush1.bf16.msra.mxu0 %v4228
        %4471 = vmatprep.subr.bf16.mxu0 0
        %4472 = vmatpush1.bf16.msra.mxu0 %v4227
        %4473 = vmatprep.subr.bf16.mxu0 0
        %4474 = vmatpush1.bf16.msra.mxu0 %v4226
        %4475 = vmatprep.subr.bf16.mxu0 0
        %4476 = vmatpush1.bf16.msra.mxu0 %v4225
        %4477 = vmatprep.subr.bf16.mxu0 0
        %4478 = vmatpush1.bf16.msra.mxu0 %v4224
        %4479 = vmatprep.subr.bf16.mxu0 0
        %4480 = vmatpush1.bf16.msra.mxu0 %v4223
        %4481 = vmatprep.subr.bf16.mxu0 0
        %4482 = vmatpush2.bf16.msra.mxu0 %v4238
        %4483 = vmatprep.subr.bf16.mxu0 0
        %4484 = vmatpush2.bf16.msra.mxu0 %v4237
        %4485 = vmatprep.subr.bf16.mxu0 0
        %4486 = vmatpush2.bf16.msra.mxu0 %v4236
        %4487 = vmatprep.subr.bf16.mxu0 0
        %4488 = vmatpush2.bf16.msra.mxu0 %v4235
        %4489 = vmatprep.subr.bf16.mxu0 0
        %4490 = vmatpush2.bf16.msra.mxu0 %v4234
        %4491 = vmatprep.subr.bf16.mxu0 0
        %4492 = vmatpush2.bf16.msra.mxu0 %v4233
        %4493 = vmatprep.subr.bf16.mxu0 0
        %4494 = vmatpush2.bf16.msra.mxu0 %v4232
        %4495 = vmatprep.subr.bf16.mxu0 0
        %4496 = vmatpush2.bf16.msra.mxu0 %v4231
        %4497 = vmatprep.mubr.bf16.mxu0 %v3436
        %4498 = vmatmul.mubr.bf16.gmra.mxu0 %v3419
        %v4499 = vpop.f32.mrf.mxu0
        %v4500 = vadd.f32 %v4435, %v4499
        %v4501 = vpop.f32.mrf.mxu0
        %v4502 = vpop.f32.mrf.mxu0
        %v4503 = vadd.f32 %v4438, %v4502
        %v4504 = vpop.f32.mrf.mxu0
        %4505 = vmatprep.mubr.bf16.mxu0 %v3565
        %4506 = vmatmul.mubr.bf16.gmra.mxu0 %v3548
        %v4507 = vpop.f32.mrf.mxu0
        %v4508 = vadd.f32 %v4443, %v4507
        %v4509 = vpop.f32.mrf.mxu0
        %v4510 = vpop.f32.mrf.mxu0
        %v4511 = vadd.f32 %v4446, %v4510
        %v4512 = vpop.f32.mrf.mxu0
        %4513 = vmatprep.mubr.bf16.mxu0 %v3694
        %4514 = vmatmul.mubr.bf16.gmra.mxu0 %v3677
        %v4515 = vpop.f32.mrf.mxu0
        %v4516 = vadd.f32 %v4451, %v4515
        %v4517 = vpop.f32.mrf.mxu0
        %v4518 = vpop.f32.mrf.mxu0
        %v4519 = vadd.f32 %v4454, %v4518
        %v4520 = vpop.f32.mrf.mxu0
        %4521 = vmatprep.mubr.bf16.mxu0 %v3823
        %4522 = vmatmul.mubr.bf16.gmra.mxu0 %v3806
        %v4523 = vpop.f32.mrf.mxu0
        %v4524 = vadd.f32 %v4459, %v4523
        %v4525 = vpop.f32.mrf.mxu0
        %v4526 = vpop.f32.mrf.mxu0
        %v4527 = vadd.f32 %v4462, %v4526
        %v4528 = vpop.f32.mrf.mxu0
        %4529 = vdwg.mxu0
        %4530 = vmatprep.subr.bf16.mxu0 0
        %4531 = vmatpush1.bf16.msra.mxu0 %v4246
        %4532 = vmatprep.subr.bf16.mxu0 0
        %4533 = vmatpush1.bf16.msra.mxu0 %v4245
        %4534 = vmatprep.subr.bf16.mxu0 0
        %4535 = vmatpush1.bf16.msra.mxu0 %v4244
        %4536 = vmatprep.subr.bf16.mxu0 0
        %4537 = vmatpush1.bf16.msra.mxu0 %v4243
        %4538 = vmatprep.subr.bf16.mxu0 0
        %4539 = vmatpush1.bf16.msra.mxu0 %v4242
        %4540 = vmatprep.subr.bf16.mxu0 0
        %4541 = vmatpush1.bf16.msra.mxu0 %v4241
        %4542 = vmatprep.subr.bf16.mxu0 0
        %4543 = vmatpush1.bf16.msra.mxu0 %v4240
        %4544 = vmatprep.subr.bf16.mxu0 0
        %4545 = vmatpush1.bf16.msra.mxu0 %v4239
        %4546 = vmatprep.subr.bf16.mxu0 0
        %4547 = vmatpush2.bf16.msra.mxu0 %v4254
        %4548 = vmatprep.subr.bf16.mxu0 0
        %4549 = vmatpush2.bf16.msra.mxu0 %v4253
        %4550 = vmatprep.subr.bf16.mxu0 0
        %4551 = vmatpush2.bf16.msra.mxu0 %v4252
        %4552 = vmatprep.subr.bf16.mxu0 0
        %4553 = vmatpush2.bf16.msra.mxu0 %v4251
        %4554 = vmatprep.subr.bf16.mxu0 0
        %4555 = vmatpush2.bf16.msra.mxu0 %v4250
        %4556 = vmatprep.subr.bf16.mxu0 0
        %4557 = vmatpush2.bf16.msra.mxu0 %v4249
        %4558 = vmatprep.subr.bf16.mxu0 0
        %4559 = vmatpush2.bf16.msra.mxu0 %v4248
        %4560 = vmatprep.subr.bf16.mxu0 0
        %4561 = vmatpush2.bf16.msra.mxu0 %v4247
        %4562 = vmatprep.mubr.bf16.mxu0 %v3462
        %4563 = vmatmul.mubr.bf16.gmra.mxu0 %v3453
        %v4564 = vpop.f32.mrf.mxu0
        %v4565 = vadd.f32 %v4500, %v4564
        %v4566 = vpop.f32.mrf.mxu0
        %v4567 = vpop.f32.mrf.mxu0
        %v4568 = vadd.f32 %v4503, %v4567
        %v4569 = vpop.f32.mrf.mxu0
        %4570 = vmatprep.mubr.bf16.mxu0 %v3591
        %4571 = vmatmul.mubr.bf16.gmra.mxu0 %v3582
        %v4572 = vpop.f32.mrf.mxu0
        %v4573 = vadd.f32 %v4508, %v4572
        %v4574 = vpop.f32.mrf.mxu0
        %v4575 = vpop.f32.mrf.mxu0
        %v4576 = vadd.f32 %v4511, %v4575
        %v4577 = vpop.f32.mrf.mxu0
        %4578 = vmatprep.mubr.bf16.mxu0 %v3720
        %4579 = vmatmul.mubr.bf16.gmra.mxu0 %v3711
        %v4580 = vpop.f32.mrf.mxu0
        %v4581 = vadd.f32 %v4516, %v4580
        %v4582 = vpop.f32.mrf.mxu0
        %v4583 = vpop.f32.mrf.mxu0
        %v4584 = vadd.f32 %v4519, %v4583
        %v4585 = vpop.f32.mrf.mxu0
        %4586 = vmatprep.mubr.bf16.mxu0 %v3849
        %4587 = vmatmul.mubr.bf16.gmra.mxu0 %v3840
        %v4588 = vpop.f32.mrf.mxu0
        %v4589 = vadd.f32 %v4524, %v4588
        %v4590 = vpop.f32.mrf.mxu0
        %v4591 = vpop.f32.mrf.mxu0
        %v4592 = vadd.f32 %v4527, %v4591
        %v4593 = vpop.f32.mrf.mxu0
        %4594 = vdwg.mxu0
        %4595 = vmatprep.subr.bf16.mxu0 0
        %4596 = vmatpush1.bf16.msra.mxu0 %v4262
        %4597 = vmatprep.subr.bf16.mxu0 0
        %4598 = vmatpush1.bf16.msra.mxu0 %v4261
        %4599 = vmatprep.subr.bf16.mxu0 0
        %4600 = vmatpush1.bf16.msra.mxu0 %v4260
        %4601 = vmatprep.subr.bf16.mxu0 0
        %4602 = vmatpush1.bf16.msra.mxu0 %v4259
        %4603 = vmatprep.subr.bf16.mxu0 0
        %4604 = vmatpush1.bf16.msra.mxu0 %v4258
        %4605 = vmatprep.subr.bf16.mxu0 0
        %4606 = vmatpush1.bf16.msra.mxu0 %v4257
        %4607 = vmatprep.subr.bf16.mxu0 0
        %4608 = vmatpush1.bf16.msra.mxu0 %v4256
        %4609 = vmatprep.subr.bf16.mxu0 0
        %4610 = vmatpush1.bf16.msra.mxu0 %v4255
        %4611 = vmatprep.subr.bf16.mxu0 0
        %4612 = vmatpush2.bf16.msra.mxu0 0
        %4613 = vmatprep.subr.bf16.mxu0 0
        %4614 = vmatpush2.bf16.msra.mxu0 0
        %4615 = vmatprep.subr.bf16.mxu0 0
        %4616 = vmatpush2.bf16.msra.mxu0 0
        %4617 = vmatprep.subr.bf16.mxu0 0
        %4618 = vmatpush2.bf16.msra.mxu0 0
        %4619 = vmatprep.subr.bf16.mxu0 0
        %4620 = vmatpush2.bf16.msra.mxu0 0
        %4621 = vmatprep.subr.bf16.mxu0 0
        %4622 = vmatpush2.bf16.msra.mxu0 0
        %4623 = vmatprep.subr.bf16.mxu0 0
        %4624 = vmatpush2.bf16.msra.mxu0 0
        %4625 = vmatprep.subr.bf16.mxu0 0
        %4626 = vmatpush2.bf16.msra.mxu0 0
        %4627 = vmatprep.mubr.bf16.mxu0 0
        %4628 = vmatmul.mubr.bf16.gmra.mxu0 %v3479
        %v4629 = vpop.f32.mrf.mxu0
        %v4630 = vadd.f32 %v4565, %v4629
        %v4631 = vpop.f32.mrf.mxu0
        %v4632 = vpop.f32.mrf.mxu0
        %v4633 = vadd.f32 %v4568, %v4632
        %v4634 = vpop.f32.mrf.mxu0
        %4635 = vmatprep.mubr.bf16.mxu0 0
        %4636 = vmatmul.mubr.bf16.gmra.mxu0 %v3608
        %v4637 = vpop.f32.mrf.mxu0
        %v4638 = vadd.f32 %v4573, %v4637
        %v4639 = vpop.f32.mrf.mxu0
        %v4640 = vpop.f32.mrf.mxu0
        %v4641 = vadd.f32 %v4576, %v4640
        %v4642 = vpop.f32.mrf.mxu0
        %4643 = vmatprep.mubr.bf16.mxu0 0
        %4644 = vmatmul.mubr.bf16.gmra.mxu0 %v3737
        %v4645 = vpop.f32.mrf.mxu0
        %v4646 = vadd.f32 %v4581, %v4645
        %v4647 = vpop.f32.mrf.mxu0
        %v4648 = vpop.f32.mrf.mxu0
        %v4649 = vadd.f32 %v4584, %v4648
        %v4650 = vpop.f32.mrf.mxu0
        %4651 = vmatprep.mubr.bf16.mxu0 0
        %4652 = vmatmul.mubr.bf16.gmra.mxu0 %v3866
        %v4653 = vpop.f32.mrf.mxu0
        %v4654 = vadd.f32 %v4589, %v4653
        %v4655 = vpop.f32.mrf.mxu0
        %v4656 = vpop.f32.mrf.mxu0
        %v4657 = vadd.f32 %v4592, %v4656
        %v4658 = vpop.f32.mrf.mxu0
        %4659 = vdwg.mxu0
        %v4660 = vadd.f32 %v4630, %v3336
        %v4661 = vadd.f32 %v4633, %v3337
        %v4662 = vadd.f32 %v4638, %v3338
        %v4663 = vadd.f32 %v4641, %v3339
        %v4664 = vadd.f32 %v4646, %v3340
        %v4665 = vadd.f32 %v4649, %v3341
        %v4666 = vadd.f32 %v4654, %v3342
        %v4667 = vadd.f32 %v4657, %v3343
        %v4668 = vmax.f32 %v4660, 0.0
        %v4669 = vmax.f32 %v4661, 0.0
        %v4670 = vmax.f32 %v4662, 0.0
        %v4671 = vmax.f32 %v4663, 0.0
        %v4672 = vmax.f32 %v4664, 0.0
        %v4673 = vmax.f32 %v4665, 0.0
        %v4674 = vmax.f32 %v4666, 0.0
        %v4675 = vmax.f32 %v4667, 0.0
        %4676 = vst [vmem:[%s285] sm:$0xff] %v4668
        %4677 = vst [vmem:[%s285 + $0x8] sm:$0xff] %v4669
        %4678 = vst [vmem:[%s285 + $0x10] sm:$0xff] %v4670
        %4679 = vst [vmem:[%s285 + $0x18] sm:$0xff] %v4671
        %4680 = vst [vmem:[%s285 + $0x20] sm:$0xff] %v4672
        %4681 = vst [vmem:[%s285 + $0x28] sm:$0xff] %v4673
        %4682 = vst [vmem:[%s285 + $0x30] sm:$0xff] %v4674
        %4683 = vst [vmem:[%s285 + $0x38] sm:$0xff] %v4675
        %s4684 = sand.u32 %s155, 1
        %s4685 = scalar_lea.sflag [#allocation6], %s4684
        %s4686 = sand.u32 %s155, 1
        %s4687 = smul.addr %s4686, 64
        %s4688 = scalar_lea.vmem [#allocation10], %s4687
        // Predicated region
        $region61: #{tpu_custom_call.1} parent=39 // pred_check
          %p4689 = pneg %p165
        $region62: #{tpu_custom_call.1} parent=39 // pred_check_branch
          %4691 = sbr.rel (%p4689) target = $region64
        $region63: #{tpu_custom_call.1} parent=39 // pred_region
          %s4692 = smul.u32 4, %s28
          %s4694 = ssub.s32 1024, 1024
          %4695 = vsyncadd %s4685, %s4694
          %s4696 = smul.addr %s4692, 2
          %s4697 = smul.addr %s27, 32
          %s4698 = sadd.s32 %s4696, %s4697
          %s4699 = smul.addr %s4698, 128
          %s4700 = scalar_lea.hbm %s5, %s4699
          %s4701 = sshll.u32 %s4688, 4
          %s4702 = int_to_ptr.vmem [resolvable:$true] %s4701
          %4707 = dma.vmem_to_hbm [thread:$0]  %s4702, 1024, %s4700, %s4685, 128, 128, 8
        $region64: #{tpu_custom_call.1} parent=39 // pred_fallthru
          _
      $region40: #{tpu_custom_call.1} parent=5 // pred_fallthru
        _
      %p4708 = scmp.le.s32.totalorder 2, %s18
      // Predicated region
      $region65: #{tpu_custom_call.1} parent=5 // pred_check
        %p4709 = pneg %p4708
      $region66: #{tpu_custom_call.1} parent=5 // pred_check_branch
        %4711 = sbr.rel (%p4709) target = $region68
      $region67: #{tpu_custom_call.1} parent=5 // pred_region
        %s4712 = ssub.s32 %s18, 2
        // Predicated region
        $region69: #{tpu_custom_call.1} parent=67 // pred_check
          %p4713 = pneg %p171
        $region70: #{tpu_custom_call.1} parent=67 // pred_check_branch
          %4715 = sbr.rel (%p4713) target = $region72
        $region71: #{tpu_custom_call.1} parent=67 // pred_region
          %s4716 = sand.u32 %s156, 1
          %s4717 = scalar_lea.sflag [#allocation6], %s4716
          %s4718 = sand.u32 %s156, 1
          %s4719 = smul.addr %s4718, 64
          %s4720 = scalar_lea.vmem [#allocation10], %s4719
          %4721 = dma.done %s4717, 1024
        $region72: #{tpu_custom_call.1} parent=67 // pred_fallthru
          _
      $region68: #{tpu_custom_call.1} parent=5 // pred_fallthru
        _
    $region6: #{tpu_custom_call.1} parent=1 // loop_footer
      %s22 = sadd.s32 1, %s18
    $region7: #{tpu_custom_call.1} parent=1 // loop_footer_branch
      %17 = sbr.rel target = $region3
    $region8: #{tpu_custom_call.1} parent=1 // loop_exit
      _
    %4722 = vsyncpa [#allocation5], 1
    %s4723 = scalar_lea.sflag [#allocation5], 1
    %4724 = vsyncpa %s4723, 1
    %4725 = vsyncpa [#allocation8], 1
    %4726 = vsyncpa [#allocation6], 1
    %s4727 = scalar_lea.sflag [#allocation6], 1
    %4728 = vsyncpa %s4727, 1

</llo_original>
